<compile_context>
chip_gen: v6e
topology: v6e:2x2x1
jax: 0.10.0
libtpu: 0.0.40
codegen_flags: <defaults>
</compile_context>

<pallas_src>
import jax
import jax.numpy as jnp
from jax import lax
from jax.experimental import pallas as pl
from jax.experimental.pallas import tpu as pltpu

_BF16 = jnp.bfloat16
_F32 = jnp.float32
_VMEM_LIMIT = 32 * 1024 * 1024  # >= v5e default (16 MiB), == v6e/v7x scoped default


def _row_block(h):
    for b in (8, 4, 2, 1):
        if h % b == 0:
            return b
    return 1


# ---------------------------------------------------------------------------
# ConvTranspose2d(kernel=2, stride=2): one MXU matmul per input row; the
# (di, dj) spatial interleave is written directly by the kernel.
# ---------------------------------------------------------------------------
def conv_transpose_2x2(x_nhwc, w_pt, b):
    """x: (N,H,W,Cin); w_pt: (Cin,Cout,2,2); b: (Cout,) -> (N,2H,2W,Cout) bf16."""
    N, H, W, Cin = x_nhwc.shape
    Cout = w_pt.shape[1]
    # weight matrix columns ordered (di, dj, Cout)
    w_mat = jnp.transpose(w_pt, (0, 2, 3, 1)).reshape(Cin, 4 * Cout).astype(_BF16)
    b4 = jnp.tile(b, 4).reshape(1, 4 * Cout).astype(_F32)
    x = x_nhwc.astype(_BF16)

    def kernel(x_ref, w_ref, b_ref, o_ref):
        # (W, Cin) @ (Cin, 4*Cout) on the MXU; f32 accumulation + f32 bias.
        y = jnp.dot(x_ref[...], w_ref[...], preferred_element_type=jnp.float32)
        y = y + b_ref[...]
        # output rows 2h (di=0) and 2h+1 (di=1); columns already laid out as (dj, co).
        o_ref[0, :, :] = y[:, : 2 * Cout].astype(o_ref.dtype)
        o_ref[1, :, :] = y[:, 2 * Cout:].astype(o_ref.dtype)

    up = pl.pallas_call(
        kernel,
        grid=(N, H),
        in_specs=[
            pl.BlockSpec((None, None, W, Cin), lambda n, h: (n, h, 0, 0)),
            pl.BlockSpec((Cin, 4 * Cout), lambda n, h: (0, 0)),  # VMEM-resident
            pl.BlockSpec((1, 4 * Cout), lambda n, h: (0, 0)),    # VMEM-resident
        ],
        out_specs=pl.BlockSpec((None, 2, W, 2 * Cout), lambda n, h: (n, h, 0, 0)),
        out_shape=jax.ShapeDtypeStruct((N, 2 * H, W, 2 * Cout), _BF16),
        compiler_params=pltpu.CompilerParams(
            dimension_semantics=("parallel", "parallel"),
            vmem_limit_bytes=_VMEM_LIMIT),
    )(x, w_mat, b4)
    # (N, 2H, W, 2*Cout) is bit-identical in memory to (N, 2H, 2W, Cout): free un-fold.
    return up.reshape(N, 2 * H, 2 * W, Cout)


# ---------------------------------------------------------------------------
# 3x3 "same" conv over the channel-concatenation of several slabs, + bias,
# with BatchNorm partial statistics fused into the epilogue.
# ---------------------------------------------------------------------------
def _make_conv3x3_kernel(n_slabs, W):
    def kernel(*refs):
        x_refs = refs[:n_slabs]              # each: (W+2, C_i) bf16 padded input row
        w_refs = refs[n_slabs:2 * n_slabs]   # each: (3, 3, C_i, Cout) bf16 (HWIO)
        b_ref = refs[2 * n_slabs]            # (1, Cout) f32
        y_ref = refs[2 * n_slabs + 1]        # (W, Cout) f32 output row
        st_ref = refs[2 * n_slabs + 2]       # (2, Cout) f32 partial [sum, sumsq]
        acc_ref = refs[2 * n_slabs + 3]      # (W, Cout) f32 scratch accumulator

        ky = pl.program_id(2)                # reduction ("arbitrary") tap axis

        @pl.when(ky == 0)
        def _init():
            acc_ref[...] = jnp.zeros_like(acc_ref)

        acc = acc_ref[...]
        for x_ref, w_ref in zip(x_refs, w_refs):
            x = x_ref[...]                   # (W+2, C): kx halo comes with the block
            w = w_ref[ky]                    # (3, C, Cout): taps for this ky
            for kx in range(3):
                acc = acc + jnp.dot(x[kx:kx + W, :], w[kx],
                                    preferred_element_type=jnp.float32)
        acc_ref[...] = acc

        @pl.when(ky == 2)
        def _finalize():
            y = acc_ref[...] + b_ref[...]    # bias in f32
            y_ref[...] = y.astype(y_ref.dtype)
            # per-row partial BN statistics; combined across rows in the wrapper
            st_ref[0:1, :] = jnp.sum(y, axis=0, keepdims=True)
            st_ref[1:2, :] = jnp.sum(y * y, axis=0, keepdims=True)

    return kernel


def conv3x3_bias_stats(slabs, weights, bias):
    """3x3 conv (inputs pre-padded) over concat(slabs) == sum of per-slab convs.

    slabs:   list of (N, H+2, W+2, C_i) bf16, zero-padded spatially.
    weights: list of (3, 3, C_i, Cout) bf16 (HWIO), matching the slab channel split.
    bias:    (Cout,) f32.
    Returns: y (N,H,W,Cout) f32 conv+bias output, stats (N,H,2,Cout) partial [sum, sumsq].
    """
    N, Hp2, Wp2, _ = slabs[0].shape
    H, W = Hp2 - 2, Wp2 - 2
    Cout = weights[0].shape[-1]

    in_specs = []
    for s in slabs:
        C = s.shape[-1]
        # one padded input row per grid step; row index = output row + ky tap
        in_specs.append(
            pl.BlockSpec((None, None, Wp2, C), lambda n, h, ky: (n, h + ky, 0, 0)))
    for w in weights:
        C = w.shape[2]
        # constant index -> DMA'd once, stays resident in VMEM across the grid
        in_specs.append(
            pl.BlockSpec((3, 3, C, Cout), lambda n, h, ky: (0, 0, 0, 0)))
    in_specs.append(pl.BlockSpec((1, Cout), lambda n, h, ky: (0, 0)))

    y, st = pl.pallas_call(
        _make_conv3x3_kernel(len(slabs), W),
        grid=(N, H, 3),
        in_specs=in_specs,
        out_specs=(
            pl.BlockSpec((None, None, W, Cout), lambda n, h, ky: (n, h, 0, 0)),
            pl.BlockSpec((None, None, 2, Cout), lambda n, h, ky: (n, h, 0, 0)),
        ),
        out_shape=(
            jax.ShapeDtypeStruct((N, H, W, Cout), _F32),
            jax.ShapeDtypeStruct((N, H, 2, Cout), _F32),
        ),
        scratch_shapes=[pltpu.VMEM((W, Cout), jnp.float32)],
        compiler_params=pltpu.CompilerParams(
            dimension_semantics=("parallel", "parallel", "arbitrary"),
            vmem_limit_bytes=_VMEM_LIMIT),
    )(*slabs, *weights, bias.reshape(1, Cout).astype(_F32))
    return y, st


# ---------------------------------------------------------------------------
# BatchNorm(train) finalize: tiny cross-tile stat reduction (wrapper) + fused
# per-channel scale/shift + ReLU Pallas pass, tiled over (batch, row blocks).
# ---------------------------------------------------------------------------
def _bn_scale_shift(stats, count, gamma, beta, eps=1e-5):
    s = jnp.sum(stats[:, :, 0, :], axis=(0, 1))
    ss = jnp.sum(stats[:, :, 1, :], axis=(0, 1))
    mean = s / count
    var = jnp.maximum(ss / count - mean * mean, 0.0)  # biased var (PyTorch train norm)
    scale = gamma * lax.rsqrt(var + eps)
    shift = beta - mean * scale
    return scale, shift


def bn_affine_relu(y, scale, shift, out_dtype):
    N, H, W, C = y.shape
    br = _row_block(H)

    def kernel(x_ref, s_ref, t_ref, o_ref):
        o_ref[...] = jnp.maximum(
            x_ref[...] * s_ref[...] + t_ref[...], 0.0).astype(o_ref.dtype)

    return pl.pallas_call(
        kernel,
        grid=(N, H // br),
        in_specs=[
            pl.BlockSpec((None, br, W, C), lambda n, i: (n, i, 0, 0)),
            pl.BlockSpec((1, 1, C), lambda n, i: (0, 0, 0)),
            pl.BlockSpec((1, 1, C), lambda n, i: (0, 0, 0)),
        ],
        out_specs=pl.BlockSpec((None, br, W, C), lambda n, i: (n, i, 0, 0)),
        out_shape=jax.ShapeDtypeStruct((N, H, W, C), out_dtype),
        compiler_params=pltpu.CompilerParams(
            dimension_semantics=("parallel", "parallel"),
            vmem_limit_bytes=_VMEM_LIMIT),
    )(y, scale.reshape(1, 1, C).astype(_F32), shift.reshape(1, 1, C).astype(_F32))


# ---------------------------------------------------------------------------
# Forward pass (matches UnetUp.forward; NCHW in / NCHW out, f32)
# ---------------------------------------------------------------------------
def unet_up_forward(params, inputs1_nchw, inputs2_nchw):
    Cskip = inputs1_nchw.shape[1]

    # NCHW -> NHWC layout glue; MXU operands are bf16.
    skip = jnp.transpose(inputs1_nchw, (0, 2, 3, 1)).astype(_BF16)
    x2 = jnp.transpose(inputs2_nchw, (0, 2, 3, 1))

    # ConvTranspose2d(k=2, s=2)
    up = conv_transpose_2x2(x2, params["up_w"], params["up_b"])  # (N,2H,2W,Cout) bf16
    N, Hf, Wf, _ = up.shape
    count = N * Hf * Wf

    pad = ((0, 0), (1, 1), (1, 1), (0, 0))

    # conv1 over cat([skip, up], channel) == conv(skip, w1_skip) + conv(up, w1_up)
    w1 = jnp.transpose(params["w1"], (2, 3, 1, 0)).astype(_BF16)  # (3,3,Cin_total,Cout)
    y1, st1 = conv3x3_bias_stats(
        [jnp.pad(skip, pad), jnp.pad(up, pad)],
        [w1[:, :, :Cskip, :], w1[:, :, Cskip:, :]],
        params["b1"])
    scale1, shift1 = _bn_scale_shift(st1, count, params["g1"], params["be1"])
    h1 = bn_affine_relu(y1, scale1, shift1, out_dtype=_BF16)

    # conv2
    w2 = jnp.transpose(params["w2"], (2, 3, 1, 0)).astype(_BF16)
    y2, st2 = conv3x3_bias_stats([jnp.pad(h1, pad)], [w2], params["b2"])
    scale2, shift2 = _bn_scale_shift(st2, count, params["g2"], params["be2"])
    out = bn_affine_relu(y2, scale2, shift2, out_dtype=_F32)

    # TODO(synk): BatchNorm2d running_mean/var buffer (momentum) updates are training-time
    # state and are not produced; the forward output only needs the batch statistics.
    return jnp.transpose(out, (0, 3, 1, 2))


# ---------------------------------------------------------------------------
# Pure-JAX reference mirroring the kernel numerics (bf16 matmul operands,
# f32 accumulation, f32 BN math, bf16 intermediate activations).
# ---------------------------------------------------------------------------
def _ref_forward(params, inputs1_nchw, inputs2_nchw):
    Cin, Cout = params["up_w"].shape[0], params["up_w"].shape[1]
    x2 = jnp.transpose(inputs2_nchw, (0, 2, 3, 1)).astype(_BF16)
    skip = jnp.transpose(inputs1_nchw, (0, 2, 3, 1)).astype(_BF16)
    N, H2, W2, _ = x2.shape

    w_up = jnp.transpose(params["up_w"], (0, 2, 3, 1)).reshape(Cin, 4 * Cout).astype(_BF16)
    y = jnp.dot(x2.reshape(-1, Cin), w_up, preferred_element_type=_F32)
    y = y + jnp.tile(params["up_b"], 4)[None, :]
    y = y.reshape(N, H2, W2, 2, 2, Cout)
    up = jnp.transpose(y, (0, 1, 3, 2, 4, 5)).reshape(N, 2 * H2, 2 * W2, Cout).astype(_BF16)

    cat = jnp.concatenate([skip, up], axis=-1)

    def conv_bn_relu(x, w_pt, b, g, be, out_dtype):
        w = jnp.transpose(w_pt, (2, 3, 1, 0)).astype(_BF16)
        y = lax.conv_general_dilated(
            x, w, window_strides=(1, 1), padding=((1, 1), (1, 1)),
            dimension_numbers=("NHWC", "HWIO", "NHWC"),
            preferred_element_type=_F32)
        y = y + b[None, None, None, :]
        mean = jnp.mean(y, axis=(0, 1, 2), keepdims=True)
        var = jnp.mean((y - mean) ** 2, axis=(0, 1, 2), keepdims=True)
        h = jnp.maximum((y - mean) * lax.rsqrt(var + 1e-5) * g + be, 0.0)
        return h.astype(out_dtype)

    h1 = conv_bn_relu(cat, params["w1"], params["b1"], params["g1"], params["be1"], _BF16)
    out = conv_bn_relu(h1, params["w2"], params["b2"], params["g2"], params["be2"], _F32)
    return jnp.transpose(out, (0, 3, 1, 2))


# ---------------------------------------------------------------------------
# Deterministic parameter init (synthetic; shapes follow the PyTorch module)
# ---------------------------------------------------------------------------
def init_params(key, in_channels, out_channels):
    ks = jax.random.split(key, 10)
    return {
        # ConvTranspose2d(in, out, k=2, s=2): weight (Cin, Cout, 2, 2), bias (Cout,)
        "up_w": 0.1 * jax.random.normal(ks[0], (in_channels, out_channels, 2, 2), jnp.float32),
        "up_b": 0.1 * jax.random.normal(ks[1], (out_channels,), jnp.float32),
        # Conv2d(in, out, 3, pad=1)
        "w1": 0.1 * jax.random.normal(ks[2], (out_channels, in_channels, 3, 3), jnp.float32),
        "b1": 0.1 * jax.random.normal(ks[3], (out_channels,), jnp.float32),
        "g1": 1.0 + 0.1 * jax.random.normal(ks[4], (out_channels,), jnp.float32),
        "be1": 0.1 * jax.random.normal(ks[5], (out_channels,), jnp.float32),
        # Conv2d(out, out, 3, pad=1)
        "w2": 0.1 * jax.random.normal(ks[6], (out_channels, out_channels, 3, 3), jnp.float32),
        "b2": 0.1 * jax.random.normal(ks[7], (out_channels,), jnp.float32),
        "g2": 1.0 + 0.1 * jax.random.normal(ks[8], (out_channels,), jnp.float32),
        "be2": 0.1 * jax.random.normal(ks[9], (out_channels,), jnp.float32),
    }


if __name__ == "__main__":
    in_channels, out_channels = 8, 4
    key = jax.random.PRNGKey(0)
    kp, k1, k2 = jax.random.split(key, 3)
    params = init_params(kp, in_channels, out_channels)

    # inputs2: coarse features (get upsampled); inputs1: skip connection at 2x resolution.
    inputs2 = jax.random.normal(k2, (2, in_channels, 8, 8), jnp.float32)        # NCHW
    inputs1 = jax.random.normal(k1, (2, in_channels - out_channels, 16, 16), jnp.float32)

    fwd = jax.jit(unet_up_forward)
    out = jax.block_until_ready(fwd(params, inputs1, inputs2))
    assert out.shape == (2, out_channels, 16, 16), out.shape

    ref = jax.block_until_ready(_ref_forward(params, inputs1, inputs2))
    # Both paths use bf16 matmul operands and bf16 intermediate activations; the
    # tolerance covers rare bf16 rounding-boundary flips from accumulation-order noise.
    assert jnp.allclose(out, ref, rtol=1e-2, atol=1e-2), float(jnp.max(jnp.abs(out - ref)))

    print("KERNEL_OK")
</pallas_src>

<mosaic_0001>
module attributes {stable_mosaic.version = 11 : i64} {
  func.func @kernel(%arg0: i32, %arg1: i32, %arg2: memref<1x1x8x8xbf16, #tpu.memory_space<vmem>>, %arg3: memref<8x16xbf16, #tpu.memory_space<vmem>>, %arg4: memref<1x16xf32, #tpu.memory_space<vmem>>, %arg5: memref<1x2x8x8xbf16, #tpu.memory_space<vmem>>) attributes {dimension_semantics = [#tpu.dimension_semantics<parallel>, #tpu.dimension_semantics<parallel>], iteration_bounds = array<i64: 2, 8>, scalar_prefetch = 0 : i64, scratch_operands = 0 : i64, tpu.core_type = #tpu.core_type<tc>, window_params = [{transform_indices = @transform_0, window_bounds = array<i64: 1, 1, 8, 8>}, {pipeline_mode = #tpu.pipeline_mode<synchronous>, transform_indices = @transform_1, window_bounds = array<i64: 8, 16>}, {pipeline_mode = #tpu.pipeline_mode<synchronous>, transform_indices = @transform_2, window_bounds = array<i64: 1, 16>}, {transform_indices = @transform_3, window_bounds = array<i64: 1, 2, 8, 8>}]} {
    %c0 = arith.constant 0 : index
    %c0_0 = arith.constant 0 : index
    %c0_1 = arith.constant 0 : index
    %c0_2 = arith.constant 0 : index
    %0 = vector.load %arg2[%c0, %c0_0, %c0_1, %c0_2] : memref<1x1x8x8xbf16, #tpu.memory_space<vmem>>, vector<1x1x8x8xbf16>
    %1 = vector.shape_cast %0 : vector<1x1x8x8xbf16> to vector<8x8xbf16>
    %c0_3 = arith.constant 0 : index
    %c0_4 = arith.constant 0 : index
    %2 = vector.load %arg3[%c0_3, %c0_4] : memref<8x16xbf16, #tpu.memory_space<vmem>>, vector<8x16xbf16>
    %cst = arith.constant dense<0.000000e+00> : vector<8x16xf32>
    %3 = tpu.matmul %1, %2, %cst {dimension_numbers = #tpu.dot_dimension_numbers<[1], [0], [0], [1], [0, 0, 1, 1], [], []>} : vector<8x8xbf16>, vector<8x16xbf16>, vector<8x16xf32> -> vector<8x16xf32>
    %c0_5 = arith.constant 0 : index
    %c0_6 = arith.constant 0 : index
    %4 = vector.load %arg4[%c0_5, %c0_6] : memref<1x16xf32, #tpu.memory_space<vmem>>, vector<1x16xf32>
    %5 = vector.broadcast %4 : vector<1x16xf32> to vector<8x16xf32>
    %6 = arith.addf %3, %5 : vector<8x16xf32>
    %7 = vector.extract_strided_slice %6 {offsets = [0, 0], sizes = [8, 8], strides = [1, 1]} : vector<8x16xf32> to vector<8x8xf32>
    %8 = arith.truncf %7 : vector<8x8xf32> to vector<8x8xbf16>
    %c0_7 = arith.constant 0 : index
    %c0_8 = arith.constant 0 : index
    %c0_9 = arith.constant 0 : index
    %c0_10 = arith.constant 0 : index
    %9 = vector.load %arg5[%c0_7, %c0_8, %c0_9, %c0_10] : memref<1x2x8x8xbf16, #tpu.memory_space<vmem>>, vector<1x1x8x8xbf16>
    %10 = vector.shape_cast %9 : vector<1x1x8x8xbf16> to vector<8x8xbf16>
    %11 = vector.shape_cast %8 : vector<8x8xbf16> to vector<1x1x8x8xbf16>
    tpu.vector_store %arg5[%c0_7, %c0_8, %c0_9, %c0_10], %11 {strides = array<i32>} : memref<1x2x8x8xbf16, #tpu.memory_space<vmem>>, vector<1x1x8x8xbf16>,
    %12 = vector.extract_strided_slice %6 {offsets = [0, 8], sizes = [8, 8], strides = [1, 1]} : vector<8x16xf32> to vector<8x8xf32>
    %13 = arith.truncf %12 : vector<8x8xf32> to vector<8x8xbf16>
    %c0_11 = arith.constant 0 : index
    %c1 = arith.constant 1 : index
    %c0_12 = arith.constant 0 : index
    %c0_13 = arith.constant 0 : index
    %14 = vector.load %arg5[%c0_11, %c1, %c0_12, %c0_13] : memref<1x2x8x8xbf16, #tpu.memory_space<vmem>>, vector<1x1x8x8xbf16>
    %15 = vector.shape_cast %14 : vector<1x1x8x8xbf16> to vector<8x8xbf16>
    %16 = vector.shape_cast %13 : vector<8x8xbf16> to vector<1x1x8x8xbf16>
    tpu.vector_store %arg5[%c0_11, %c1, %c0_12, %c0_13], %16 {strides = array<i32>} : memref<1x2x8x8xbf16, #tpu.memory_space<vmem>>, vector<1x1x8x8xbf16>,
    return
  }
  func.func @transform_0(%arg0: i32, %arg1: i32) -> (i32, i32, i32, i32) {
    %c0_i32 = arith.constant 0 : i32
    %c0_i32_0 = arith.constant 0 : i32
    %c0_i32_1 = arith.constant 0 : i32
    return %arg0, %arg1, %c0_i32, %c0_i32_0 : i32, i32, i32, i32
  }
  func.func @transform_1(%arg0: i32, %arg1: i32) -> (i32, i32) {
    %c0_i32 = arith.constant 0 : i32
    %c0_i32_0 = arith.constant 0 : i32
    %c0_i32_1 = arith.constant 0 : i32
    return %c0_i32, %c0_i32_0 : i32, i32
  }
  func.func @transform_2(%arg0: i32, %arg1: i32) -> (i32, i32) {
    %c0_i32 = arith.constant 0 : i32
    %c0_i32_0 = arith.constant 0 : i32
    %c0_i32_1 = arith.constant 0 : i32
    return %c0_i32, %c0_i32_0 : i32, i32
  }
  func.func @transform_3(%arg0: i32, %arg1: i32) -> (i32, i32, i32, i32) {
    %c0_i32 = arith.constant 0 : i32
    %c0_i32_0 = arith.constant 0 : i32
    %c0_i32_1 = arith.constant 0 : i32
    return %arg0, %arg1, %c0_i32, %c0_i32_0 : i32, i32, i32, i32
  }
}

module attributes {stable_mosaic.version = 11 : i64} {
  func.func @kernel(%arg0: i32, %arg1: i32, %arg2: i32, %arg3: memref<1x1x18x4xbf16, #tpu.memory_space<vmem>>, %arg4: memref<1x1x18x4xbf16, #tpu.memory_space<vmem>>, %arg5: memref<3x3x4x4xbf16, #tpu.memory_space<vmem>>, %arg6: memref<3x3x4x4xbf16, #tpu.memory_space<vmem>>, %arg7: memref<1x4xf32, #tpu.memory_space<vmem>>, %arg8: memref<1x1x16x4xf32, #tpu.memory_space<vmem>>, %arg9: memref<1x1x2x4xf32, #tpu.memory_space<vmem>>, %arg10: memref<16x4xf32, #tpu.memory_space<vmem>>) attributes {dimension_semantics = [#tpu.dimension_semantics<parallel>, #tpu.dimension_semantics<parallel>, #tpu.dimension_semantics<arbitrary>], iteration_bounds = array<i64: 2, 16, 3>, scalar_prefetch = 0 : i64, scratch_operands = 1 : i64, tpu.core_type = #tpu.core_type<tc>, window_params = [{transform_indices = @transform_0, window_bounds = array<i64: 1, 1, 18, 4>}, {transform_indices = @transform_1, window_bounds = array<i64: 1, 1, 18, 4>}, {pipeline_mode = #tpu.pipeline_mode<synchronous>, transform_indices = @transform_2, window_bounds = array<i64: 3, 3, 4, 4>}, {pipeline_mode = #tpu.pipeline_mode<synchronous>, transform_indices = @transform_3, window_bounds = array<i64: 3, 3, 4, 4>}, {pipeline_mode = #tpu.pipeline_mode<synchronous>, transform_indices = @transform_4, window_bounds = array<i64: 1, 4>}, {transform_indices = @transform_5, window_bounds = array<i64: 1, 1, 16, 4>}, {transform_indices = @transform_6, window_bounds = array<i64: 1, 1, 2, 4>}]} {
    %c0_i32 = arith.constant 0 : i32
    %0 = arith.cmpi eq, %arg2, %c0_i32 : i32
    %1 = arith.extui %0 : i1 to i32
    %c0_i32_0 = arith.constant 0 : i32
    %2 = arith.cmpi ne, %1, %c0_i32_0 : i32
    scf.if %2 {
      %cst_24 = arith.constant 0.000000e+00 : f32
      %48 = vector.broadcast %cst_24 : f32 to vector<16x4xf32>
      %c0_25 = arith.constant 0 : index
      %c0_26 = arith.constant 0 : index
      %49 = vector.load %arg10[%c0_25, %c0_26] : memref<16x4xf32, #tpu.memory_space<vmem>>, vector<16x4xf32>
      tpu.vector_store %arg10[%c0_25, %c0_26], %48 {strides = array<i32>} : memref<16x4xf32, #tpu.memory_space<vmem>>, vector<16x4xf32>,
    } else {
    }
    %c0 = arith.constant 0 : index
    %c0_1 = arith.constant 0 : index
    %3 = vector.load %arg10[%c0, %c0_1] : memref<16x4xf32, #tpu.memory_space<vmem>>, vector<16x4xf32>
    %c0_2 = arith.constant 0 : index
    %c0_3 = arith.constant 0 : index
    %c0_4 = arith.constant 0 : index
    %c0_5 = arith.constant 0 : index
    %4 = vector.load %arg3[%c0_2, %c0_3, %c0_4, %c0_5] : memref<1x1x18x4xbf16, #tpu.memory_space<vmem>>, vector<1x1x18x4xbf16>
    %5 = vector.shape_cast %4 : vector<1x1x18x4xbf16> to vector<18x4xbf16>
    %6 = arith.index_cast %arg2 : i32 to index
    %c0_6 = arith.constant 0 : index
    %c0_7 = arith.constant 0 : index
    %c0_8 = arith.constant 0 : index
    %7 = vector.load %arg5[%6, %c0_6, %c0_7, %c0_8] : memref<3x3x4x4xbf16, #tpu.memory_space<vmem>>, vector<1x3x4x4xbf16>
    %8 = vector.shape_cast %7 : vector<1x3x4x4xbf16> to vector<3x4x4xbf16>
    %9 = vector.extract_strided_slice %5 {offsets = [0, 0], sizes = [16, 4], strides = [1, 1]} : vector<18x4xbf16> to vector<16x4xbf16>
    %10 = vector.extract_strided_slice %8 {offsets = [0, 0, 0], sizes = [1, 4, 4], strides = [1, 1, 1]} : vector<3x4x4xbf16> to vector<1x4x4xbf16>
    %11 = vector.shape_cast %10 : vector<1x4x4xbf16> to vector<4x4xbf16>
    %cst = arith.constant dense<0.000000e+00> : vector<16x4xf32>
    %12 = tpu.matmul %9, %11, %cst {dimension_numbers = #tpu.dot_dimension_numbers<[1], [0], [0], [1], [0, 0, 1, 1], [], []>} : vector<16x4xbf16>, vector<4x4xbf16>, vector<16x4xf32> -> vector<16x4xf32>
    %13 = arith.addf %3, %12 : vector<16x4xf32>
    %14 = vector.extract_strided_slice %5 {offsets = [1, 0], sizes = [16, 4], strides = [1, 1]} : vector<18x4xbf16> to vector<16x4xbf16>
    %15 = vector.extract_strided_slice %8 {offsets = [1, 0, 0], sizes = [1, 4, 4], strides = [1, 1, 1]} : vector<3x4x4xbf16> to vector<1x4x4xbf16>
    %16 = vector.shape_cast %15 : vector<1x4x4xbf16> to vector<4x4xbf16>
    %cst_9 = arith.constant dense<0.000000e+00> : vector<16x4xf32>
    %17 = tpu.matmul %14, %16, %cst_9 {dimension_numbers = #tpu.dot_dimension_numbers<[1], [0], [0], [1], [0, 0, 1, 1], [], []>} : vector<16x4xbf16>, vector<4x4xbf16>, vector<16x4xf32> -> vector<16x4xf32>
    %18 = arith.addf %13, %17 : vector<16x4xf32>
    %19 = vector.extract_strided_slice %5 {offsets = [2, 0], sizes = [16, 4], strides = [1, 1]} : vector<18x4xbf16> to vector<16x4xbf16>
    %20 = vector.extract_strided_slice %8 {offsets = [2, 0, 0], sizes = [1, 4, 4], strides = [1, 1, 1]} : vector<3x4x4xbf16> to vector<1x4x4xbf16>
    %21 = vector.shape_cast %20 : vector<1x4x4xbf16> to vector<4x4xbf16>
    %cst_10 = arith.constant dense<0.000000e+00> : vector<16x4xf32>
    %22 = tpu.matmul %19, %21, %cst_10 {dimension_numbers = #tpu.dot_dimension_numbers<[1], [0], [0], [1], [0, 0, 1, 1], [], []>} : vector<16x4xbf16>, vector<4x4xbf16>, vector<16x4xf32> -> vector<16x4xf32>
    %23 = arith.addf %18, %22 : vector<16x4xf32>
    %c0_11 = arith.constant 0 : index
    %c0_12 = arith.constant 0 : index
    %c0_13 = arith.constant 0 : index
    %c0_14 = arith.constant 0 : index
    %24 = vector.load %arg4[%c0_11, %c0_12, %c0_13, %c0_14] : memref<1x1x18x4xbf16, #tpu.memory_space<vmem>>, vector<1x1x18x4xbf16>
    %25 = vector.shape_cast %24 : vector<1x1x18x4xbf16> to vector<18x4xbf16>
    %26 = arith.index_cast %arg2 : i32 to index
    %c0_15 = arith.constant 0 : index
    %c0_16 = arith.constant 0 : index
    %c0_17 = arith.constant 0 : index
    %27 = vector.load %arg6[%26, %c0_15, %c0_16, %c0_17] : memref<3x3x4x4xbf16, #tpu.memory_space<vmem>>, vector<1x3x4x4xbf16>
    %28 = vector.shape_cast %27 : vector<1x3x4x4xbf16> to vector<3x4x4xbf16>
    %29 = vector.extract_strided_slice %25 {offsets = [0, 0], sizes = [16, 4], strides = [1, 1]} : vector<18x4xbf16> to vector<16x4xbf16>
    %30 = vector.extract_strided_slice %28 {offsets = [0, 0, 0], sizes = [1, 4, 4], strides = [1, 1, 1]} : vector<3x4x4xbf16> to vector<1x4x4xbf16>
    %31 = vector.shape_cast %30 : vector<1x4x4xbf16> to vector<4x4xbf16>
    %cst_18 = arith.constant dense<0.000000e+00> : vector<16x4xf32>
    %32 = tpu.matmul %29, %31, %cst_18 {dimension_numbers = #tpu.dot_dimension_numbers<[1], [0], [0], [1], [0, 0, 1, 1], [], []>} : vector<16x4xbf16>, vector<4x4xbf16>, vector<16x4xf32> -> vector<16x4xf32>
    %33 = arith.addf %23, %32 : vector<16x4xf32>
    %34 = vector.extract_strided_slice %25 {offsets = [1, 0], sizes = [16, 4], strides = [1, 1]} : vector<18x4xbf16> to vector<16x4xbf16>
    %35 = vector.extract_strided_slice %28 {offsets = [1, 0, 0], sizes = [1, 4, 4], strides = [1, 1, 1]} : vector<3x4x4xbf16> to vector<1x4x4xbf16>
    %36 = vector.shape_cast %35 : vector<1x4x4xbf16> to vector<4x4xbf16>
    %cst_19 = arith.constant dense<0.000000e+00> : vector<16x4xf32>
    %37 = tpu.matmul %34, %36, %cst_19 {dimension_numbers = #tpu.dot_dimension_numbers<[1], [0], [0], [1], [0, 0, 1, 1], [], []>} : vector<16x4xbf16>, vector<4x4xbf16>, vector<16x4xf32> -> vector<16x4xf32>
    %38 = arith.addf %33, %37 : vector<16x4xf32>
    %39 = vector.extract_strided_slice %25 {offsets = [2, 0], sizes = [16, 4], strides = [1, 1]} : vector<18x4xbf16> to vector<16x4xbf16>
    %40 = vector.extract_strided_slice %28 {offsets = [2, 0, 0], sizes = [1, 4, 4], strides = [1, 1, 1]} : vector<3x4x4xbf16> to vector<1x4x4xbf16>
    %41 = vector.shape_cast %40 : vector<1x4x4xbf16> to vector<4x4xbf16>
    %cst_20 = arith.constant dense<0.000000e+00> : vector<16x4xf32>
    %42 = tpu.matmul %39, %41, %cst_20 {dimension_numbers = #tpu.dot_dimension_numbers<[1], [0], [0], [1], [0, 0, 1, 1], [], []>} : vector<16x4xbf16>, vector<4x4xbf16>, vector<16x4xf32> -> vector<16x4xf32>
    %43 = arith.addf %38, %42 : vector<16x4xf32>
    %c0_21 = arith.constant 0 : index
    %c0_22 = arith.constant 0 : index
    %44 = vector.load %arg10[%c0_21, %c0_22] : memref<16x4xf32, #tpu.memory_space<vmem>>, vector<16x4xf32>
    tpu.vector_store %arg10[%c0_21, %c0_22], %43 {strides = array<i32>} : memref<16x4xf32, #tpu.memory_space<vmem>>, vector<16x4xf32>,
    %c2_i32 = arith.constant 2 : i32
    %45 = arith.cmpi eq, %arg2, %c2_i32 : i32
    %46 = arith.extui %45 : i1 to i32
    %c0_i32_23 = arith.constant 0 : i32
    %47 = arith.cmpi ne, %46, %c0_i32_23 : i32
    scf.if %47 {
      %c0_24 = arith.constant 0 : index
      %c0_25 = arith.constant 0 : index
      %48 = vector.load %arg10[%c0_24, %c0_25] : memref<16x4xf32, #tpu.memory_space<vmem>>, vector<16x4xf32>
      %c0_26 = arith.constant 0 : index
      %c0_27 = arith.constant 0 : index
      %49 = vector.load %arg7[%c0_26, %c0_27] : memref<1x4xf32, #tpu.memory_space<vmem>>, vector<1x4xf32>
      %50 = vector.broadcast %49 : vector<1x4xf32> to vector<16x4xf32>
      %51 = arith.addf %48, %50 : vector<16x4xf32>
      %c0_28 = arith.constant 0 : index
      %c0_29 = arith.constant 0 : index
      %c0_30 = arith.constant 0 : index
      %c0_31 = arith.constant 0 : index
      %52 = vector.load %arg8[%c0_28, %c0_29, %c0_30, %c0_31] : memref<1x1x16x4xf32, #tpu.memory_space<vmem>>, vector<1x1x16x4xf32>
      %53 = vector.shape_cast %52 : vector<1x1x16x4xf32> to vector<16x4xf32>
      %54 = vector.shape_cast %51 : vector<16x4xf32> to vector<1x1x16x4xf32>
      tpu.vector_store %arg8[%c0_28, %c0_29, %c0_30, %c0_31], %54 {strides = array<i32>} : memref<1x1x16x4xf32, #tpu.memory_space<vmem>>, vector<1x1x16x4xf32>,
      %cst_32 = arith.constant dense<0.000000e+00> : vector<4xf32>
      %55 = vector.multi_reduction <add>, %51, %cst_32 [0] : vector<16x4xf32> to vector<4xf32>
      %56 = vector.shape_cast %55 : vector<4xf32> to vector<1x4xf32>
      %c0_33 = arith.constant 0 : index
      %c0_34 = arith.constant 0 : index
      %c0_35 = arith.constant 0 : index
      %c0_36 = arith.constant 0 : index
      %57 = vector.load %arg9[%c0_33, %c0_34, %c0_35, %c0_36] : memref<1x1x2x4xf32, #tpu.memory_space<vmem>>, vector<1x1x1x4xf32>
      %58 = vector.shape_cast %57 : vector<1x1x1x4xf32> to vector<1x4xf32>
      %59 = vector.shape_cast %56 : vector<1x4xf32> to vector<1x1x1x4xf32>
      tpu.vector_store %arg9[%c0_33, %c0_34, %c0_35, %c0_36], %59 {strides = array<i32>} : memref<1x1x2x4xf32, #tpu.memory_space<vmem>>, vector<1x1x1x4xf32>,
      %60 = arith.mulf %51, %51 : vector<16x4xf32>
      %cst_37 = arith.constant dense<0.000000e+00> : vector<4xf32>
      %61 = vector.multi_reduction <add>, %60, %cst_37 [0] : vector<16x4xf32> to vector<4xf32>
      %62 = vector.shape_cast %61 : vector<4xf32> to vector<1x4xf32>
      %c0_38 = arith.constant 0 : index
      %c0_39 = arith.constant 0 : index
      %c1 = arith.constant 1 : index
      %c0_40 = arith.constant 0 : index
      %63 = vector.load %arg9[%c0_38, %c0_39, %c1, %c0_40] : memref<1x1x2x4xf32, #tpu.memory_space<vmem>>, vector<1x1x1x4xf32>
      %64 = vector.shape_cast %63 : vector<1x1x1x4xf32> to vector<1x4xf32>
      %65 = vector.shape_cast %62 : vector<1x4xf32> to vector<1x1x1x4xf32>
      tpu.vector_store %arg9[%c0_38, %c0_39, %c1, %c0_40], %65 {strides = array<i32>} : memref<1x1x2x4xf32, #tpu.memory_space<vmem>>, vector<1x1x1x4xf32>,
    } else {
    }
    return
  }
  func.func @transform_0(%arg0: i32, %arg1: i32, %arg2: i32) -> (i32, i32, i32, i32) {
    %0 = arith.addi %arg1, %arg2 : i32
    %c0_i32 = arith.constant 0 : i32
    %c0_i32_0 = arith.constant 0 : i32
    %c0_i32_1 = arith.constant 0 : i32
    return %arg0, %0, %c0_i32, %c0_i32_0 : i32, i32, i32, i32
  }
  func.func @transform_1(%arg0: i32, %arg1: i32, %arg2: i32) -> (i32, i32, i32, i32) {
    %0 = arith.addi %arg1, %arg2 : i32
    %c0_i32 = arith.constant 0 : i32
    %c0_i32_0 = arith.constant 0 : i32
    %c0_i32_1 = arith.constant 0 : i32
    return %arg0, %0, %c0_i32, %c0_i32_0 : i32, i32, i32, i32
  }
  func.func @transform_2(%arg0: i32, %arg1: i32, %arg2: i32) -> (i32, i32, i32, i32) {
    %c0_i32 = arith.constant 0 : i32
    %c0_i32_0 = arith.constant 0 : i32
    %c0_i32_1 = arith.constant 0 : i32
    %c0_i32_2 = arith.constant 0 : i32
    %c0_i32_3 = arith.constant 0 : i32
    return %c0_i32, %c0_i32_0, %c0_i32_1, %c0_i32_2 : i32, i32, i32, i32
  }
  func.func @transform_3(%arg0: i32, %arg1: i32, %arg2: i32) -> (i32, i32, i32, i32) {
    %c0_i32 = arith.constant 0 : i32
    %c0_i32_0 = arith.constant 0 : i32
    %c0_i32_1 = arith.constant 0 : i32
    %c0_i32_2 = arith.constant 0 : i32
    %c0_i32_3 = arith.constant 0 : i32
    return %c0_i32, %c0_i32_0, %c0_i32_1, %c0_i32_2 : i32, i32, i32, i32
  }
  func.func @transform_4(%arg0: i32, %arg1: i32, %arg2: i32) -> (i32, i32) {
    %c0_i32 = arith.constant 0 : i32
    %c0_i32_0 = arith.constant 0 : i32
    %c0_i32_1 = arith.constant 0 : i32
    return %c0_i32, %c0_i32_0 : i32, i32
  }
  func.func @transform_5(%arg0: i32, %arg1: i32, %arg2: i32) -> (i32, i32, i32, i32) {
    %c0_i32 = arith.constant 0 : i32
    %c0_i32_0 = arith.constant 0 : i32
    %c0_i32_1 = arith.constant 0 : i32
    return %arg0, %arg1, %c0_i32, %c0_i32_0 : i32, i32, i32, i32
  }
  func.func @transform_6(%arg0: i32, %arg1: i32, %arg2: i32) -> (i32, i32, i32, i32) {
    %c0_i32 = arith.constant 0 : i32
    %c0_i32_0 = arith.constant 0 : i32
    %c0_i32_1 = arith.constant 0 : i32
    return %arg0, %arg1, %c0_i32, %c0_i32_0 : i32, i32, i32, i32
  }
}

module attributes {stable_mosaic.version = 11 : i64} {
  func.func @kernel(%arg0: i32, %arg1: i32, %arg2: memref<1x8x16x4xf32, #tpu.memory_space<vmem>>, %arg3: memref<1x1x4xf32, #tpu.memory_space<vmem>>, %arg4: memref<1x1x4xf32, #tpu.memory_space<vmem>>, %arg5: memref<1x8x16x4xbf16, #tpu.memory_space<vmem>>) attributes {dimension_semantics = [#tpu.dimension_semantics<parallel>, #tpu.dimension_semantics<parallel>], iteration_bounds = array<i64: 2, 2>, scalar_prefetch = 0 : i64, scratch_operands = 0 : i64, tpu.core_type = #tpu.core_type<tc>, window_params = [{transform_indices = @transform_0, window_bounds = array<i64: 1, 8, 16, 4>}, {pipeline_mode = #tpu.pipeline_mode<synchronous>, transform_indices = @transform_1, window_bounds = array<i64: 1, 1, 4>}, {pipeline_mode = #tpu.pipeline_mode<synchronous>, transform_indices = @transform_2, window_bounds = array<i64: 1, 1, 4>}, {transform_indices = @transform_3, window_bounds = array<i64: 1, 8, 16, 4>}]} {
    %c0 = arith.constant 0 : index
    %c0_0 = arith.constant 0 : index
    %c0_1 = arith.constant 0 : index
    %c0_2 = arith.constant 0 : index
    %0 = vector.load %arg2[%c0, %c0_0, %c0_1, %c0_2] : memref<1x8x16x4xf32, #tpu.memory_space<vmem>>, vector<1x8x16x4xf32>
    %1 = vector.shape_cast %0 : vector<1x8x16x4xf32> to vector<8x16x4xf32>
    %c0_3 = arith.constant 0 : index
    %c0_4 = arith.constant 0 : index
    %c0_5 = arith.constant 0 : index
    %2 = vector.load %arg3[%c0_3, %c0_4, %c0_5] : memref<1x1x4xf32, #tpu.memory_space<vmem>>, vector<1x1x4xf32>
    %3 = vector.broadcast %2 : vector<1x1x4xf32> to vector<8x16x4xf32>
    %4 = arith.mulf %1, %3 : vector<8x16x4xf32>
    %c0_6 = arith.constant 0 : index
    %c0_7 = arith.constant 0 : index
    %c0_8 = arith.constant 0 : index
    %5 = vector.load %arg4[%c0_6, %c0_7, %c0_8] : memref<1x1x4xf32, #tpu.memory_space<vmem>>, vector<1x1x4xf32>
    %6 = vector.broadcast %5 : vector<1x1x4xf32> to vector<8x16x4xf32>
    %7 = arith.addf %4, %6 : vector<8x16x4xf32>
    %cst = arith.constant 0.000000e+00 : f32
    %8 = vector.broadcast %cst : f32 to vector<8x16x4xf32>
    %9 = arith.maximumf %7, %8 : vector<8x16x4xf32>
    %10 = arith.truncf %9 : vector<8x16x4xf32> to vector<8x16x4xbf16>
    %c0_9 = arith.constant 0 : index
    %c0_10 = arith.constant 0 : index
    %c0_11 = arith.constant 0 : index
    %c0_12 = arith.constant 0 : index
    %11 = vector.load %arg5[%c0_9, %c0_10, %c0_11, %c0_12] : memref<1x8x16x4xbf16, #tpu.memory_space<vmem>>, vector<1x8x16x4xbf16>
    %12 = vector.shape_cast %11 : vector<1x8x16x4xbf16> to vector<8x16x4xbf16>
    %13 = vector.shape_cast %10 : vector<8x16x4xbf16> to vector<1x8x16x4xbf16>
    tpu.vector_store %arg5[%c0_9, %c0_10, %c0_11, %c0_12], %13 {strides = array<i32>} : memref<1x8x16x4xbf16, #tpu.memory_space<vmem>>, vector<1x8x16x4xbf16>,
    return
  }
  func.func @transform_0(%arg0: i32, %arg1: i32) -> (i32, i32, i32, i32) {
    %c0_i32 = arith.constant 0 : i32
    %c0_i32_0 = arith.constant 0 : i32
    %c0_i32_1 = arith.constant 0 : i32
    return %arg0, %arg1, %c0_i32, %c0_i32_0 : i32, i32, i32, i32
  }
  func.func @transform_1(%arg0: i32, %arg1: i32) -> (i32, i32, i32) {
    %c0_i32 = arith.constant 0 : i32
    %c0_i32_0 = arith.constant 0 : i32
    %c0_i32_1 = arith.constant 0 : i32
    %c0_i32_2 = arith.constant 0 : i32
    return %c0_i32, %c0_i32_0, %c0_i32_1 : i32, i32, i32
  }
  func.func @transform_2(%arg0: i32, %arg1: i32) -> (i32, i32, i32) {
    %c0_i32 = arith.constant 0 : i32
    %c0_i32_0 = arith.constant 0 : i32
    %c0_i32_1 = arith.constant 0 : i32
    %c0_i32_2 = arith.constant 0 : i32
    return %c0_i32, %c0_i32_0, %c0_i32_1 : i32, i32, i32
  }
  func.func @transform_3(%arg0: i32, %arg1: i32) -> (i32, i32, i32, i32) {
    %c0_i32 = arith.constant 0 : i32
    %c0_i32_0 = arith.constant 0 : i32
    %c0_i32_1 = arith.constant 0 : i32
    return %arg0, %arg1, %c0_i32, %c0_i32_0 : i32, i32, i32, i32
  }
}

module attributes {stable_mosaic.version = 11 : i64} {
  func.func @kernel(%arg0: i32, %arg1: i32, %arg2: i32, %arg3: memref<1x1x18x4xbf16, #tpu.memory_space<vmem>>, %arg4: memref<3x3x4x4xbf16, #tpu.memory_space<vmem>>, %arg5: memref<1x4xf32, #tpu.memory_space<vmem>>, %arg6: memref<1x1x16x4xf32, #tpu.memory_space<vmem>>, %arg7: memref<1x1x2x4xf32, #tpu.memory_space<vmem>>, %arg8: memref<16x4xf32, #tpu.memory_space<vmem>>) attributes {dimension_semantics = [#tpu.dimension_semantics<parallel>, #tpu.dimension_semantics<parallel>, #tpu.dimension_semantics<arbitrary>], iteration_bounds = array<i64: 2, 16, 3>, scalar_prefetch = 0 : i64, scratch_operands = 1 : i64, tpu.core_type = #tpu.core_type<tc>, window_params = [{transform_indices = @transform_0, window_bounds = array<i64: 1, 1, 18, 4>}, {pipeline_mode = #tpu.pipeline_mode<synchronous>, transform_indices = @transform_1, window_bounds = array<i64: 3, 3, 4, 4>}, {pipeline_mode = #tpu.pipeline_mode<synchronous>, transform_indices = @transform_2, window_bounds = array<i64: 1, 4>}, {transform_indices = @transform_3, window_bounds = array<i64: 1, 1, 16, 4>}, {transform_indices = @transform_4, window_bounds = array<i64: 1, 1, 2, 4>}]} {
    %c0_i32 = arith.constant 0 : i32
    %0 = arith.cmpi eq, %arg2, %c0_i32 : i32
    %1 = arith.extui %0 : i1 to i32
    %c0_i32_0 = arith.constant 0 : i32
    %2 = arith.cmpi ne, %1, %c0_i32_0 : i32
    scf.if %2 {
      %cst_14 = arith.constant 0.000000e+00 : f32
      %28 = vector.broadcast %cst_14 : f32 to vector<16x4xf32>
      %c0_15 = arith.constant 0 : index
      %c0_16 = arith.constant 0 : index
      %29 = vector.load %arg8[%c0_15, %c0_16] : memref<16x4xf32, #tpu.memory_space<vmem>>, vector<16x4xf32>
      tpu.vector_store %arg8[%c0_15, %c0_16], %28 {strides = array<i32>} : memref<16x4xf32, #tpu.memory_space<vmem>>, vector<16x4xf32>,
    } else {
    }
    %c0 = arith.constant 0 : index
    %c0_1 = arith.constant 0 : index
    %3 = vector.load %arg8[%c0, %c0_1] : memref<16x4xf32, #tpu.memory_space<vmem>>, vector<16x4xf32>
    %c0_2 = arith.constant 0 : index
    %c0_3 = arith.constant 0 : index
    %c0_4 = arith.constant 0 : index
    %c0_5 = arith.constant 0 : index
    %4 = vector.load %arg3[%c0_2, %c0_3, %c0_4, %c0_5] : memref<1x1x18x4xbf16, #tpu.memory_space<vmem>>, vector<1x1x18x4xbf16>
    %5 = vector.shape_cast %4 : vector<1x1x18x4xbf16> to vector<18x4xbf16>
    %6 = arith.index_cast %arg2 : i32 to index
    %c0_6 = arith.constant 0 : index
    %c0_7 = arith.constant 0 : index
    %c0_8 = arith.constant 0 : index
    %7 = vector.load %arg4[%6, %c0_6, %c0_7, %c0_8] : memref<3x3x4x4xbf16, #tpu.memory_space<vmem>>, vector<1x3x4x4xbf16>
    %8 = vector.shape_cast %7 : vector<1x3x4x4xbf16> to vector<3x4x4xbf16>
    %9 = vector.extract_strided_slice %5 {offsets = [0, 0], sizes = [16, 4], strides = [1, 1]} : vector<18x4xbf16> to vector<16x4xbf16>
    %10 = vector.extract_strided_slice %8 {offsets = [0, 0, 0], sizes = [1, 4, 4], strides = [1, 1, 1]} : vector<3x4x4xbf16> to vector<1x4x4xbf16>
    %11 = vector.shape_cast %10 : vector<1x4x4xbf16> to vector<4x4xbf16>
    %cst = arith.constant dense<0.000000e+00> : vector<16x4xf32>
    %12 = tpu.matmul %9, %11, %cst {dimension_numbers = #tpu.dot_dimension_numbers<[1], [0], [0], [1], [0, 0, 1, 1], [], []>} : vector<16x4xbf16>, vector<4x4xbf16>, vector<16x4xf32> -> vector<16x4xf32>
    %13 = arith.addf %3, %12 : vector<16x4xf32>
    %14 = vector.extract_strided_slice %5 {offsets = [1, 0], sizes = [16, 4], strides = [1, 1]} : vector<18x4xbf16> to vector<16x4xbf16>
    %15 = vector.extract_strided_slice %8 {offsets = [1, 0, 0], sizes = [1, 4, 4], strides = [1, 1, 1]} : vector<3x4x4xbf16> to vector<1x4x4xbf16>
    %16 = vector.shape_cast %15 : vector<1x4x4xbf16> to vector<4x4xbf16>
    %cst_9 = arith.constant dense<0.000000e+00> : vector<16x4xf32>
    %17 = tpu.matmul %14, %16, %cst_9 {dimension_numbers = #tpu.dot_dimension_numbers<[1], [0], [0], [1], [0, 0, 1, 1], [], []>} : vector<16x4xbf16>, vector<4x4xbf16>, vector<16x4xf32> -> vector<16x4xf32>
    %18 = arith.addf %13, %17 : vector<16x4xf32>
    %19 = vector.extract_strided_slice %5 {offsets = [2, 0], sizes = [16, 4], strides = [1, 1]} : vector<18x4xbf16> to vector<16x4xbf16>
    %20 = vector.extract_strided_slice %8 {offsets = [2, 0, 0], sizes = [1, 4, 4], strides = [1, 1, 1]} : vector<3x4x4xbf16> to vector<1x4x4xbf16>
    %21 = vector.shape_cast %20 : vector<1x4x4xbf16> to vector<4x4xbf16>
    %cst_10 = arith.constant dense<0.000000e+00> : vector<16x4xf32>
    %22 = tpu.matmul %19, %21, %cst_10 {dimension_numbers = #tpu.dot_dimension_numbers<[1], [0], [0], [1], [0, 0, 1, 1], [], []>} : vector<16x4xbf16>, vector<4x4xbf16>, vector<16x4xf32> -> vector<16x4xf32>
    %23 = arith.addf %18, %22 : vector<16x4xf32>
    %c0_11 = arith.constant 0 : index
    %c0_12 = arith.constant 0 : index
    %24 = vector.load %arg8[%c0_11, %c0_12] : memref<16x4xf32, #tpu.memory_space<vmem>>, vector<16x4xf32>
    tpu.vector_store %arg8[%c0_11, %c0_12], %23 {strides = array<i32>} : memref<16x4xf32, #tpu.memory_space<vmem>>, vector<16x4xf32>,
    %c2_i32 = arith.constant 2 : i32
    %25 = arith.cmpi eq, %arg2, %c2_i32 : i32
    %26 = arith.extui %25 : i1 to i32
    %c0_i32_13 = arith.constant 0 : i32
    %27 = arith.cmpi ne, %26, %c0_i32_13 : i32
    scf.if %27 {
      %c0_14 = arith.constant 0 : index
      %c0_15 = arith.constant 0 : index
      %28 = vector.load %arg8[%c0_14, %c0_15] : memref<16x4xf32, #tpu.memory_space<vmem>>, vector<16x4xf32>
      %c0_16 = arith.constant 0 : index
      %c0_17 = arith.constant 0 : index
      %29 = vector.load %arg5[%c0_16, %c0_17] : memref<1x4xf32, #tpu.memory_space<vmem>>, vector<1x4xf32>
      %30 = vector.broadcast %29 : vector<1x4xf32> to vector<16x4xf32>
      %31 = arith.addf %28, %30 : vector<16x4xf32>
      %c0_18 = arith.constant 0 : index
      %c0_19 = arith.constant 0 : index
      %c0_20 = arith.constant 0 : index
      %c0_21 = arith.constant 0 : index
      %32 = vector.load %arg6[%c0_18, %c0_19, %c0_20, %c0_21] : memref<1x1x16x4xf32, #tpu.memory_space<vmem>>, vector<1x1x16x4xf32>
      %33 = vector.shape_cast %32 : vector<1x1x16x4xf32> to vector<16x4xf32>
      %34 = vector.shape_cast %31 : vector<16x4xf32> to vector<1x1x16x4xf32>
      tpu.vector_store %arg6[%c0_18, %c0_19, %c0_20, %c0_21], %34 {strides = array<i32>} : memref<1x1x16x4xf32, #tpu.memory_space<vmem>>, vector<1x1x16x4xf32>,
      %cst_22 = arith.constant dense<0.000000e+00> : vector<4xf32>
      %35 = vector.multi_reduction <add>, %31, %cst_22 [0] : vector<16x4xf32> to vector<4xf32>
      %36 = vector.shape_cast %35 : vector<4xf32> to vector<1x4xf32>
      %c0_23 = arith.constant 0 : index
      %c0_24 = arith.constant 0 : index
      %c0_25 = arith.constant 0 : index
      %c0_26 = arith.constant 0 : index
      %37 = vector.load %arg7[%c0_23, %c0_24, %c0_25, %c0_26] : memref<1x1x2x4xf32, #tpu.memory_space<vmem>>, vector<1x1x1x4xf32>
      %38 = vector.shape_cast %37 : vector<1x1x1x4xf32> to vector<1x4xf32>
      %39 = vector.shape_cast %36 : vector<1x4xf32> to vector<1x1x1x4xf32>
      tpu.vector_store %arg7[%c0_23, %c0_24, %c0_25, %c0_26], %39 {strides = array<i32>} : memref<1x1x2x4xf32, #tpu.memory_space<vmem>>, vector<1x1x1x4xf32>,
      %40 = arith.mulf %31, %31 : vector<16x4xf32>
      %cst_27 = arith.constant dense<0.000000e+00> : vector<4xf32>
      %41 = vector.multi_reduction <add>, %40, %cst_27 [0] : vector<16x4xf32> to vector<4xf32>
      %42 = vector.shape_cast %41 : vector<4xf32> to vector<1x4xf32>
      %c0_28 = arith.constant 0 : index
      %c0_29 = arith.constant 0 : index
      %c1 = arith.constant 1 : index
      %c0_30 = arith.constant 0 : index
      %43 = vector.load %arg7[%c0_28, %c0_29, %c1, %c0_30] : memref<1x1x2x4xf32, #tpu.memory_space<vmem>>, vector<1x1x1x4xf32>
      %44 = vector.shape_cast %43 : vector<1x1x1x4xf32> to vector<1x4xf32>
      %45 = vector.shape_cast %42 : vector<1x4xf32> to vector<1x1x1x4xf32>
      tpu.vector_store %arg7[%c0_28, %c0_29, %c1, %c0_30], %45 {strides = array<i32>} : memref<1x1x2x4xf32, #tpu.memory_space<vmem>>, vector<1x1x1x4xf32>,
    } else {
    }
    return
  }
  func.func @transform_0(%arg0: i32, %arg1: i32, %arg2: i32) -> (i32, i32, i32, i32) {
    %0 = arith.addi %arg1, %arg2 : i32
    %c0_i32 = arith.constant 0 : i32
    %c0_i32_0 = arith.constant 0 : i32
    %c0_i32_1 = arith.constant 0 : i32
    return %arg0, %0, %c0_i32, %c0_i32_0 : i32, i32, i32, i32
  }
  func.func @transform_1(%arg0: i32, %arg1: i32, %arg2: i32) -> (i32, i32, i32, i32) {
    %c0_i32 = arith.constant 0 : i32
    %c0_i32_0 = arith.constant 0 : i32
    %c0_i32_1 = arith.constant 0 : i32
    %c0_i32_2 = arith.constant 0 : i32
    %c0_i32_3 = arith.constant 0 : i32
    return %c0_i32, %c0_i32_0, %c0_i32_1, %c0_i32_2 : i32, i32, i32, i32
  }
  func.func @transform_2(%arg0: i32, %arg1: i32, %arg2: i32) -> (i32, i32) {
    %c0_i32 = arith.constant 0 : i32
    %c0_i32_0 = arith.constant 0 : i32
    %c0_i32_1 = arith.constant 0 : i32
    return %c0_i32, %c0_i32_0 : i32, i32
  }
  func.func @transform_3(%arg0: i32, %arg1: i32, %arg2: i32) -> (i32, i32, i32, i32) {
    %c0_i32 = arith.constant 0 : i32
    %c0_i32_0 = arith.constant 0 : i32
    %c0_i32_1 = arith.constant 0 : i32
    return %arg0, %arg1, %c0_i32, %c0_i32_0 : i32, i32, i32, i32
  }
  func.func @transform_4(%arg0: i32, %arg1: i32, %arg2: i32) -> (i32, i32, i32, i32) {
    %c0_i32 = arith.constant 0 : i32
    %c0_i32_0 = arith.constant 0 : i32
    %c0_i32_1 = arith.constant 0 : i32
    return %arg0, %arg1, %c0_i32, %c0_i32_0 : i32, i32, i32, i32
  }
}

module attributes {stable_mosaic.version = 11 : i64} {
  func.func @kernel(%arg0: i32, %arg1: i32, %arg2: memref<1x8x16x4xf32, #tpu.memory_space<vmem>>, %arg3: memref<1x1x4xf32, #tpu.memory_space<vmem>>, %arg4: memref<1x1x4xf32, #tpu.memory_space<vmem>>, %arg5: memref<1x8x16x4xf32, #tpu.memory_space<vmem>>) attributes {dimension_semantics = [#tpu.dimension_semantics<parallel>, #tpu.dimension_semantics<parallel>], iteration_bounds = array<i64: 2, 2>, scalar_prefetch = 0 : i64, scratch_operands = 0 : i64, tpu.core_type = #tpu.core_type<tc>, window_params = [{transform_indices = @transform_0, window_bounds = array<i64: 1, 8, 16, 4>}, {pipeline_mode = #tpu.pipeline_mode<synchronous>, transform_indices = @transform_1, window_bounds = array<i64: 1, 1, 4>}, {pipeline_mode = #tpu.pipeline_mode<synchronous>, transform_indices = @transform_2, window_bounds = array<i64: 1, 1, 4>}, {transform_indices = @transform_3, window_bounds = array<i64: 1, 8, 16, 4>}]} {
    %c0 = arith.constant 0 : index
    %c0_0 = arith.constant 0 : index
    %c0_1 = arith.constant 0 : index
    %c0_2 = arith.constant 0 : index
    %0 = vector.load %arg2[%c0, %c0_0, %c0_1, %c0_2] : memref<1x8x16x4xf32, #tpu.memory_space<vmem>>, vector<1x8x16x4xf32>
    %1 = vector.shape_cast %0 : vector<1x8x16x4xf32> to vector<8x16x4xf32>
    %c0_3 = arith.constant 0 : index
    %c0_4 = arith.constant 0 : index
    %c0_5 = arith.constant 0 : index
    %2 = vector.load %arg3[%c0_3, %c0_4, %c0_5] : memref<1x1x4xf32, #tpu.memory_space<vmem>>, vector<1x1x4xf32>
    %3 = vector.broadcast %2 : vector<1x1x4xf32> to vector<8x16x4xf32>
    %4 = arith.mulf %1, %3 : vector<8x16x4xf32>
    %c0_6 = arith.constant 0 : index
    %c0_7 = arith.constant 0 : index
    %c0_8 = arith.constant 0 : index
    %5 = vector.load %arg4[%c0_6, %c0_7, %c0_8] : memref<1x1x4xf32, #tpu.memory_space<vmem>>, vector<1x1x4xf32>
    %6 = vector.broadcast %5 : vector<1x1x4xf32> to vector<8x16x4xf32>
    %7 = arith.addf %4, %6 : vector<8x16x4xf32>
    %cst = arith.constant 0.000000e+00 : f32
    %8 = vector.broadcast %cst : f32 to vector<8x16x4xf32>
    %9 = arith.maximumf %7, %8 : vector<8x16x4xf32>
    %c0_9 = arith.constant 0 : index
    %c0_10 = arith.constant 0 : index
    %c0_11 = arith.constant 0 : index
    %c0_12 = arith.constant 0 : index
    %10 = vector.load %arg5[%c0_9, %c0_10, %c0_11, %c0_12] : memref<1x8x16x4xf32, #tpu.memory_space<vmem>>, vector<1x8x16x4xf32>
    %11 = vector.shape_cast %10 : vector<1x8x16x4xf32> to vector<8x16x4xf32>
    %12 = vector.shape_cast %9 : vector<8x16x4xf32> to vector<1x8x16x4xf32>
    tpu.vector_store %arg5[%c0_9, %c0_10, %c0_11, %c0_12], %12 {strides = array<i32>} : memref<1x8x16x4xf32, #tpu.memory_space<vmem>>, vector<1x8x16x4xf32>,
    return
  }
  func.func @transform_0(%arg0: i32, %arg1: i32) -> (i32, i32, i32, i32) {
    %c0_i32 = arith.constant 0 : i32
    %c0_i32_0 = arith.constant 0 : i32
    %c0_i32_1 = arith.constant 0 : i32
    return %arg0, %arg1, %c0_i32, %c0_i32_0 : i32, i32, i32, i32
  }
  func.func @transform_1(%arg0: i32, %arg1: i32) -> (i32, i32, i32) {
    %c0_i32 = arith.constant 0 : i32
    %c0_i32_0 = arith.constant 0 : i32
    %c0_i32_1 = arith.constant 0 : i32
    %c0_i32_2 = arith.constant 0 : i32
    return %c0_i32, %c0_i32_0, %c0_i32_1 : i32, i32, i32
  }
  func.func @transform_2(%arg0: i32, %arg1: i32) -> (i32, i32, i32) {
    %c0_i32 = arith.constant 0 : i32
    %c0_i32_0 = arith.constant 0 : i32
    %c0_i32_1 = arith.constant 0 : i32
    %c0_i32_2 = arith.constant 0 : i32
    return %c0_i32, %c0_i32_0, %c0_i32_1 : i32, i32, i32
  }
  func.func @transform_3(%arg0: i32, %arg1: i32) -> (i32, i32, i32, i32) {
    %c0_i32 = arith.constant 0 : i32
    %c0_i32_0 = arith.constant 0 : i32
    %c0_i32_1 = arith.constant 0 : i32
    return %arg0, %arg1, %c0_i32, %c0_i32_0 : i32, i32, i32, i32
  }
}

</mosaic_0001>

<llo_original>
// kernel: tile.8
$region0: #{tile.8}
  #allocation0 [shape = 's32[1]{0}', space=sflag, size = 0x4, scoped, tag = 'scoped memory for tile.8']
  %s0 = inlined_call_operand.vmem [shape: f32[4], index: 0, kind: input, shape index: {}]
  %s1 = inlined_call_operand.vmem [shape: f32[4,4], index: 1, kind: output, shape index: {}]
  // Predicated region
  $region2: #{tile.8} parent=0 // pred_check
    _
  $region3: #{tile.8} parent=0 // pred_check_branch
    %3 = sbr.rel (0) target = $region5
  $region4: #{tile.8} parent=0 // pred_region
    _
  $region5: #{tile.8} parent=0 // pred_fallthru
    _
  %v4 = vld [vmem:[%s0] ss:$0 sm:$0xff]
  %5 = vst [vmem:[%s1] sm:$0xf] %v4

// kernel: tile.9
$region0: #{tile.9}
  %s0 = inlined_call_operand.vmem [shape: f32[4,4], index: 0, kind: input, shape index: {}]
  %s1 = inlined_call_operand.vmem [shape: f32[1,16], index: 1, kind: output, shape index: {}]
  $region1: #{tile.9} parent=0
    #allocation0 [shape = 'u8[4096]{0}', space=vmem, size = 0x1000, scoped, tag = 'scoped mem for output reshape']
    #allocation1 [shape = 'u8[4096]{0}', space=vmem, size = 0x1000, scoped, tag = 'scoped mem for input reshape']
    %s3 = sshll.u32 1, 4
    %s4 = ssub.s32 %s3, 1
    %v5 = vld [vmem:[%s0] sm:%s4]
    %6 = vst [vmem:[#allocation1] sm:%s4] %v5
    %v7 = vld [vmem:[#allocation1] sm:$0x1]
    %vm8 = vcmask 31744
    %9 = vst.msk [vmem:[#allocation0] sm:$0x1] %vm8, %v7
    %s10 = scalar_lea.vmem [#allocation1], 3
    %v11 = vld [vmem:[%s10] sm:$0x1]
    %12 = vrot.lane.b32.xlu0 %v11, 12
    %v13 = vpop.permute.xlu0 %12
    %vm14 = vcmask 130144
    %15 = vst.msk [vmem:[#allocation0] sm:$0x1] %vm14, %v13
    %s16 = scalar_lea.vmem [#allocation1], 2
    %v17 = vld [vmem:[%s16] sm:$0x1]
    %18 = vrot.lane.b32.xlu0 %v17, 8
    %v19 = vpop.permute.xlu0 %18
    %vm20 = vcmask 97344
    %21 = vst.msk [vmem:[#allocation0] sm:$0x1] %vm20, %v19
    %s22 = scalar_lea.vmem [#allocation1], 1
    %v23 = vld [vmem:[%s22] sm:$0x1]
    %24 = vrot.lane.b32.xlu0 %v23, 4
    %v25 = vpop.permute.xlu0 %24
    %vm26 = vcmask 64544
    %27 = vst.msk [vmem:[#allocation0] sm:$0x1] %vm26, %v25
    %s29 = sshll.u32 1, 1
    %s30 = ssub.s32 %s29, 1
    %v32 = vld [vmem:[#allocation0] sm:%s30]
    %s33 = sshll.u32 1, 1
    %s34 = ssub.s32 %s33, 1
    %35 = vst [vmem:[%s1] sm:%s34] %v32

// kernel: unet_up_forward.5
$region0: #{unet_up_forward.5}
  #allocation0 [shape = 'u32[]', space=smem, size = 0x4, offset = 0x4, fixed_abs, tag = 'smem constant byte address 0x4 - core index']
  #allocation1 [shape = 'u32[144,128]{1,0:T(1,128)}', space=vmem, size = 0x12000, scoped, tag = 'internal scratch']
  %s0 = inlined_call_operand.vmem [shape: bf16[2,8,8,8], index: 0, kind: input, shape index: {}]
  %s1 = inlined_call_operand.vmem [shape: bf16[8,16], index: 1, kind: input, shape index: {}]
  %s2 = inlined_call_operand.vmem [shape: f32[1,16], index: 2, kind: input, shape index: {}]
  %s3 = inlined_call_operand.vmem [shape: bf16[2,16,8,8], index: 3, kind: output, shape index: {}]
  %s4 = sld [smem:[#allocation0]]
  $region45: #{unet_up_forward.5} parent=0
    _
  %s6 = ssub.s32 1, %s4
  %s7 = scalar_select 0, %s6, %s4
  loop: start=0, step=1, limit=18
  $region2: #{unet_up_forward.5} parent=0 // loop_pre_header
    _
  $region3: #{unet_up_forward.5} parent=0 // loop_header
    %s9 = sphi 0, %s13
    %p10 = scmp.ge.s32.totalorder %s9, 18
    %s16 = sphi 0, %s28
    %s17 = sphi 0, %s24
    %s18 = sphi 0, %s16
    %s19 = sphi 0, %s17
    %s20 = sphi 0, %s18
    %s21 = sphi 0, %s19
    %s33 = sphi 0, %s35
    %s36 = sphi 0, %s33
    %s37 = sphi 0, %s36
    %s53 = sphi 0, %s37
    %s57 = sphi 0, %s57
    %s59 = sphi 0, %s57
    %s60 = sphi 0, %s59
    %s74 = sphi 0, %s60
    %s78 = sphi 0, %s78
    %s80 = sphi 0, %s78
    %s81 = sphi 0, %s80
    %s95 = sphi 0, %s81
    %s103 = sphi 0, %s105
    %s106 = sphi 0, %s103
    %s107 = sphi 0, %s106
    %s123 = sphi 0, %s107
  $region4: #{unet_up_forward.5} parent=0 // loop_header_branch
    %12 = sbr.rel (%p10) target = $region8
  $region5: #{unet_up_forward.5} parent=0 // loop_body
    %s14 = ssub.s32 %s9, 1
    %s15 = ssub.s32 %s9, 2
    %s22 = sadd.s32 1, %s17
    %p23 = scmp.ge.s32.totalorder %s22, 8
    %s24 = scalar_select %p23, 0, %s22
    %s25 = sadd.s32 1, %s16
    %s26 = scalar_select %p23, %s25, %s16
    %p27 = scmp.ge.s32.totalorder %s26, 2
    %s28 = scalar_select %p27, 0, %s26
    %s29 = ssub.s32 %s16, %s28
    %s30 = ssub.s32 %s17, %s24
    %s31 = sor.u32 %s29, %s30
    %p32 = scmp.eq.s32.totalorder %s31, 0
    %s34 = sadd.s32 %s33, 1
    %s35 = scalar_select %p32, %s33, %s34
    %p38 = pneg %p32
    %p39 = scmp.eq.s32.totalorder %s9, 15
    %p40 = por %p38, %p39
    %p41 = scmp.ne.s32.totalorder %s33, %s36
    %p42 = scmp.eq.s32.totalorder %s9, 0
    %p43 = por %p41, %p42
    %p44 = scmp.ne.s32.totalorder %s33, %s36
    %p45 = scmp.eq.s32.totalorder %s14, 15
    %p46 = por %p44, %p45
    %p47 = scmp.ne.s32.totalorder %s36, %s37
    %p48 = scmp.eq.s32.totalorder %s14, 0
    %p49 = por %p47, %p48
    %p50 = scmp.ne.s32.totalorder %s36, %s37
    %p51 = scmp.eq.s32.totalorder %s15, 15
    %p52 = por %p50, %p51
    %p54 = scmp.ne.s32.totalorder %s37, %s53
    %p55 = scmp.eq.s32.totalorder %s15, 0
    %p56 = por %p54, %p55
    %s58 = sadd.s32 %s57, 1
    %p61 = scmp.eq.s32.totalorder %s9, 15
    %p62 = scmp.ne.s32.totalorder %s57, %s59
    %p63 = scmp.eq.s32.totalorder %s9, 0
    %p64 = por %p62, %p63
    %p65 = scmp.ne.s32.totalorder %s57, %s59
    %p66 = scmp.eq.s32.totalorder %s14, 15
    %p67 = por %p65, %p66
    %p68 = scmp.ne.s32.totalorder %s59, %s60
    %p69 = scmp.eq.s32.totalorder %s14, 0
    %p70 = por %p68, %p69
    %p71 = scmp.ne.s32.totalorder %s59, %s60
    %p72 = scmp.eq.s32.totalorder %s15, 15
    %p73 = por %p71, %p72
    %p75 = scmp.ne.s32.totalorder %s60, %s74
    %p76 = scmp.eq.s32.totalorder %s15, 0
    %p77 = por %p75, %p76
    %s79 = sadd.s32 %s78, 1
    %p82 = scmp.eq.s32.totalorder %s9, 15
    %p83 = scmp.ne.s32.totalorder %s78, %s80
    %p84 = scmp.eq.s32.totalorder %s9, 0
    %p85 = por %p83, %p84
    %p86 = scmp.ne.s32.totalorder %s78, %s80
    %p87 = scmp.eq.s32.totalorder %s14, 15
    %p88 = por %p86, %p87
    %p89 = scmp.ne.s32.totalorder %s80, %s81
    %p90 = scmp.eq.s32.totalorder %s14, 0
    %p91 = por %p89, %p90
    %p92 = scmp.ne.s32.totalorder %s80, %s81
    %p93 = scmp.eq.s32.totalorder %s15, 15
    %p94 = por %p92, %p93
    %p96 = scmp.ne.s32.totalorder %s81, %s95
    %p97 = scmp.eq.s32.totalorder %s15, 0
    %p98 = por %p96, %p97
    %s99 = ssub.s32 %s16, %s28
    %s100 = ssub.s32 %s17, %s24
    %s101 = sor.u32 %s99, %s100
    %p102 = scmp.eq.s32.totalorder %s101, 0
    %s104 = sadd.s32 %s103, 1
    %s105 = scalar_select %p102, %s103, %s104
    %p108 = pneg %p102
    %p109 = scmp.eq.s32.totalorder %s9, 15
    %p110 = por %p108, %p109
    %p111 = scmp.ne.s32.totalorder %s103, %s106
    %p112 = scmp.eq.s32.totalorder %s9, 0
    %p113 = por %p111, %p112
    %p114 = scmp.ne.s32.totalorder %s103, %s106
    %p115 = scmp.eq.s32.totalorder %s14, 15
    %p116 = por %p114, %p115
    %p117 = scmp.ne.s32.totalorder %s106, %s107
    %p118 = scmp.eq.s32.totalorder %s14, 0
    %p119 = por %p117, %p118
    %p120 = scmp.ne.s32.totalorder %s106, %s107
    %p121 = scmp.eq.s32.totalorder %s15, 15
    %p122 = por %p120, %p121
    %p124 = scmp.ne.s32.totalorder %s107, %s123
    %p125 = scmp.eq.s32.totalorder %s15, 0
    %p126 = por %p124, %p125
    %p127 = scmp.le.s32.totalorder 1, %s9
    %p128 = scmp.lt.s32.totalorder %s9, 17
    %p129 = pnand %p127, %p128
    %p130 = pneg %p129
    // Predicated region
    $region9: #{unet_up_forward.5} parent=5 // pred_check
      _
    $region10: #{unet_up_forward.5} parent=5 // pred_check_branch
      %132 = sbr.rel (%p129) target = $region12
    $region11: #{unet_up_forward.5} parent=5 // pred_region
      %s133 = ssub.s32 %s9, 1
      // Predicated region
      $region13: #{unet_up_forward.5} parent=11 // pred_check
        %p134 = pneg %p70
      $region14: #{unet_up_forward.5} parent=11 // pred_check_branch
        %136 = sbr.rel (%p134) target = $region16
      $region15: #{unet_up_forward.5} parent=11 // pred_region
        _
      $region16: #{unet_up_forward.5} parent=11 // pred_fallthru
        _
      // Predicated region
      $region17: #{unet_up_forward.5} parent=11 // pred_check
        %p137 = pneg %p91
      $region18: #{unet_up_forward.5} parent=11 // pred_check_branch
        %139 = sbr.rel (%p137) target = $region20
      $region19: #{unet_up_forward.5} parent=11 // pred_region
        _
      $region20: #{unet_up_forward.5} parent=11 // pred_fallthru
        _
    $region12: #{unet_up_forward.5} parent=5 // pred_fallthru
      _
    %p140 = scmp.lt.s32.totalorder %s9, 16
    // Predicated region
    $region21: #{unet_up_forward.5} parent=5 // pred_check
      %p141 = pneg %p140
    $region22: #{unet_up_forward.5} parent=5 // pred_check_branch
      %143 = sbr.rel (%p141) target = $region24
    $region23: #{unet_up_forward.5} parent=5 // pred_region
      // Predicated region
      $region25: #{unet_up_forward.5} parent=23 // pred_check
        %p144 = pneg %p43
      $region26: #{unet_up_forward.5} parent=23 // pred_check_branch
        %146 = sbr.rel (%p144) target = $region28
      $region27: #{unet_up_forward.5} parent=23 // pred_region
        %p147 = scmp.lt.s32.totalorder %s16, 1
        %s148 = scalar_select %p147, %s16, 1
        %p149 = scmp.lt.s32.totalorder %s17, 7
        %s150 = scalar_select %p149, %s17, 7
        %s151 = smul.addr %s148, 8
        %s152 = sadd.s32 %s150, %s151
        %s153 = smul.addr %s152, 4
        %s154 = scalar_lea.vmem %s0, %s153
      $region28: #{unet_up_forward.5} parent=23 // pred_fallthru
        _
    $region24: #{unet_up_forward.5} parent=5 // pred_fallthru
      _
    %p155 = scmp.le.s32.totalorder 1, %s9
    %p156 = scmp.lt.s32.totalorder %s9, 17
    %p157 = pnand %p155, %p156
    %p158 = pneg %p157
    // Predicated region
    $region29: #{unet_up_forward.5} parent=5 // pred_check
      _
    $region30: #{unet_up_forward.5} parent=5 // pred_check_branch
      %160 = sbr.rel (%p157) target = $region32
    $region31: #{unet_up_forward.5} parent=5 // pred_region
      %s161 = ssub.s32 %s9, 1
      %p162 = scmp.lt.s32.totalorder %s18, 1
      %s163 = scalar_select %p162, %s18, 1
      %p164 = scmp.lt.s32.totalorder %s19, 7
      %s165 = scalar_select %p164, %s19, 7
      %s166 = smul.addr %s163, 8
      %s167 = sadd.s32 %s165, %s166
      %s168 = smul.addr %s167, 4
      %s169 = scalar_lea.vmem %s0, %s168
      %p170 = pneg %p49
      %p171 = pneg %p46
      %p172 = pneg %p70
      %p173 = pneg %p67
      %p174 = pneg %p91
      %p175 = pneg %p88
      %p176 = pneg %p119
      %p177 = pneg %p116
      %s178 = smul.u32 2, %s19
      %p179 = scmp.lt.s32.totalorder %s18, 1
      %s180 = scalar_select %p179, %s18, 1
      %p181 = scmp.lt.s32.totalorder %s178, 15
      %s182 = scalar_select %p181, %s178, 15
      %s183 = smul.addr %s180, 16
      %s184 = sadd.s32 %s182, %s183
      %s185 = smul.addr %s184, 4
      %s186 = scalar_lea.vmem %s3, %s185
      %p187 = scmp.lt.s32.totalorder %s18, 1
      %s188 = scalar_select %p187, %s18, 1
      %p189 = scmp.lt.s32.totalorder %s19, 7
      %s190 = scalar_select %p189, %s19, 7
      %s191 = smul.addr %s188, 8
      %s192 = sadd.s32 %s190, %s191
      %s193 = smul.addr %s192, 4
      %s194 = scalar_lea.vmem %s0, %s193
      %s195 = smul.u32 2, %s19
      %p196 = scmp.lt.s32.totalorder %s18, 1
      %s197 = scalar_select %p196, %s18, 1
      %p198 = scmp.lt.s32.totalorder %s195, 15
      %s199 = scalar_select %p198, %s195, 15
      %s200 = smul.addr %s197, 16
      %s201 = sadd.s32 %s199, %s200
      %s202 = smul.addr %s201, 4
      %s203 = scalar_lea.vmem %s3, %s202
      %s204 = smul.u32 2, %s19
      %v206 = vld [vmem:[%s194] sm:$0xf]
      %v207 = vld [vmem:[%s1] sm:$0xf]
      %v208 = vld [vmem:[%s2] sm:$0x1]
      %v210 = vlaneseq
      %v211 = vshrl.u32 %v210, 7
      %v212 = vsub.s32 0, %v211
      %v213 = vrot.slane %v208, %v212
      %vm215 = vcmask 64512
      %v217 = vsel %vm215, %v206, 0
      %vm219 = vcmask 1043456
      %v221 = vsel %vm219, %v207, 0
      %223 = vmatprep.subr.bf16.mxu0 0
      %224 = vmatpush1.bf16.msra.mxu0 0
      %225 = vmatprep.subr.bf16.mxu0 0
      %226 = vmatpush1.bf16.msra.mxu0 0
      %227 = vmatprep.subr.bf16.mxu0 0
      %228 = vmatpush1.bf16.msra.mxu0 0
      %229 = vmatprep.subr.bf16.mxu0 0
      %230 = vmatpush1.bf16.msra.mxu0 0
      %231 = vmatprep.subr.bf16.mxu0 0
      %232 = vmatpush1.bf16.msra.mxu0 0
      %233 = vmatprep.subr.bf16.mxu0 0
      %234 = vmatpush1.bf16.msra.mxu0 0
      %235 = vmatprep.subr.bf16.mxu0 0
      %236 = vmatpush1.bf16.msra.mxu0 0
      %237 = vmatprep.subr.bf16.mxu0 0
      %238 = vmatpush1.bf16.msra.mxu0 %v221
      %239 = vmatprep.subr.bf16.mxu0 0
      %240 = vmatpush2.bf16.msra.mxu0 0
      %241 = vmatprep.subr.bf16.mxu0 0
      %242 = vmatpush2.bf16.msra.mxu0 0
      %243 = vmatprep.subr.bf16.mxu0 0
      %244 = vmatpush2.bf16.msra.mxu0 0
      %245 = vmatprep.subr.bf16.mxu0 0
      %246 = vmatpush2.bf16.msra.mxu0 0
      %247 = vmatprep.subr.bf16.mxu0 0
      %248 = vmatpush2.bf16.msra.mxu0 0
      %249 = vmatprep.subr.bf16.mxu0 0
      %250 = vmatpush2.bf16.msra.mxu0 0
      %251 = vmatprep.subr.bf16.mxu0 0
      %252 = vmatpush2.bf16.msra.mxu0 0
      %253 = vmatprep.subr.bf16.mxu0 0
      %254 = vmatpush2.bf16.msra.mxu0 0
      %255 = vmatprep.mubr.bf16.mxu0 0
      %256 = vmatmul.mubr.bf16.gmra.mxu0 %v217
      %v257 = vpop.f32.mrf.mxu0
      %v258 = vadd.f32 %v213, %v257
      %v259 = vpop.f32.mrf.mxu0
      %v260 = vpop.f32.mrf.mxu0
      %v261 = vpop.f32.mrf.mxu0
      %262 = vdwg.mxu0
      %v263 = vpack.c.bf16 %v258, %v258
      %vm264 = vcmask 60416
      %265 = vst.msk [vmem:[%s203] sm:$0xf] %vm264, %v263
      %v267 = vunpack.c.l.b16 %v263
      %v268 = vpack.c.b16 %v267, %v267
      %269 = vrot.lane.b32.xlu0 %v268, 120
      %v270 = vpop.permute.xlu0 %269
      %s272 = scalar_lea.vmem %s203, 4
      %273 = vst.msk [vmem:[%s272] sm:$0xf] %vm264, %v270
      %s274 = smul.u32 2, %s19
      %p275 = scmp.lt.s32.totalorder %s18, 1
      %s276 = scalar_select %p275, %s18, 1
      %p277 = scmp.lt.s32.totalorder %s274, 15
      %s278 = scalar_select %p277, %s274, 15
      %s279 = smul.addr %s276, 16
      %s280 = sadd.s32 %s278, %s279
      %s281 = smul.addr %s280, 4
      %s282 = scalar_lea.vmem %s3, %s281
      // Predicated region
      $region33: #{unet_up_forward.5} parent=31 // pred_check
        %p283 = pneg %p116
      $region34: #{unet_up_forward.5} parent=31 // pred_check_branch
        %285 = sbr.rel (%p283) target = $region36
      $region35: #{unet_up_forward.5} parent=31 // pred_region
        %s286 = smul.u32 2, %s19
      $region36: #{unet_up_forward.5} parent=31 // pred_fallthru
        _
    $region32: #{unet_up_forward.5} parent=5 // pred_fallthru
      _
    %p287 = scmp.le.s32.totalorder 2, %s9
    // Predicated region
    $region37: #{unet_up_forward.5} parent=5 // pred_check
      %p288 = pneg %p287
    $region38: #{unet_up_forward.5} parent=5 // pred_check_branch
      %290 = sbr.rel (%p288) target = $region40
    $region39: #{unet_up_forward.5} parent=5 // pred_region
      %s291 = ssub.s32 %s9, 2
      // Predicated region
      $region41: #{unet_up_forward.5} parent=39 // pred_check
        %p292 = pneg %p122
      $region42: #{unet_up_forward.5} parent=39 // pred_check_branch
        %294 = sbr.rel (%p292) target = $region44
      $region43: #{unet_up_forward.5} parent=39 // pred_region
        %s295 = smul.u32 2, %s21
        %p296 = scmp.lt.s32.totalorder %s20, 1
        %s297 = scalar_select %p296, %s20, 1
        %p298 = scmp.lt.s32.totalorder %s295, 15
        %s299 = scalar_select %p298, %s295, 15
        %s300 = smul.addr %s297, 16
        %s301 = sadd.s32 %s299, %s300
        %s302 = smul.addr %s301, 4
        %s303 = scalar_lea.vmem %s3, %s302
      $region44: #{unet_up_forward.5} parent=39 // pred_fallthru
        _
    $region40: #{unet_up_forward.5} parent=5 // pred_fallthru
      _
  $region6: #{unet_up_forward.5} parent=0 // loop_footer
    %s13 = sadd.s32 1, %s9
  $region7: #{unet_up_forward.5} parent=0 // loop_footer_branch
    %8 = sbr.rel target = $region3
  $region8: #{unet_up_forward.5} parent=0 // loop_exit
    _

// kernel: unet_up_forward.7
$region0: #{unet_up_forward.7}
  #allocation0 [shape = 'u32[]', space=smem, size = 0x4, offset = 0x4, fixed_abs, tag = 'smem constant byte address 0x4 - core index']
  #allocation1 [shape = 'u32[144,128]{1,0:T(1,128)}', space=vmem, size = 0x12000, scoped, tag = 'internal scratch']
  %s0 = inlined_call_operand.vmem [shape: f32[2,16,16,4], index: 0, kind: input, shape index: {}]
  %s1 = inlined_call_operand.vmem [shape: f32[1,1,4], index: 1, kind: input, shape index: {}]
  %s2 = inlined_call_operand.vmem [shape: f32[1,1,4], index: 2, kind: input, shape index: {}]
  %s3 = inlined_call_operand.vmem [shape: bf16[2,16,16,4], index: 3, kind: output, shape index: {}]
  %s4 = sld [smem:[#allocation0]]
  $region45: #{unet_up_forward.7} parent=0
    _
  %s6 = ssub.s32 1, %s4
  %s7 = scalar_select 0, %s6, %s4
  loop: start=0, step=1, limit=6
  $region2: #{unet_up_forward.7} parent=0 // loop_pre_header
    _
  $region3: #{unet_up_forward.7} parent=0 // loop_header
    %s9 = sphi 0, %s13
    %p10 = scmp.ge.s32.totalorder %s9, 6
    %s16 = sphi 0, %s28
    %s17 = sphi 0, %s24
    %s18 = sphi 0, %s16
    %s19 = sphi 0, %s17
    %s20 = sphi 0, %s18
    %s21 = sphi 0, %s19
    %s33 = sphi 0, %s35
    %s36 = sphi 0, %s33
    %s37 = sphi 0, %s36
    %s53 = sphi 0, %s37
    %s57 = sphi 0, %s57
    %s59 = sphi 0, %s57
    %s60 = sphi 0, %s59
    %s74 = sphi 0, %s60
    %s78 = sphi 0, %s78
    %s80 = sphi 0, %s78
    %s81 = sphi 0, %s80
    %s95 = sphi 0, %s81
    %s103 = sphi 0, %s105
    %s106 = sphi 0, %s103
    %s107 = sphi 0, %s106
    %s123 = sphi 0, %s107
  $region4: #{unet_up_forward.7} parent=0 // loop_header_branch
    %12 = sbr.rel (%p10) target = $region8
  $region5: #{unet_up_forward.7} parent=0 // loop_body
    %s14 = ssub.s32 %s9, 1
    %s15 = ssub.s32 %s9, 2
    %s22 = sadd.s32 1, %s17
    %p23 = scmp.ge.s32.totalorder %s22, 2
    %s24 = scalar_select %p23, 0, %s22
    %s25 = sadd.s32 1, %s16
    %s26 = scalar_select %p23, %s25, %s16
    %p27 = scmp.ge.s32.totalorder %s26, 2
    %s28 = scalar_select %p27, 0, %s26
    %s29 = ssub.s32 %s16, %s28
    %s30 = ssub.s32 %s17, %s24
    %s31 = sor.u32 %s29, %s30
    %p32 = scmp.eq.s32.totalorder %s31, 0
    %s34 = sadd.s32 %s33, 1
    %s35 = scalar_select %p32, %s33, %s34
    %p38 = pneg %p32
    %p39 = scmp.eq.s32.totalorder %s9, 3
    %p40 = por %p38, %p39
    %p41 = scmp.ne.s32.totalorder %s33, %s36
    %p42 = scmp.eq.s32.totalorder %s9, 0
    %p43 = por %p41, %p42
    %p44 = scmp.ne.s32.totalorder %s33, %s36
    %p45 = scmp.eq.s32.totalorder %s14, 3
    %p46 = por %p44, %p45
    %p47 = scmp.ne.s32.totalorder %s36, %s37
    %p48 = scmp.eq.s32.totalorder %s14, 0
    %p49 = por %p47, %p48
    %p50 = scmp.ne.s32.totalorder %s36, %s37
    %p51 = scmp.eq.s32.totalorder %s15, 3
    %p52 = por %p50, %p51
    %p54 = scmp.ne.s32.totalorder %s37, %s53
    %p55 = scmp.eq.s32.totalorder %s15, 0
    %p56 = por %p54, %p55
    %s58 = sadd.s32 %s57, 1
    %p61 = scmp.eq.s32.totalorder %s9, 3
    %p62 = scmp.ne.s32.totalorder %s57, %s59
    %p63 = scmp.eq.s32.totalorder %s9, 0
    %p64 = por %p62, %p63
    %p65 = scmp.ne.s32.totalorder %s57, %s59
    %p66 = scmp.eq.s32.totalorder %s14, 3
    %p67 = por %p65, %p66
    %p68 = scmp.ne.s32.totalorder %s59, %s60
    %p69 = scmp.eq.s32.totalorder %s14, 0
    %p70 = por %p68, %p69
    %p71 = scmp.ne.s32.totalorder %s59, %s60
    %p72 = scmp.eq.s32.totalorder %s15, 3
    %p73 = por %p71, %p72
    %p75 = scmp.ne.s32.totalorder %s60, %s74
    %p76 = scmp.eq.s32.totalorder %s15, 0
    %p77 = por %p75, %p76
    %s79 = sadd.s32 %s78, 1
    %p82 = scmp.eq.s32.totalorder %s9, 3
    %p83 = scmp.ne.s32.totalorder %s78, %s80
    %p84 = scmp.eq.s32.totalorder %s9, 0
    %p85 = por %p83, %p84
    %p86 = scmp.ne.s32.totalorder %s78, %s80
    %p87 = scmp.eq.s32.totalorder %s14, 3
    %p88 = por %p86, %p87
    %p89 = scmp.ne.s32.totalorder %s80, %s81
    %p90 = scmp.eq.s32.totalorder %s14, 0
    %p91 = por %p89, %p90
    %p92 = scmp.ne.s32.totalorder %s80, %s81
    %p93 = scmp.eq.s32.totalorder %s15, 3
    %p94 = por %p92, %p93
    %p96 = scmp.ne.s32.totalorder %s81, %s95
    %p97 = scmp.eq.s32.totalorder %s15, 0
    %p98 = por %p96, %p97
    %s99 = ssub.s32 %s16, %s28
    %s100 = ssub.s32 %s17, %s24
    %s101 = sor.u32 %s99, %s100
    %p102 = scmp.eq.s32.totalorder %s101, 0
    %s104 = sadd.s32 %s103, 1
    %s105 = scalar_select %p102, %s103, %s104
    %p108 = pneg %p102
    %p109 = scmp.eq.s32.totalorder %s9, 3
    %p110 = por %p108, %p109
    %p111 = scmp.ne.s32.totalorder %s103, %s106
    %p112 = scmp.eq.s32.totalorder %s9, 0
    %p113 = por %p111, %p112
    %p114 = scmp.ne.s32.totalorder %s103, %s106
    %p115 = scmp.eq.s32.totalorder %s14, 3
    %p116 = por %p114, %p115
    %p117 = scmp.ne.s32.totalorder %s106, %s107
    %p118 = scmp.eq.s32.totalorder %s14, 0
    %p119 = por %p117, %p118
    %p120 = scmp.ne.s32.totalorder %s106, %s107
    %p121 = scmp.eq.s32.totalorder %s15, 3
    %p122 = por %p120, %p121
    %p124 = scmp.ne.s32.totalorder %s107, %s123
    %p125 = scmp.eq.s32.totalorder %s15, 0
    %p126 = por %p124, %p125
    %p127 = scmp.le.s32.totalorder 1, %s9
    %p128 = scmp.lt.s32.totalorder %s9, 5
    %p129 = pnand %p127, %p128
    %p130 = pneg %p129
    // Predicated region
    $region9: #{unet_up_forward.7} parent=5 // pred_check
      _
    $region10: #{unet_up_forward.7} parent=5 // pred_check_branch
      %132 = sbr.rel (%p129) target = $region12
    $region11: #{unet_up_forward.7} parent=5 // pred_region
      %s133 = ssub.s32 %s9, 1
      // Predicated region
      $region13: #{unet_up_forward.7} parent=11 // pred_check
        %p134 = pneg %p70
      $region14: #{unet_up_forward.7} parent=11 // pred_check_branch
        %136 = sbr.rel (%p134) target = $region16
      $region15: #{unet_up_forward.7} parent=11 // pred_region
        _
      $region16: #{unet_up_forward.7} parent=11 // pred_fallthru
        _
      // Predicated region
      $region17: #{unet_up_forward.7} parent=11 // pred_check
        %p137 = pneg %p91
      $region18: #{unet_up_forward.7} parent=11 // pred_check_branch
        %139 = sbr.rel (%p137) target = $region20
      $region19: #{unet_up_forward.7} parent=11 // pred_region
        _
      $region20: #{unet_up_forward.7} parent=11 // pred_fallthru
        _
    $region12: #{unet_up_forward.7} parent=5 // pred_fallthru
      _
    %p140 = scmp.lt.s32.totalorder %s9, 4
    // Predicated region
    $region21: #{unet_up_forward.7} parent=5 // pred_check
      %p141 = pneg %p140
    $region22: #{unet_up_forward.7} parent=5 // pred_check_branch
      %143 = sbr.rel (%p141) target = $region24
    $region23: #{unet_up_forward.7} parent=5 // pred_region
      // Predicated region
      $region25: #{unet_up_forward.7} parent=23 // pred_check
        %p144 = pneg %p43
      $region26: #{unet_up_forward.7} parent=23 // pred_check_branch
        %146 = sbr.rel (%p144) target = $region28
      $region27: #{unet_up_forward.7} parent=23 // pred_region
        %s147 = smul.u32 8, %s17
        %p148 = scmp.lt.s32.totalorder %s16, 1
        %s149 = scalar_select %p148, %s16, 1
        %p150 = scmp.lt.s32.totalorder %s147, 15
        %s151 = scalar_select %p150, %s147, 15
        %s152 = smul.addr %s151, 2
        %s153 = smul.addr %s149, 32
        %s154 = sadd.s32 %s152, %s153
        %s155 = smul.addr %s154, 8
        %s156 = scalar_lea.vmem %s0, %s155
        %s157 = smul.u32 8, %s17
      $region28: #{unet_up_forward.7} parent=23 // pred_fallthru
        _
    $region24: #{unet_up_forward.7} parent=5 // pred_fallthru
      _
    %p158 = scmp.le.s32.totalorder 1, %s9
    %p159 = scmp.lt.s32.totalorder %s9, 5
    %p160 = pnand %p158, %p159
    %p161 = pneg %p160
    // Predicated region
    $region29: #{unet_up_forward.7} parent=5 // pred_check
      _
    $region30: #{unet_up_forward.7} parent=5 // pred_check_branch
      %163 = sbr.rel (%p160) target = $region32
    $region31: #{unet_up_forward.7} parent=5 // pred_region
      %s164 = ssub.s32 %s9, 1
      %s165 = smul.u32 8, %s19
      %p166 = scmp.lt.s32.totalorder %s18, 1
      %s167 = scalar_select %p166, %s18, 1
      %p168 = scmp.lt.s32.totalorder %s165, 15
      %s169 = scalar_select %p168, %s165, 15
      %s170 = smul.addr %s169, 2
      %s171 = smul.addr %s167, 32
      %s172 = sadd.s32 %s170, %s171
      %s173 = smul.addr %s172, 8
      %s174 = scalar_lea.vmem %s0, %s173
      %p175 = pneg %p49
      %p176 = pneg %p46
      %p177 = pneg %p70
      %p178 = pneg %p67
      %p179 = pneg %p91
      %p180 = pneg %p88
      %p181 = pneg %p119
      %p182 = pneg %p116
      %s183 = smul.u32 8, %s19
      %p184 = scmp.lt.s32.totalorder %s18, 1
      %s185 = scalar_select %p184, %s18, 1
      %p186 = scmp.lt.s32.totalorder %s183, 15
      %s187 = scalar_select %p186, %s183, 15
      %s188 = smul.addr %s187, 2
      %s189 = smul.addr %s185, 32
      %s190 = sadd.s32 %s188, %s189
      %s191 = smul.addr %s190, 4
      %s192 = scalar_lea.vmem %s3, %s191
      %s193 = smul.u32 8, %s19
      %p194 = scmp.lt.s32.totalorder %s18, 1
      %s195 = scalar_select %p194, %s18, 1
      %p196 = scmp.lt.s32.totalorder %s193, 15
      %s197 = scalar_select %p196, %s193, 15
      %s198 = smul.addr %s197, 2
      %s199 = smul.addr %s195, 32
      %s200 = sadd.s32 %s198, %s199
      %s201 = smul.addr %s200, 8
      %s202 = scalar_lea.vmem %s0, %s201
      %s203 = smul.u32 8, %s19
      %s204 = smul.u32 8, %s19
      %p205 = scmp.lt.s32.totalorder %s18, 1
      %s206 = scalar_select %p205, %s18, 1
      %p207 = scmp.lt.s32.totalorder %s204, 15
      %s208 = scalar_select %p207, %s204, 15
      %s209 = smul.addr %s208, 2
      %s210 = smul.addr %s206, 32
      %s211 = sadd.s32 %s209, %s210
      %s212 = smul.addr %s211, 4
      %s213 = scalar_lea.vmem %s3, %s212
      %s214 = smul.u32 8, %s19
      %v215 = vld [vmem:[%s202] sm:$0xff]
      %v216 = vld [vmem:[%s202 + $0x8] sm:$0xff]
      %v217 = vld [vmem:[%s202 + $0x10] sm:$0xff]
      %v218 = vld [vmem:[%s202 + $0x18] sm:$0xff]
      %v219 = vld [vmem:[%s202 + $0x20] sm:$0xff]
      %v220 = vld [vmem:[%s202 + $0x28] sm:$0xff]
      %v221 = vld [vmem:[%s202 + $0x30] sm:$0xff]
      %v222 = vld [vmem:[%s202 + $0x38] sm:$0xff]
      %v223 = vld [vmem:[%s202 + $0x40] sm:$0xff]
      %v224 = vld [vmem:[%s202 + $0x48] sm:$0xff]
      %v225 = vld [vmem:[%s202 + $0x50] sm:$0xff]
      %v226 = vld [vmem:[%s202 + $0x58] sm:$0xff]
      %v227 = vld [vmem:[%s202 + $0x60] sm:$0xff]
      %v228 = vld [vmem:[%s202 + $0x68] sm:$0xff]
      %v229 = vld [vmem:[%s202 + $0x70] sm:$0xff]
      %v230 = vld [vmem:[%s202 + $0x78] sm:$0xff]
      %v231 = vld [vmem:[%s1] sm:$0x1]
      %v233 = vlaneseq
      %v234 = vshrl.u32 %v233, 7
      %v235 = vsub.s32 0, %v234
      %v236 = vrot.slane %v231, %v235
      %v238 = vmul.f32 %v215, %v236
      %v239 = vmul.f32 %v216, %v236
      %v240 = vmul.f32 %v217, %v236
      %v241 = vmul.f32 %v218, %v236
      %v242 = vmul.f32 %v219, %v236
      %v243 = vmul.f32 %v220, %v236
      %v244 = vmul.f32 %v221, %v236
      %v245 = vmul.f32 %v222, %v236
      %v246 = vmul.f32 %v223, %v236
      %v247 = vmul.f32 %v224, %v236
      %v248 = vmul.f32 %v225, %v236
      %v249 = vmul.f32 %v226, %v236
      %v250 = vmul.f32 %v227, %v236
      %v251 = vmul.f32 %v228, %v236
      %v252 = vmul.f32 %v229, %v236
      %v253 = vmul.f32 %v230, %v236
      %v254 = vld [vmem:[%s2] sm:$0x1]
      %v256 = vlaneseq
      %v257 = vshrl.u32 %v256, 7
      %v258 = vsub.s32 0, %v257
      %v259 = vrot.slane %v254, %v258
      %v261 = vadd.f32 %v238, %v259
      %v262 = vadd.f32 %v239, %v259
      %v263 = vadd.f32 %v240, %v259
      %v264 = vadd.f32 %v241, %v259
      %v265 = vadd.f32 %v242, %v259
      %v266 = vadd.f32 %v243, %v259
      %v267 = vadd.f32 %v244, %v259
      %v268 = vadd.f32 %v245, %v259
      %v269 = vadd.f32 %v246, %v259
      %v270 = vadd.f32 %v247, %v259
      %v271 = vadd.f32 %v248, %v259
      %v272 = vadd.f32 %v249, %v259
      %v273 = vadd.f32 %v250, %v259
      %v274 = vadd.f32 %v251, %v259
      %v275 = vadd.f32 %v252, %v259
      %v276 = vadd.f32 %v253, %v259
      %v277 = vmax.f32 %v261, 0.0
      %v278 = vmax.f32 %v262, 0.0
      %v279 = vmax.f32 %v263, 0.0
      %v280 = vmax.f32 %v264, 0.0
      %v281 = vmax.f32 %v265, 0.0
      %v282 = vmax.f32 %v266, 0.0
      %v283 = vmax.f32 %v267, 0.0
      %v284 = vmax.f32 %v268, 0.0
      %v285 = vmax.f32 %v269, 0.0
      %v286 = vmax.f32 %v270, 0.0
      %v287 = vmax.f32 %v271, 0.0
      %v288 = vmax.f32 %v272, 0.0
      %v289 = vmax.f32 %v273, 0.0
      %v290 = vmax.f32 %v274, 0.0
      %v291 = vmax.f32 %v275, 0.0
      %v292 = vmax.f32 %v276, 0.0
      %v293 = vpack.c.bf16 %v278, %v277
      %v294 = vpack.c.bf16 %v280, %v279
      %v295 = vpack.c.bf16 %v282, %v281
      %v296 = vpack.c.bf16 %v284, %v283
      %v297 = vpack.c.bf16 %v286, %v285
      %v298 = vpack.c.bf16 %v288, %v287
      %v299 = vpack.c.bf16 %v290, %v289
      %v300 = vpack.c.bf16 %v292, %v291
      %v309 = vunpack.c.l.b16 %v293
      %v310 = vunpack.c.h.b16 %v293
      %v311 = vunpack.c.l.b16 %v294
      %v312 = vunpack.c.h.b16 %v294
      %v313 = vunpack.c.l.b16 %v295
      %v314 = vunpack.c.h.b16 %v295
      %v315 = vunpack.c.l.b16 %v296
      %v316 = vunpack.c.h.b16 %v296
      %v317 = vunpack.c.l.b16 %v297
      %v318 = vunpack.c.h.b16 %v297
      %v319 = vunpack.c.l.b16 %v298
      %v320 = vunpack.c.h.b16 %v298
      %v321 = vunpack.c.l.b16 %v299
      %v322 = vunpack.c.h.b16 %v299
      %v323 = vunpack.c.l.b16 %v300
      %v324 = vunpack.c.h.b16 %v300
      %v325 = vpack.c.b16 %v309, %v309
      %v326 = vpack.c.b16 %v310, %v310
      %v327 = vpack.c.b16 %v311, %v311
      %v328 = vpack.c.b16 %v312, %v312
      %v329 = vpack.c.b16 %v313, %v313
      %v330 = vpack.c.b16 %v314, %v314
      %v331 = vpack.c.b16 %v315, %v315
      %v332 = vpack.c.b16 %v316, %v316
      %v333 = vpack.c.b16 %v317, %v317
      %v334 = vpack.c.b16 %v318, %v318
      %v335 = vpack.c.b16 %v319, %v319
      %v336 = vpack.c.b16 %v320, %v320
      %v337 = vpack.c.b16 %v321, %v321
      %v338 = vpack.c.b16 %v322, %v322
      %v339 = vpack.c.b16 %v323, %v323
      %v340 = vpack.c.b16 %v324, %v324
      %vm357 = vcmask 27648
      %358 = vst.msk [vmem:[%s213] sm:$0xf] %vm357, %v325
      %359 = vst.msk [vmem:[%s213 + $0x4] sm:$0xf] %vm357, %v326
      %360 = vst.msk [vmem:[%s213 + $0x8] sm:$0xf] %vm357, %v327
      %361 = vst.msk [vmem:[%s213 + $0xc] sm:$0xf] %vm357, %v328
      %362 = vst.msk [vmem:[%s213 + $0x10] sm:$0xf] %vm357, %v329
      %363 = vst.msk [vmem:[%s213 + $0x14] sm:$0xf] %vm357, %v330
      %364 = vst.msk [vmem:[%s213 + $0x18] sm:$0xf] %vm357, %v331
      %365 = vst.msk [vmem:[%s213 + $0x1c] sm:$0xf] %vm357, %v332
      %366 = vst.msk [vmem:[%s213 + $0x20] sm:$0xf] %vm357, %v333
      %367 = vst.msk [vmem:[%s213 + $0x24] sm:$0xf] %vm357, %v334
      %368 = vst.msk [vmem:[%s213 + $0x28] sm:$0xf] %vm357, %v335
      %369 = vst.msk [vmem:[%s213 + $0x2c] sm:$0xf] %vm357, %v336
      %370 = vst.msk [vmem:[%s213 + $0x30] sm:$0xf] %vm357, %v337
      %371 = vst.msk [vmem:[%s213 + $0x34] sm:$0xf] %vm357, %v338
      %372 = vst.msk [vmem:[%s213 + $0x38] sm:$0xf] %vm357, %v339
      %373 = vst.msk [vmem:[%s213 + $0x3c] sm:$0xf] %vm357, %v340
      %s374 = smul.u32 8, %s19
      %p375 = scmp.lt.s32.totalorder %s18, 1
      %s376 = scalar_select %p375, %s18, 1
      %p377 = scmp.lt.s32.totalorder %s374, 15
      %s378 = scalar_select %p377, %s374, 15
      %s379 = smul.addr %s378, 2
      %s380 = smul.addr %s376, 32
      %s381 = sadd.s32 %s379, %s380
      %s382 = smul.addr %s381, 4
      %s383 = scalar_lea.vmem %s3, %s382
      // Predicated region
      $region33: #{unet_up_forward.7} parent=31 // pred_check
        %p384 = pneg %p116
      $region34: #{unet_up_forward.7} parent=31 // pred_check_branch
        %386 = sbr.rel (%p384) target = $region36
      $region35: #{unet_up_forward.7} parent=31 // pred_region
        %s387 = smul.u32 8, %s19
      $region36: #{unet_up_forward.7} parent=31 // pred_fallthru
        _
    $region32: #{unet_up_forward.7} parent=5 // pred_fallthru
      _
    %p388 = scmp.le.s32.totalorder 2, %s9
    // Predicated region
    $region37: #{unet_up_forward.7} parent=5 // pred_check
      %p389 = pneg %p388
    $region38: #{unet_up_forward.7} parent=5 // pred_check_branch
      %391 = sbr.rel (%p389) target = $region40
    $region39: #{unet_up_forward.7} parent=5 // pred_region
      %s392 = ssub.s32 %s9, 2
      // Predicated region
      $region41: #{unet_up_forward.7} parent=39 // pred_check
        %p393 = pneg %p122
      $region42: #{unet_up_forward.7} parent=39 // pred_check_branch
        %395 = sbr.rel (%p393) target = $region44
      $region43: #{unet_up_forward.7} parent=39 // pred_region
        %s396 = smul.u32 8, %s21
        %p397 = scmp.lt.s32.totalorder %s20, 1
        %s398 = scalar_select %p397, %s20, 1
        %p399 = scmp.lt.s32.totalorder %s396, 15
        %s400 = scalar_select %p399, %s396, 15
        %s401 = smul.addr %s400, 2
        %s402 = smul.addr %s398, 32
        %s403 = sadd.s32 %s401, %s402
        %s404 = smul.addr %s403, 4
        %s405 = scalar_lea.vmem %s3, %s404
      $region44: #{unet_up_forward.7} parent=39 // pred_fallthru
        _
    $region40: #{unet_up_forward.7} parent=5 // pred_fallthru
      _
  $region6: #{unet_up_forward.7} parent=0 // loop_footer
    %s13 = sadd.s32 1, %s9
  $region7: #{unet_up_forward.7} parent=0 // loop_footer_branch
    %8 = sbr.rel target = $region3
  $region8: #{unet_up_forward.7} parent=0 // loop_exit
    _

// kernel: unet_up_forward.8
$region0: #{unet_up_forward.8}
  #allocation0 [shape = 'u32[]', space=smem, size = 0x4, offset = 0x4, fixed_abs, tag = 'smem constant byte address 0x4 - core index']
  #allocation1 [shape = 'u32[144,128]{1,0:T(1,128)}', space=vmem, size = 0x12000, scoped, tag = 'internal scratch']
  #allocation2 [shape = 'f32[16,4]{1,0:T(8,128)}', space=vmem, size = 0x2000, scoped, tag = 'scratch operand']
  %s0 = inlined_call_operand.vmem [shape: bf16[2,18,18,4], index: 0, kind: input, shape index: {}]
  %s1 = inlined_call_operand.vmem [shape: bf16[3,3,4,4], index: 1, kind: input, shape index: {}]
  %s2 = inlined_call_operand.vmem [shape: f32[1,4], index: 2, kind: input, shape index: {}]
  %s3 = inlined_call_operand.vmem [shape: f32[2,16,16,4], index: 3, kind: output, shape index: {0}]
  %s4 = inlined_call_operand.vmem [shape: f32[2,16,2,4], index: 4, kind: output, shape index: {1}]
  %5 = xla_tuple %s3, %s4
  %s6 = sld [smem:[#allocation0]]
  $region61: #{unet_up_forward.8} parent=0
    _
  %s8 = ssub.s32 1, %s6
  %s9 = scalar_select 0, %s8, %s6
  loop: start=0, step=1, limit=98
  $region2: #{unet_up_forward.8} parent=0 // loop_pre_header
    _
  $region3: #{unet_up_forward.8} parent=0 // loop_header
    %s11 = sphi 0, %s15
    %p12 = scmp.ge.s32.totalorder %s11, 98
    %s18 = sphi 0, %s37
    %s19 = sphi 0, %s33
    %s20 = sphi 0, %s29
    %s21 = sphi 0, %s18
    %s22 = sphi 0, %s19
    %s23 = sphi 0, %s20
    %s24 = sphi 0, %s21
    %s25 = sphi 0, %s22
    %s26 = sphi 0, %s23
    %s44 = sphi 0, %s46
    %s47 = sphi 0, %s44
    %s48 = sphi 0, %s47
    %s64 = sphi 0, %s48
    %s68 = sphi 0, %s68
    %s70 = sphi 0, %s68
    %s71 = sphi 0, %s70
    %s85 = sphi 0, %s71
    %s89 = sphi 0, %s89
    %s91 = sphi 0, %s89
    %s92 = sphi 0, %s91
    %s106 = sphi 0, %s92
    %s114 = sphi 0, %s116
    %s117 = sphi 0, %s114
    %s118 = sphi 0, %s117
    %s134 = sphi 0, %s118
    %s142 = sphi 0, %s144
    %s145 = sphi 0, %s142
    %s146 = sphi 0, %s145
    %s162 = sphi 0, %s146
  $region4: #{unet_up_forward.8} parent=0 // loop_header_branch
    %14 = sbr.rel (%p12) target = $region8
  $region5: #{unet_up_forward.8} parent=0 // loop_body
    %s16 = ssub.s32 %s11, 1
    %s17 = ssub.s32 %s11, 2
    %s27 = sadd.s32 1, %s20
    %p28 = scmp.ge.s32.totalorder %s27, 3
    %s29 = scalar_select %p28, 0, %s27
    %s30 = sadd.s32 1, %s19
    %s31 = scalar_select %p28, %s30, %s19
    %p32 = scmp.ge.s32.totalorder %s31, 16
    %s33 = scalar_select %p32, 0, %s31
    %s34 = sadd.s32 1, %s18
    %s35 = scalar_select %p32, %s34, %s18
    %p36 = scmp.ge.s32.totalorder %s35, 2
    %s37 = scalar_select %p36, 0, %s35
    %s38 = sadd.s32 %s19, %s20
    %s39 = sadd.s32 %s33, %s29
    %s40 = ssub.s32 %s18, %s37
    %s41 = ssub.s32 %s38, %s39
    %s42 = sor.u32 %s40, %s41
    %p43 = scmp.eq.s32.totalorder %s42, 0
    %s45 = sadd.s32 %s44, 1
    %s46 = scalar_select %p43, %s44, %s45
    %p49 = pneg %p43
    %p50 = scmp.eq.s32.totalorder %s11, 95
    %p51 = por %p49, %p50
    %p52 = scmp.ne.s32.totalorder %s44, %s47
    %p53 = scmp.eq.s32.totalorder %s11, 0
    %p54 = por %p52, %p53
    %p55 = scmp.ne.s32.totalorder %s44, %s47
    %p56 = scmp.eq.s32.totalorder %s16, 95
    %p57 = por %p55, %p56
    %p58 = scmp.ne.s32.totalorder %s47, %s48
    %p59 = scmp.eq.s32.totalorder %s16, 0
    %p60 = por %p58, %p59
    %p61 = scmp.ne.s32.totalorder %s47, %s48
    %p62 = scmp.eq.s32.totalorder %s17, 95
    %p63 = por %p61, %p62
    %p65 = scmp.ne.s32.totalorder %s48, %s64
    %p66 = scmp.eq.s32.totalorder %s17, 0
    %p67 = por %p65, %p66
    %s69 = sadd.s32 %s68, 1
    %p72 = scmp.eq.s32.totalorder %s11, 95
    %p73 = scmp.ne.s32.totalorder %s68, %s70
    %p74 = scmp.eq.s32.totalorder %s11, 0
    %p75 = por %p73, %p74
    %p76 = scmp.ne.s32.totalorder %s68, %s70
    %p77 = scmp.eq.s32.totalorder %s16, 95
    %p78 = por %p76, %p77
    %p79 = scmp.ne.s32.totalorder %s70, %s71
    %p80 = scmp.eq.s32.totalorder %s16, 0
    %p81 = por %p79, %p80
    %p82 = scmp.ne.s32.totalorder %s70, %s71
    %p83 = scmp.eq.s32.totalorder %s17, 95
    %p84 = por %p82, %p83
    %p86 = scmp.ne.s32.totalorder %s71, %s85
    %p87 = scmp.eq.s32.totalorder %s17, 0
    %p88 = por %p86, %p87
    %s90 = sadd.s32 %s89, 1
    %p93 = scmp.eq.s32.totalorder %s11, 95
    %p94 = scmp.ne.s32.totalorder %s89, %s91
    %p95 = scmp.eq.s32.totalorder %s11, 0
    %p96 = por %p94, %p95
    %p97 = scmp.ne.s32.totalorder %s89, %s91
    %p98 = scmp.eq.s32.totalorder %s16, 95
    %p99 = por %p97, %p98
    %p100 = scmp.ne.s32.totalorder %s91, %s92
    %p101 = scmp.eq.s32.totalorder %s16, 0
    %p102 = por %p100, %p101
    %p103 = scmp.ne.s32.totalorder %s91, %s92
    %p104 = scmp.eq.s32.totalorder %s17, 95
    %p105 = por %p103, %p104
    %p107 = scmp.ne.s32.totalorder %s92, %s106
    %p108 = scmp.eq.s32.totalorder %s17, 0
    %p109 = por %p107, %p108
    %s110 = ssub.s32 %s18, %s37
    %s111 = ssub.s32 %s19, %s33
    %s112 = sor.u32 %s110, %s111
    %p113 = scmp.eq.s32.totalorder %s112, 0
    %s115 = sadd.s32 %s114, 1
    %s116 = scalar_select %p113, %s114, %s115
    %p119 = pneg %p113
    %p120 = scmp.eq.s32.totalorder %s11, 95
    %p121 = por %p119, %p120
    %p122 = scmp.ne.s32.totalorder %s114, %s117
    %p123 = scmp.eq.s32.totalorder %s11, 0
    %p124 = por %p122, %p123
    %p125 = scmp.ne.s32.totalorder %s114, %s117
    %p126 = scmp.eq.s32.totalorder %s16, 95
    %p127 = por %p125, %p126
    %p128 = scmp.ne.s32.totalorder %s117, %s118
    %p129 = scmp.eq.s32.totalorder %s16, 0
    %p130 = por %p128, %p129
    %p131 = scmp.ne.s32.totalorder %s117, %s118
    %p132 = scmp.eq.s32.totalorder %s17, 95
    %p133 = por %p131, %p132
    %p135 = scmp.ne.s32.totalorder %s118, %s134
    %p136 = scmp.eq.s32.totalorder %s17, 0
    %p137 = por %p135, %p136
    %s138 = ssub.s32 %s18, %s37
    %s139 = ssub.s32 %s19, %s33
    %s140 = sor.u32 %s138, %s139
    %p141 = scmp.eq.s32.totalorder %s140, 0
    %s143 = sadd.s32 %s142, 1
    %s144 = scalar_select %p141, %s142, %s143
    %p147 = pneg %p141
    %p148 = scmp.eq.s32.totalorder %s11, 95
    %p149 = por %p147, %p148
    %p150 = scmp.ne.s32.totalorder %s142, %s145
    %p151 = scmp.eq.s32.totalorder %s11, 0
    %p152 = por %p150, %p151
    %p153 = scmp.ne.s32.totalorder %s142, %s145
    %p154 = scmp.eq.s32.totalorder %s16, 95
    %p155 = por %p153, %p154
    %p156 = scmp.ne.s32.totalorder %s145, %s146
    %p157 = scmp.eq.s32.totalorder %s16, 0
    %p158 = por %p156, %p157
    %p159 = scmp.ne.s32.totalorder %s145, %s146
    %p160 = scmp.eq.s32.totalorder %s17, 95
    %p161 = por %p159, %p160
    %p163 = scmp.ne.s32.totalorder %s146, %s162
    %p164 = scmp.eq.s32.totalorder %s17, 0
    %p165 = por %p163, %p164
    %p166 = scmp.le.s32.totalorder 1, %s11
    %p167 = scmp.lt.s32.totalorder %s11, 97
    %p168 = pnand %p166, %p167
    %p169 = pneg %p168
    // Predicated region
    $region9: #{unet_up_forward.8} parent=5 // pred_check
      _
    $region10: #{unet_up_forward.8} parent=5 // pred_check_branch
      %171 = sbr.rel (%p168) target = $region12
    $region11: #{unet_up_forward.8} parent=5 // pred_region
      %s172 = ssub.s32 %s11, 1
      // Predicated region
      $region13: #{unet_up_forward.8} parent=11 // pred_check
        %p173 = pneg %p81
      $region14: #{unet_up_forward.8} parent=11 // pred_check_branch
        %175 = sbr.rel (%p173) target = $region16
      $region15: #{unet_up_forward.8} parent=11 // pred_region
        _
      $region16: #{unet_up_forward.8} parent=11 // pred_fallthru
        _
      // Predicated region
      $region17: #{unet_up_forward.8} parent=11 // pred_check
        %p176 = pneg %p102
      $region18: #{unet_up_forward.8} parent=11 // pred_check_branch
        %178 = sbr.rel (%p176) target = $region20
      $region19: #{unet_up_forward.8} parent=11 // pred_region
        _
      $region20: #{unet_up_forward.8} parent=11 // pred_fallthru
        _
    $region12: #{unet_up_forward.8} parent=5 // pred_fallthru
      _
    %p179 = scmp.lt.s32.totalorder %s11, 96
    // Predicated region
    $region21: #{unet_up_forward.8} parent=5 // pred_check
      %p180 = pneg %p179
    $region22: #{unet_up_forward.8} parent=5 // pred_check_branch
      %182 = sbr.rel (%p180) target = $region24
    $region23: #{unet_up_forward.8} parent=5 // pred_region
      // Predicated region
      $region25: #{unet_up_forward.8} parent=23 // pred_check
        %p183 = pneg %p54
      $region26: #{unet_up_forward.8} parent=23 // pred_check_branch
        %185 = sbr.rel (%p183) target = $region28
      $region27: #{unet_up_forward.8} parent=23 // pred_region
        %s186 = sadd.s32 %s19, %s20
        %p187 = scmp.lt.s32.totalorder %s18, 1
        %s188 = scalar_select %p187, %s18, 1
        %p189 = scmp.lt.s32.totalorder %s186, 17
        %s190 = scalar_select %p189, %s186, 17
        %s191 = smul.addr %s190, 3
        %s192 = smul.addr %s188, 54
        %s193 = sadd.s32 %s191, %s192
        %s194 = smul.addr %s193, 4
        %s195 = scalar_lea.vmem %s0, %s194
        %s196 = sadd.s32 %s19, %s20
      $region28: #{unet_up_forward.8} parent=23 // pred_fallthru
        _
    $region24: #{unet_up_forward.8} parent=5 // pred_fallthru
      _
    %p197 = scmp.le.s32.totalorder 1, %s11
    %p198 = scmp.lt.s32.totalorder %s11, 97
    %p199 = pnand %p197, %p198
    %p200 = pneg %p199
    // Predicated region
    $region29: #{unet_up_forward.8} parent=5 // pred_check
      _
    $region30: #{unet_up_forward.8} parent=5 // pred_check_branch
      %202 = sbr.rel (%p199) target = $region32
    $region31: #{unet_up_forward.8} parent=5 // pred_region
      %s203 = ssub.s32 %s11, 1
      %s204 = sadd.s32 %s22, %s23
      %p205 = scmp.lt.s32.totalorder %s21, 1
      %s206 = scalar_select %p205, %s21, 1
      %p207 = scmp.lt.s32.totalorder %s204, 17
      %s208 = scalar_select %p207, %s204, 17
      %s209 = smul.addr %s208, 3
      %s210 = smul.addr %s206, 54
      %s211 = sadd.s32 %s209, %s210
      %s212 = smul.addr %s211, 4
      %s213 = scalar_lea.vmem %s0, %s212
      %p214 = pneg %p60
      %p215 = pneg %p57
      %p216 = pneg %p81
      %p217 = pneg %p78
      %p218 = pneg %p102
      %p219 = pneg %p99
      %p220 = pneg %p130
      %p221 = pneg %p127
      %p222 = scmp.lt.s32.totalorder %s21, 1
      %s223 = scalar_select %p222, %s21, 1
      %p224 = scmp.lt.s32.totalorder %s22, 15
      %s225 = scalar_select %p224, %s22, 15
      %s226 = smul.addr %s225, 2
      %s227 = smul.addr %s223, 32
      %s228 = sadd.s32 %s226, %s227
      %s229 = smul.addr %s228, 8
      %s230 = scalar_lea.vmem %s3, %s229
      %p231 = pneg %p158
      %p232 = pneg %p155
      %p233 = scmp.lt.s32.totalorder %s21, 1
      %s234 = scalar_select %p233, %s21, 1
      %p235 = scmp.lt.s32.totalorder %s22, 15
      %s236 = scalar_select %p235, %s22, 15
      %s237 = smul.addr %s234, 16
      %s238 = sadd.s32 %s236, %s237
      %s239 = smul.addr %s238, 2
      %s240 = scalar_lea.vmem %s4, %s239
      %s241 = sadd.s32 %s22, %s23
      %p242 = scmp.lt.s32.totalorder %s21, 1
      %s243 = scalar_select %p242, %s21, 1
      %p244 = scmp.lt.s32.totalorder %s241, 17
      %s245 = scalar_select %p244, %s241, 17
      %s246 = smul.addr %s245, 3
      %s247 = smul.addr %s243, 54
      %s248 = sadd.s32 %s246, %s247
      %s249 = smul.addr %s248, 4
      %s250 = scalar_lea.vmem %s0, %s249
      %s251 = sadd.s32 %s22, %s23
      %p252 = scmp.lt.s32.totalorder %s21, 1
      %s253 = scalar_select %p252, %s21, 1
      %p254 = scmp.lt.s32.totalorder %s22, 15
      %s255 = scalar_select %p254, %s22, 15
      %s256 = smul.addr %s255, 2
      %s257 = smul.addr %s253, 32
      %s258 = sadd.s32 %s256, %s257
      %s259 = smul.addr %s258, 8
      %s260 = scalar_lea.vmem %s3, %s259
      %p261 = scmp.lt.s32.totalorder %s21, 1
      %s262 = scalar_select %p261, %s21, 1
      %p263 = scmp.lt.s32.totalorder %s22, 15
      %s264 = scalar_select %p263, %s22, 15
      %s265 = smul.addr %s262, 16
      %s266 = sadd.s32 %s264, %s265
      %s267 = smul.addr %s266, 2
      %s268 = scalar_lea.vmem %s4, %s267
      %p270 = scmp.eq.s32.totalorder %s23, 0
      // Predicated region
      $region33: #{unet_up_forward.8} parent=31 // pred_check
        %p271 = pneg %p270
      $region34: #{unet_up_forward.8} parent=31 // pred_check_branch
        %273 = sbr.rel (%p271) target = $region36
      $region35: #{unet_up_forward.8} parent=31 // pred_region
        %vm274 = vcmask 31744
        %275 = vst.msk [vmem:[#allocation2] sm:$0xff] %vm274, 0.0
        %276 = vst.msk [vmem:[#allocation2 + $0x8] sm:$0xff] %vm274, 0.0
      $region36: #{unet_up_forward.8} parent=31 // pred_fallthru
        _
      %v277 = vld [vmem:[#allocation2] sm:$0xff]
      %v278 = vld [vmem:[#allocation2 + $0x8] sm:$0xff]
      %v279 = vld [vmem:[%s250] sm:$0xf]
      %v280 = vld [vmem:[%s250 + $0x4] sm:$0xf]
      %v281 = vld [vmem:[%s250 + $0x8] sm:$0x1]
      %s282 = smul.u32 %s23, 3
      %s283 = smul.addr %s282, 2
      %s284 = scalar_lea.vmem %s1, %s283
      %v285 = vld [vmem:[%s284] sm:$0x3]
      %v286 = vld [vmem:[%s284 + $0x2] sm:$0x3]
      %v287 = vld [vmem:[%s284 + $0x4] sm:$0x3]
      %v290 = vunpack.c.l.b16 %v279
      %v291 = vunpack.c.l.b16 %v280
      %v292 = vpack.c.b16 %v291, %v290
      %vm293 = vcmask 31744
      %v295 = vsel %vm293, %v292, 0
      %vm297 = vcmask 1041408
      %v299 = vsel %vm297, %v285, 0
      %301 = vmatprep.subr.bf16.mxu0 0
      %302 = vmatpush1.bf16.msra.mxu0 0
      %303 = vmatprep.subr.bf16.mxu0 0
      %304 = vmatpush1.bf16.msra.mxu0 0
      %305 = vmatprep.subr.bf16.mxu0 0
      %306 = vmatpush1.bf16.msra.mxu0 0
      %307 = vmatprep.subr.bf16.mxu0 0
      %308 = vmatpush1.bf16.msra.mxu0 0
      %309 = vmatprep.subr.bf16.mxu0 0
      %310 = vmatpush1.bf16.msra.mxu0 0
      %311 = vmatprep.subr.bf16.mxu0 0
      %312 = vmatpush1.bf16.msra.mxu0 0
      %313 = vmatprep.subr.bf16.mxu0 0
      %314 = vmatpush1.bf16.msra.mxu0 0
      %315 = vmatprep.subr.bf16.mxu0 0
      %316 = vmatpush1.bf16.msra.mxu0 %v299
      %317 = vmatprep.subr.bf16.mxu0 0
      %318 = vmatpush2.bf16.msra.mxu0 0
      %319 = vmatprep.subr.bf16.mxu0 0
      %320 = vmatpush2.bf16.msra.mxu0 0
      %321 = vmatprep.subr.bf16.mxu0 0
      %322 = vmatpush2.bf16.msra.mxu0 0
      %323 = vmatprep.subr.bf16.mxu0 0
      %324 = vmatpush2.bf16.msra.mxu0 0
      %325 = vmatprep.subr.bf16.mxu0 0
      %326 = vmatpush2.bf16.msra.mxu0 0
      %327 = vmatprep.subr.bf16.mxu0 0
      %328 = vmatpush2.bf16.msra.mxu0 0
      %329 = vmatprep.subr.bf16.mxu0 0
      %330 = vmatpush2.bf16.msra.mxu0 0
      %331 = vmatprep.subr.bf16.mxu0 0
      %332 = vmatpush2.bf16.msra.mxu0 0
      %333 = vmatprep.mubr.bf16.mxu0 0
      %334 = vmatmul.mubr.bf16.gmra.mxu0 %v295
      %v335 = vpop.f32.mrf.mxu0
      %v336 = vadd.f32 0.0, %v335
      %v337 = vpop.f32.mrf.mxu0
      %v338 = vpop.f32.mrf.mxu0
      %v339 = vadd.f32 0.0, %v338
      %v340 = vpop.f32.mrf.mxu0
      %341 = vdwg.mxu0
      %v342 = vadd.f32 %v277, %v336
      %v343 = vadd.f32 %v278, %v339
      %v345 = vunpack.c.l.b16 %v281
      %v346 = vpack.c.b16 %v345, %v345
      %vm347 = vsmask.f32 7424
      %v348 = vshrl.u32 %v292, 16
      %v350 = vshll.u32 %v292, 16
      %v352 = vrot.slane %v350, 1
      %v353 = vor.u32 %v348, %v352
      %v355 = vshll.u32 %v346, 16
      %v357 = vrot.slane %v355, 1
      %v358 = vsel %vm347, %v353, %v357
      %v360 = vsel %vm293, %v358, 0
      %v363 = vsel %vm297, %v286, 0
      %365 = vmatprep.subr.bf16.mxu0 0
      %366 = vmatpush1.bf16.msra.mxu0 0
      %367 = vmatprep.subr.bf16.mxu0 0
      %368 = vmatpush1.bf16.msra.mxu0 0
      %369 = vmatprep.subr.bf16.mxu0 0
      %370 = vmatpush1.bf16.msra.mxu0 0
      %371 = vmatprep.subr.bf16.mxu0 0
      %372 = vmatpush1.bf16.msra.mxu0 0
      %373 = vmatprep.subr.bf16.mxu0 0
      %374 = vmatpush1.bf16.msra.mxu0 0
      %375 = vmatprep.subr.bf16.mxu0 0
      %376 = vmatpush1.bf16.msra.mxu0 0
      %377 = vmatprep.subr.bf16.mxu0 0
      %378 = vmatpush1.bf16.msra.mxu0 0
      %379 = vmatprep.subr.bf16.mxu0 0
      %380 = vmatpush1.bf16.msra.mxu0 %v363
      %381 = vmatprep.subr.bf16.mxu0 0
      %382 = vmatpush2.bf16.msra.mxu0 0
      %383 = vmatprep.subr.bf16.mxu0 0
      %384 = vmatpush2.bf16.msra.mxu0 0
      %385 = vmatprep.subr.bf16.mxu0 0
      %386 = vmatpush2.bf16.msra.mxu0 0
      %387 = vmatprep.subr.bf16.mxu0 0
      %388 = vmatpush2.bf16.msra.mxu0 0
      %389 = vmatprep.subr.bf16.mxu0 0
      %390 = vmatpush2.bf16.msra.mxu0 0
      %391 = vmatprep.subr.bf16.mxu0 0
      %392 = vmatpush2.bf16.msra.mxu0 0
      %393 = vmatprep.subr.bf16.mxu0 0
      %394 = vmatpush2.bf16.msra.mxu0 0
      %395 = vmatprep.subr.bf16.mxu0 0
      %396 = vmatpush2.bf16.msra.mxu0 0
      %397 = vmatprep.mubr.bf16.mxu0 0
      %398 = vmatmul.mubr.bf16.gmra.mxu0 %v360
      %v399 = vpop.f32.mrf.mxu0
      %v400 = vadd.f32 0.0, %v399
      %v401 = vpop.f32.mrf.mxu0
      %v402 = vpop.f32.mrf.mxu0
      %v403 = vadd.f32 0.0, %v402
      %v404 = vpop.f32.mrf.mxu0
      %405 = vdwg.mxu0
      %v406 = vadd.f32 %v342, %v400
      %v407 = vadd.f32 %v343, %v403
      %vm408 = vcmask 1046528
      %v409 = vrot.slane %v292, 1
      %v410 = vrot.slane %v346, 1
      %v411 = vsel %vm408, %v409, %v410
      %v413 = vsel %vm293, %v411, 0
      %v416 = vsel %vm297, %v287, 0
      %418 = vmatprep.subr.bf16.mxu0 0
      %419 = vmatpush1.bf16.msra.mxu0 0
      %420 = vmatprep.subr.bf16.mxu0 0
      %421 = vmatpush1.bf16.msra.mxu0 0
      %422 = vmatprep.subr.bf16.mxu0 0
      %423 = vmatpush1.bf16.msra.mxu0 0
      %424 = vmatprep.subr.bf16.mxu0 0
      %425 = vmatpush1.bf16.msra.mxu0 0
      %426 = vmatprep.subr.bf16.mxu0 0
      %427 = vmatpush1.bf16.msra.mxu0 0
      %428 = vmatprep.subr.bf16.mxu0 0
      %429 = vmatpush1.bf16.msra.mxu0 0
      %430 = vmatprep.subr.bf16.mxu0 0
      %431 = vmatpush1.bf16.msra.mxu0 0
      %432 = vmatprep.subr.bf16.mxu0 0
      %433 = vmatpush1.bf16.msra.mxu0 %v416
      %434 = vmatprep.subr.bf16.mxu0 0
      %435 = vmatpush2.bf16.msra.mxu0 0
      %436 = vmatprep.subr.bf16.mxu0 0
      %437 = vmatpush2.bf16.msra.mxu0 0
      %438 = vmatprep.subr.bf16.mxu0 0
      %439 = vmatpush2.bf16.msra.mxu0 0
      %440 = vmatprep.subr.bf16.mxu0 0
      %441 = vmatpush2.bf16.msra.mxu0 0
      %442 = vmatprep.subr.bf16.mxu0 0
      %443 = vmatpush2.bf16.msra.mxu0 0
      %444 = vmatprep.subr.bf16.mxu0 0
      %445 = vmatpush2.bf16.msra.mxu0 0
      %446 = vmatprep.subr.bf16.mxu0 0
      %447 = vmatpush2.bf16.msra.mxu0 0
      %448 = vmatprep.subr.bf16.mxu0 0
      %449 = vmatpush2.bf16.msra.mxu0 0
      %450 = vmatprep.mubr.bf16.mxu0 0
      %451 = vmatmul.mubr.bf16.gmra.mxu0 %v413
      %v452 = vpop.f32.mrf.mxu0
      %v453 = vadd.f32 0.0, %v452
      %v454 = vpop.f32.mrf.mxu0
      %v455 = vpop.f32.mrf.mxu0
      %v456 = vadd.f32 0.0, %v455
      %v457 = vpop.f32.mrf.mxu0
      %458 = vdwg.mxu0
      %v459 = vadd.f32 %v406, %v453
      %v460 = vadd.f32 %v407, %v456
      %461 = vst.msk [vmem:[#allocation2] sm:$0xff] %vm293, %v459
      %462 = vst.msk [vmem:[#allocation2 + $0x8] sm:$0xff] %vm293, %v460
      %p463 = scmp.eq.s32.totalorder %s23, 2
      // Predicated region
      $region37: #{unet_up_forward.8} parent=31 // pred_check
        %p464 = pneg %p463
      $region38: #{unet_up_forward.8} parent=31 // pred_check_branch
        %466 = sbr.rel (%p464) target = $region40
      $region39: #{unet_up_forward.8} parent=31 // pred_region
        %v467 = vld [vmem:[#allocation2] sm:$0xff]
        %v468 = vld [vmem:[#allocation2 + $0x8] sm:$0xff]
        %v469 = vld [vmem:[%s2] sm:$0x1]
        %v471 = vlaneseq
        %v472 = vshrl.u32 %v471, 7
        %v473 = vsub.s32 0, %v472
        %v474 = vrot.slane %v469, %v473
        %v476 = vadd.f32 %v467, %v474
        %v477 = vadd.f32 %v468, %v474
        %478 = vst.msk [vmem:[%s260] sm:$0xff] %vm293, %v476
        %479 = vst.msk [vmem:[%s260 + $0x8] sm:$0xff] %vm293, %v477
        %v480 = vsel %vm293, %v476, 0.0
        %v481 = vsel %vm293, %v477, 0.0
        %v482 = vadd.f32 %v480, %v481
        %v483 = vrot.slane %v482, 4
        %v484 = vadd.f32 %v482, %v483
        %v485 = vrot.slane %v484, 2
        %v486 = vadd.f32 %v484, %v485
        %v487 = vrot.slane %v486, 1
        %v488 = vadd.f32 %v486, %v487
        %vm489 = vcmask 24576
        %490 = vst.msk [vmem:[%s268] sm:$0x1] %vm489, %v488
        %v491 = vmul.f32 %v476, %v476
        %v492 = vmul.f32 %v477, %v477
        %v493 = vsel %vm293, %v491, 0.0
        %v494 = vsel %vm293, %v492, 0.0
        %v495 = vadd.f32 %v493, %v494
        %v496 = vrot.slane %v495, 4
        %v497 = vadd.f32 %v495, %v496
        %v498 = vrot.slane %v497, 2
        %v499 = vadd.f32 %v497, %v498
        %v500 = vrot.slane %v499, 1
        %v501 = vadd.f32 %v499, %v500
        %502 = vst.msk [vmem:[%s268 + $0x1] sm:$0x1] %vm489, %v501
      $region40: #{unet_up_forward.8} parent=31 // pred_fallthru
        _
      %p503 = scmp.lt.s32.totalorder %s21, 1
      %s504 = scalar_select %p503, %s21, 1
      %p505 = scmp.lt.s32.totalorder %s22, 15
      %s506 = scalar_select %p505, %s22, 15
      %s507 = smul.addr %s506, 2
      %s508 = smul.addr %s504, 32
      %s509 = sadd.s32 %s507, %s508
      %s510 = smul.addr %s509, 8
      %s511 = scalar_lea.vmem %s3, %s510
      %p512 = scmp.lt.s32.totalorder %s21, 1
      %s513 = scalar_select %p512, %s21, 1
      %p514 = scmp.lt.s32.totalorder %s22, 15
      %s515 = scalar_select %p514, %s22, 15
      %s516 = smul.addr %s513, 16
      %s517 = sadd.s32 %s515, %s516
      %s518 = smul.addr %s517, 2
      %s519 = scalar_lea.vmem %s4, %s518
      // Predicated region
      $region41: #{unet_up_forward.8} parent=31 // pred_check
        %p520 = pneg %p127
      $region42: #{unet_up_forward.8} parent=31 // pred_check_branch
        %522 = sbr.rel (%p520) target = $region44
      $region43: #{unet_up_forward.8} parent=31 // pred_region
        _
      $region44: #{unet_up_forward.8} parent=31 // pred_fallthru
        _
      // Predicated region
      $region45: #{unet_up_forward.8} parent=31 // pred_check
        %p523 = pneg %p155
      $region46: #{unet_up_forward.8} parent=31 // pred_check_branch
        %525 = sbr.rel (%p523) target = $region48
      $region47: #{unet_up_forward.8} parent=31 // pred_region
        _
      $region48: #{unet_up_forward.8} parent=31 // pred_fallthru
        _
    $region32: #{unet_up_forward.8} parent=5 // pred_fallthru
      _
    %p526 = scmp.le.s32.totalorder 2, %s11
    // Predicated region
    $region49: #{unet_up_forward.8} parent=5 // pred_check
      %p527 = pneg %p526
    $region50: #{unet_up_forward.8} parent=5 // pred_check_branch
      %529 = sbr.rel (%p527) target = $region52
    $region51: #{unet_up_forward.8} parent=5 // pred_region
      %s530 = ssub.s32 %s11, 2
      // Predicated region
      $region53: #{unet_up_forward.8} parent=51 // pred_check
        %p531 = pneg %p133
      $region54: #{unet_up_forward.8} parent=51 // pred_check_branch
        %533 = sbr.rel (%p531) target = $region56
      $region55: #{unet_up_forward.8} parent=51 // pred_region
        %p534 = scmp.lt.s32.totalorder %s24, 1
        %s535 = scalar_select %p534, %s24, 1
        %p536 = scmp.lt.s32.totalorder %s25, 15
        %s537 = scalar_select %p536, %s25, 15
        %s538 = smul.addr %s537, 2
        %s539 = smul.addr %s535, 32
        %s540 = sadd.s32 %s538, %s539
        %s541 = smul.addr %s540, 8
        %s542 = scalar_lea.vmem %s3, %s541
      $region56: #{unet_up_forward.8} parent=51 // pred_fallthru
        _
      // Predicated region
      $region57: #{unet_up_forward.8} parent=51 // pred_check
        %p543 = pneg %p161
      $region58: #{unet_up_forward.8} parent=51 // pred_check_branch
        %545 = sbr.rel (%p543) target = $region60
      $region59: #{unet_up_forward.8} parent=51 // pred_region
        %p546 = scmp.lt.s32.totalorder %s24, 1
        %s547 = scalar_select %p546, %s24, 1
        %p548 = scmp.lt.s32.totalorder %s25, 15
        %s549 = scalar_select %p548, %s25, 15
        %s550 = smul.addr %s547, 16
        %s551 = sadd.s32 %s549, %s550
        %s552 = smul.addr %s551, 2
        %s553 = scalar_lea.vmem %s4, %s552
      $region60: #{unet_up_forward.8} parent=51 // pred_fallthru
        _
    $region52: #{unet_up_forward.8} parent=5 // pred_fallthru
      _
  $region6: #{unet_up_forward.8} parent=0 // loop_footer
    %s15 = sadd.s32 1, %s11
  $region7: #{unet_up_forward.8} parent=0 // loop_footer_branch
    %10 = sbr.rel target = $region3
  $region8: #{unet_up_forward.8} parent=0 // loop_exit
    _

// kernel: unet_up_forward.6
$region0: #{unet_up_forward.6}
  #allocation0 [shape = 'u32[]', space=smem, size = 0x4, offset = 0x4, fixed_abs, tag = 'smem constant byte address 0x4 - core index']
  #allocation1 [shape = 'u32[144,128]{1,0:T(1,128)}', space=vmem, size = 0x12000, scoped, tag = 'internal scratch']
  #allocation2 [shape = 'f32[16,4]{1,0:T(8,128)}', space=vmem, size = 0x2000, scoped, tag = 'scratch operand']
  %s0 = inlined_call_operand.vmem [shape: bf16[2,18,18,4], index: 0, kind: input, shape index: {}]
  %s1 = inlined_call_operand.vmem [shape: bf16[2,18,18,4], index: 1, kind: input, shape index: {}]
  %s2 = inlined_call_operand.vmem [shape: bf16[3,3,4,4], index: 2, kind: input, shape index: {}]
  %s3 = inlined_call_operand.vmem [shape: bf16[3,3,4,4], index: 3, kind: input, shape index: {}]
  %s4 = inlined_call_operand.vmem [shape: f32[1,4], index: 4, kind: input, shape index: {}]
  %s5 = inlined_call_operand.vmem [shape: f32[2,16,16,4], index: 5, kind: output, shape index: {0}]
  %s6 = inlined_call_operand.vmem [shape: f32[2,16,2,4], index: 6, kind: output, shape index: {1}]
  %7 = xla_tuple %s5, %s6
  %s8 = sld [smem:[#allocation0]]
  $region69: #{unet_up_forward.6} parent=0
    _
  %s10 = ssub.s32 1, %s8
  %s11 = scalar_select 0, %s10, %s8
  loop: start=0, step=1, limit=98
  $region2: #{unet_up_forward.6} parent=0 // loop_pre_header
    _
  $region3: #{unet_up_forward.6} parent=0 // loop_header
    %s13 = sphi 0, %s17
    %p14 = scmp.ge.s32.totalorder %s13, 98
    %s20 = sphi 0, %s39
    %s21 = sphi 0, %s35
    %s22 = sphi 0, %s31
    %s23 = sphi 0, %s20
    %s24 = sphi 0, %s21
    %s25 = sphi 0, %s22
    %s26 = sphi 0, %s23
    %s27 = sphi 0, %s24
    %s28 = sphi 0, %s25
    %s46 = sphi 0, %s48
    %s49 = sphi 0, %s46
    %s50 = sphi 0, %s49
    %s66 = sphi 0, %s50
    %s76 = sphi 0, %s78
    %s79 = sphi 0, %s76
    %s80 = sphi 0, %s79
    %s96 = sphi 0, %s80
    %s100 = sphi 0, %s100
    %s102 = sphi 0, %s100
    %s103 = sphi 0, %s102
    %s117 = sphi 0, %s103
    %s121 = sphi 0, %s121
    %s123 = sphi 0, %s121
    %s124 = sphi 0, %s123
    %s138 = sphi 0, %s124
    %s142 = sphi 0, %s142
    %s144 = sphi 0, %s142
    %s145 = sphi 0, %s144
    %s159 = sphi 0, %s145
    %s167 = sphi 0, %s169
    %s170 = sphi 0, %s167
    %s171 = sphi 0, %s170
    %s187 = sphi 0, %s171
    %s195 = sphi 0, %s197
    %s198 = sphi 0, %s195
    %s199 = sphi 0, %s198
    %s215 = sphi 0, %s199
  $region4: #{unet_up_forward.6} parent=0 // loop_header_branch
    %16 = sbr.rel (%p14) target = $region8
  $region5: #{unet_up_forward.6} parent=0 // loop_body
    %s18 = ssub.s32 %s13, 1
    %s19 = ssub.s32 %s13, 2
    %s29 = sadd.s32 1, %s22
    %p30 = scmp.ge.s32.totalorder %s29, 3
    %s31 = scalar_select %p30, 0, %s29
    %s32 = sadd.s32 1, %s21
    %s33 = scalar_select %p30, %s32, %s21
    %p34 = scmp.ge.s32.totalorder %s33, 16
    %s35 = scalar_select %p34, 0, %s33
    %s36 = sadd.s32 1, %s20
    %s37 = scalar_select %p34, %s36, %s20
    %p38 = scmp.ge.s32.totalorder %s37, 2
    %s39 = scalar_select %p38, 0, %s37
    %s40 = sadd.s32 %s21, %s22
    %s41 = sadd.s32 %s35, %s31
    %s42 = ssub.s32 %s20, %s39
    %s43 = ssub.s32 %s40, %s41
    %s44 = sor.u32 %s42, %s43
    %p45 = scmp.eq.s32.totalorder %s44, 0
    %s47 = sadd.s32 %s46, 1
    %s48 = scalar_select %p45, %s46, %s47
    %p51 = pneg %p45
    %p52 = scmp.eq.s32.totalorder %s13, 95
    %p53 = por %p51, %p52
    %p54 = scmp.ne.s32.totalorder %s46, %s49
    %p55 = scmp.eq.s32.totalorder %s13, 0
    %p56 = por %p54, %p55
    %p57 = scmp.ne.s32.totalorder %s46, %s49
    %p58 = scmp.eq.s32.totalorder %s18, 95
    %p59 = por %p57, %p58
    %p60 = scmp.ne.s32.totalorder %s49, %s50
    %p61 = scmp.eq.s32.totalorder %s18, 0
    %p62 = por %p60, %p61
    %p63 = scmp.ne.s32.totalorder %s49, %s50
    %p64 = scmp.eq.s32.totalorder %s19, 95
    %p65 = por %p63, %p64
    %p67 = scmp.ne.s32.totalorder %s50, %s66
    %p68 = scmp.eq.s32.totalorder %s19, 0
    %p69 = por %p67, %p68
    %s70 = sadd.s32 %s21, %s22
    %s71 = sadd.s32 %s35, %s31
    %s72 = ssub.s32 %s20, %s39
    %s73 = ssub.s32 %s70, %s71
    %s74 = sor.u32 %s72, %s73
    %p75 = scmp.eq.s32.totalorder %s74, 0
    %s77 = sadd.s32 %s76, 1
    %s78 = scalar_select %p75, %s76, %s77
    %p81 = pneg %p75
    %p82 = scmp.eq.s32.totalorder %s13, 95
    %p83 = por %p81, %p82
    %p84 = scmp.ne.s32.totalorder %s76, %s79
    %p85 = scmp.eq.s32.totalorder %s13, 0
    %p86 = por %p84, %p85
    %p87 = scmp.ne.s32.totalorder %s76, %s79
    %p88 = scmp.eq.s32.totalorder %s18, 95
    %p89 = por %p87, %p88
    %p90 = scmp.ne.s32.totalorder %s79, %s80
    %p91 = scmp.eq.s32.totalorder %s18, 0
    %p92 = por %p90, %p91
    %p93 = scmp.ne.s32.totalorder %s79, %s80
    %p94 = scmp.eq.s32.totalorder %s19, 95
    %p95 = por %p93, %p94
    %p97 = scmp.ne.s32.totalorder %s80, %s96
    %p98 = scmp.eq.s32.totalorder %s19, 0
    %p99 = por %p97, %p98
    %s101 = sadd.s32 %s100, 1
    %p104 = scmp.eq.s32.totalorder %s13, 95
    %p105 = scmp.ne.s32.totalorder %s100, %s102
    %p106 = scmp.eq.s32.totalorder %s13, 0
    %p107 = por %p105, %p106
    %p108 = scmp.ne.s32.totalorder %s100, %s102
    %p109 = scmp.eq.s32.totalorder %s18, 95
    %p110 = por %p108, %p109
    %p111 = scmp.ne.s32.totalorder %s102, %s103
    %p112 = scmp.eq.s32.totalorder %s18, 0
    %p113 = por %p111, %p112
    %p114 = scmp.ne.s32.totalorder %s102, %s103
    %p115 = scmp.eq.s32.totalorder %s19, 95
    %p116 = por %p114, %p115
    %p118 = scmp.ne.s32.totalorder %s103, %s117
    %p119 = scmp.eq.s32.totalorder %s19, 0
    %p120 = por %p118, %p119
    %s122 = sadd.s32 %s121, 1
    %p125 = scmp.eq.s32.totalorder %s13, 95
    %p126 = scmp.ne.s32.totalorder %s121, %s123
    %p127 = scmp.eq.s32.totalorder %s13, 0
    %p128 = por %p126, %p127
    %p129 = scmp.ne.s32.totalorder %s121, %s123
    %p130 = scmp.eq.s32.totalorder %s18, 95
    %p131 = por %p129, %p130
    %p132 = scmp.ne.s32.totalorder %s123, %s124
    %p133 = scmp.eq.s32.totalorder %s18, 0
    %p134 = por %p132, %p133
    %p135 = scmp.ne.s32.totalorder %s123, %s124
    %p136 = scmp.eq.s32.totalorder %s19, 95
    %p137 = por %p135, %p136
    %p139 = scmp.ne.s32.totalorder %s124, %s138
    %p140 = scmp.eq.s32.totalorder %s19, 0
    %p141 = por %p139, %p140
    %s143 = sadd.s32 %s142, 1
    %p146 = scmp.eq.s32.totalorder %s13, 95
    %p147 = scmp.ne.s32.totalorder %s142, %s144
    %p148 = scmp.eq.s32.totalorder %s13, 0
    %p149 = por %p147, %p148
    %p150 = scmp.ne.s32.totalorder %s142, %s144
    %p151 = scmp.eq.s32.totalorder %s18, 95
    %p152 = por %p150, %p151
    %p153 = scmp.ne.s32.totalorder %s144, %s145
    %p154 = scmp.eq.s32.totalorder %s18, 0
    %p155 = por %p153, %p154
    %p156 = scmp.ne.s32.totalorder %s144, %s145
    %p157 = scmp.eq.s32.totalorder %s19, 95
    %p158 = por %p156, %p157
    %p160 = scmp.ne.s32.totalorder %s145, %s159
    %p161 = scmp.eq.s32.totalorder %s19, 0
    %p162 = por %p160, %p161
    %s163 = ssub.s32 %s20, %s39
    %s164 = ssub.s32 %s21, %s35
    %s165 = sor.u32 %s163, %s164
    %p166 = scmp.eq.s32.totalorder %s165, 0
    %s168 = sadd.s32 %s167, 1
    %s169 = scalar_select %p166, %s167, %s168
    %p172 = pneg %p166
    %p173 = scmp.eq.s32.totalorder %s13, 95
    %p174 = por %p172, %p173
    %p175 = scmp.ne.s32.totalorder %s167, %s170
    %p176 = scmp.eq.s32.totalorder %s13, 0
    %p177 = por %p175, %p176
    %p178 = scmp.ne.s32.totalorder %s167, %s170
    %p179 = scmp.eq.s32.totalorder %s18, 95
    %p180 = por %p178, %p179
    %p181 = scmp.ne.s32.totalorder %s170, %s171
    %p182 = scmp.eq.s32.totalorder %s18, 0
    %p183 = por %p181, %p182
    %p184 = scmp.ne.s32.totalorder %s170, %s171
    %p185 = scmp.eq.s32.totalorder %s19, 95
    %p186 = por %p184, %p185
    %p188 = scmp.ne.s32.totalorder %s171, %s187
    %p189 = scmp.eq.s32.totalorder %s19, 0
    %p190 = por %p188, %p189
    %s191 = ssub.s32 %s20, %s39
    %s192 = ssub.s32 %s21, %s35
    %s193 = sor.u32 %s191, %s192
    %p194 = scmp.eq.s32.totalorder %s193, 0
    %s196 = sadd.s32 %s195, 1
    %s197 = scalar_select %p194, %s195, %s196
    %p200 = pneg %p194
    %p201 = scmp.eq.s32.totalorder %s13, 95
    %p202 = por %p200, %p201
    %p203 = scmp.ne.s32.totalorder %s195, %s198
    %p204 = scmp.eq.s32.totalorder %s13, 0
    %p205 = por %p203, %p204
    %p206 = scmp.ne.s32.totalorder %s195, %s198
    %p207 = scmp.eq.s32.totalorder %s18, 95
    %p208 = por %p206, %p207
    %p209 = scmp.ne.s32.totalorder %s198, %s199
    %p210 = scmp.eq.s32.totalorder %s18, 0
    %p211 = por %p209, %p210
    %p212 = scmp.ne.s32.totalorder %s198, %s199
    %p213 = scmp.eq.s32.totalorder %s19, 95
    %p214 = por %p212, %p213
    %p216 = scmp.ne.s32.totalorder %s199, %s215
    %p217 = scmp.eq.s32.totalorder %s19, 0
    %p218 = por %p216, %p217
    %p219 = scmp.le.s32.totalorder 1, %s13
    %p220 = scmp.lt.s32.totalorder %s13, 97
    %p221 = pnand %p219, %p220
    %p222 = pneg %p221
    // Predicated region
    $region9: #{unet_up_forward.6} parent=5 // pred_check
      _
    $region10: #{unet_up_forward.6} parent=5 // pred_check_branch
      %224 = sbr.rel (%p221) target = $region12
    $region11: #{unet_up_forward.6} parent=5 // pred_region
      %s225 = ssub.s32 %s13, 1
      // Predicated region
      $region13: #{unet_up_forward.6} parent=11 // pred_check
        %p226 = pneg %p113
      $region14: #{unet_up_forward.6} parent=11 // pred_check_branch
        %228 = sbr.rel (%p226) target = $region16
      $region15: #{unet_up_forward.6} parent=11 // pred_region
        _
      $region16: #{unet_up_forward.6} parent=11 // pred_fallthru
        _
      // Predicated region
      $region17: #{unet_up_forward.6} parent=11 // pred_check
        %p229 = pneg %p134
      $region18: #{unet_up_forward.6} parent=11 // pred_check_branch
        %231 = sbr.rel (%p229) target = $region20
      $region19: #{unet_up_forward.6} parent=11 // pred_region
        _
      $region20: #{unet_up_forward.6} parent=11 // pred_fallthru
        _
      // Predicated region
      $region21: #{unet_up_forward.6} parent=11 // pred_check
        %p232 = pneg %p155
      $region22: #{unet_up_forward.6} parent=11 // pred_check_branch
        %234 = sbr.rel (%p232) target = $region24
      $region23: #{unet_up_forward.6} parent=11 // pred_region
        _
      $region24: #{unet_up_forward.6} parent=11 // pred_fallthru
        _
    $region12: #{unet_up_forward.6} parent=5 // pred_fallthru
      _
    %p235 = scmp.lt.s32.totalorder %s13, 96
    // Predicated region
    $region25: #{unet_up_forward.6} parent=5 // pred_check
      %p236 = pneg %p235
    $region26: #{unet_up_forward.6} parent=5 // pred_check_branch
      %238 = sbr.rel (%p236) target = $region28
    $region27: #{unet_up_forward.6} parent=5 // pred_region
      // Predicated region
      $region29: #{unet_up_forward.6} parent=27 // pred_check
        %p239 = pneg %p56
      $region30: #{unet_up_forward.6} parent=27 // pred_check_branch
        %241 = sbr.rel (%p239) target = $region32
      $region31: #{unet_up_forward.6} parent=27 // pred_region
        %s242 = sadd.s32 %s21, %s22
        %p243 = scmp.lt.s32.totalorder %s20, 1
        %s244 = scalar_select %p243, %s20, 1
        %p245 = scmp.lt.s32.totalorder %s242, 17
        %s246 = scalar_select %p245, %s242, 17
        %s247 = smul.addr %s246, 3
        %s248 = smul.addr %s244, 54
        %s249 = sadd.s32 %s247, %s248
        %s250 = smul.addr %s249, 4
        %s251 = scalar_lea.vmem %s0, %s250
        %s252 = sadd.s32 %s21, %s22
      $region32: #{unet_up_forward.6} parent=27 // pred_fallthru
        _
      // Predicated region
      $region33: #{unet_up_forward.6} parent=27 // pred_check
        %p253 = pneg %p86
      $region34: #{unet_up_forward.6} parent=27 // pred_check_branch
        %255 = sbr.rel (%p253) target = $region36
      $region35: #{unet_up_forward.6} parent=27 // pred_region
        %s256 = sadd.s32 %s21, %s22
        %p257 = scmp.lt.s32.totalorder %s20, 1
        %s258 = scalar_select %p257, %s20, 1
        %p259 = scmp.lt.s32.totalorder %s256, 17
        %s260 = scalar_select %p259, %s256, 17
        %s261 = smul.addr %s260, 3
        %s262 = smul.addr %s258, 54
        %s263 = sadd.s32 %s261, %s262
        %s264 = smul.addr %s263, 4
        %s265 = scalar_lea.vmem %s1, %s264
        %s266 = sadd.s32 %s21, %s22
      $region36: #{unet_up_forward.6} parent=27 // pred_fallthru
        _
    $region28: #{unet_up_forward.6} parent=5 // pred_fallthru
      _
    %p267 = scmp.le.s32.totalorder 1, %s13
    %p268 = scmp.lt.s32.totalorder %s13, 97
    %p269 = pnand %p267, %p268
    %p270 = pneg %p269
    // Predicated region
    $region37: #{unet_up_forward.6} parent=5 // pred_check
      _
    $region38: #{unet_up_forward.6} parent=5 // pred_check_branch
      %272 = sbr.rel (%p269) target = $region40
    $region39: #{unet_up_forward.6} parent=5 // pred_region
      %s273 = ssub.s32 %s13, 1
      %s274 = sadd.s32 %s24, %s25
      %p275 = scmp.lt.s32.totalorder %s23, 1
      %s276 = scalar_select %p275, %s23, 1
      %p277 = scmp.lt.s32.totalorder %s274, 17
      %s278 = scalar_select %p277, %s274, 17
      %s279 = smul.addr %s278, 3
      %s280 = smul.addr %s276, 54
      %s281 = sadd.s32 %s279, %s280
      %s282 = smul.addr %s281, 4
      %s283 = scalar_lea.vmem %s0, %s282
      %p284 = pneg %p62
      %p285 = pneg %p59
      %s286 = sadd.s32 %s24, %s25
      %p287 = scmp.lt.s32.totalorder %s23, 1
      %s288 = scalar_select %p287, %s23, 1
      %p289 = scmp.lt.s32.totalorder %s286, 17
      %s290 = scalar_select %p289, %s286, 17
      %s291 = smul.addr %s290, 3
      %s292 = smul.addr %s288, 54
      %s293 = sadd.s32 %s291, %s292
      %s294 = smul.addr %s293, 4
      %s295 = scalar_lea.vmem %s1, %s294
      %p296 = pneg %p92
      %p297 = pneg %p89
      %p298 = pneg %p113
      %p299 = pneg %p110
      %p300 = pneg %p134
      %p301 = pneg %p131
      %p302 = pneg %p155
      %p303 = pneg %p152
      %p304 = pneg %p183
      %p305 = pneg %p180
      %p306 = scmp.lt.s32.totalorder %s23, 1
      %s307 = scalar_select %p306, %s23, 1
      %p308 = scmp.lt.s32.totalorder %s24, 15
      %s309 = scalar_select %p308, %s24, 15
      %s310 = smul.addr %s309, 2
      %s311 = smul.addr %s307, 32
      %s312 = sadd.s32 %s310, %s311
      %s313 = smul.addr %s312, 8
      %s314 = scalar_lea.vmem %s5, %s313
      %p315 = pneg %p211
      %p316 = pneg %p208
      %p317 = scmp.lt.s32.totalorder %s23, 1
      %s318 = scalar_select %p317, %s23, 1
      %p319 = scmp.lt.s32.totalorder %s24, 15
      %s320 = scalar_select %p319, %s24, 15
      %s321 = smul.addr %s318, 16
      %s322 = sadd.s32 %s320, %s321
      %s323 = smul.addr %s322, 2
      %s324 = scalar_lea.vmem %s6, %s323
      %s325 = sadd.s32 %s24, %s25
      %p326 = scmp.lt.s32.totalorder %s23, 1
      %s327 = scalar_select %p326, %s23, 1
      %p328 = scmp.lt.s32.totalorder %s325, 17
      %s329 = scalar_select %p328, %s325, 17
      %s330 = smul.addr %s329, 3
      %s331 = smul.addr %s327, 54
      %s332 = sadd.s32 %s330, %s331
      %s333 = smul.addr %s332, 4
      %s334 = scalar_lea.vmem %s0, %s333
      %s335 = sadd.s32 %s24, %s25
      %s336 = sadd.s32 %s24, %s25
      %p337 = scmp.lt.s32.totalorder %s23, 1
      %s338 = scalar_select %p337, %s23, 1
      %p339 = scmp.lt.s32.totalorder %s336, 17
      %s340 = scalar_select %p339, %s336, 17
      %s341 = smul.addr %s340, 3
      %s342 = smul.addr %s338, 54
      %s343 = sadd.s32 %s341, %s342
      %s344 = smul.addr %s343, 4
      %s345 = scalar_lea.vmem %s1, %s344
      %s346 = sadd.s32 %s24, %s25
      %p347 = scmp.lt.s32.totalorder %s23, 1
      %s348 = scalar_select %p347, %s23, 1
      %p349 = scmp.lt.s32.totalorder %s24, 15
      %s350 = scalar_select %p349, %s24, 15
      %s351 = smul.addr %s350, 2
      %s352 = smul.addr %s348, 32
      %s353 = sadd.s32 %s351, %s352
      %s354 = smul.addr %s353, 8
      %s355 = scalar_lea.vmem %s5, %s354
      %p356 = scmp.lt.s32.totalorder %s23, 1
      %s357 = scalar_select %p356, %s23, 1
      %p358 = scmp.lt.s32.totalorder %s24, 15
      %s359 = scalar_select %p358, %s24, 15
      %s360 = smul.addr %s357, 16
      %s361 = sadd.s32 %s359, %s360
      %s362 = smul.addr %s361, 2
      %s363 = scalar_lea.vmem %s6, %s362
      %p365 = scmp.eq.s32.totalorder %s25, 0
      // Predicated region
      $region41: #{unet_up_forward.6} parent=39 // pred_check
        %p366 = pneg %p365
      $region42: #{unet_up_forward.6} parent=39 // pred_check_branch
        %368 = sbr.rel (%p366) target = $region44
      $region43: #{unet_up_forward.6} parent=39 // pred_region
        %vm369 = vcmask 31744
        %370 = vst.msk [vmem:[#allocation2] sm:$0xff] %vm369, 0.0
        %371 = vst.msk [vmem:[#allocation2 + $0x8] sm:$0xff] %vm369, 0.0
      $region44: #{unet_up_forward.6} parent=39 // pred_fallthru
        _
      %v372 = vld [vmem:[#allocation2] sm:$0xff]
      %v373 = vld [vmem:[#allocation2 + $0x8] sm:$0xff]
      %v374 = vld [vmem:[%s334] sm:$0xf]
      %v375 = vld [vmem:[%s334 + $0x4] sm:$0xf]
      %v376 = vld [vmem:[%s334 + $0x8] sm:$0x1]
      %s377 = smul.u32 %s25, 3
      %s378 = smul.addr %s377, 2
      %s379 = scalar_lea.vmem %s2, %s378
      %v380 = vld [vmem:[%s379] sm:$0x3]
      %v381 = vld [vmem:[%s379 + $0x2] sm:$0x3]
      %v382 = vld [vmem:[%s379 + $0x4] sm:$0x3]
      %v385 = vunpack.c.l.b16 %v374
      %v386 = vunpack.c.l.b16 %v375
      %v387 = vpack.c.b16 %v386, %v385
      %vm388 = vcmask 31744
      %v390 = vsel %vm388, %v387, 0
      %vm392 = vcmask 1041408
      %v394 = vsel %vm392, %v380, 0
      %396 = vmatprep.subr.bf16.mxu0 0
      %397 = vmatpush1.bf16.msra.mxu0 0
      %398 = vmatprep.subr.bf16.mxu0 0
      %399 = vmatpush1.bf16.msra.mxu0 0
      %400 = vmatprep.subr.bf16.mxu0 0
      %401 = vmatpush1.bf16.msra.mxu0 0
      %402 = vmatprep.subr.bf16.mxu0 0
      %403 = vmatpush1.bf16.msra.mxu0 0
      %404 = vmatprep.subr.bf16.mxu0 0
      %405 = vmatpush1.bf16.msra.mxu0 0
      %406 = vmatprep.subr.bf16.mxu0 0
      %407 = vmatpush1.bf16.msra.mxu0 0
      %408 = vmatprep.subr.bf16.mxu0 0
      %409 = vmatpush1.bf16.msra.mxu0 0
      %410 = vmatprep.subr.bf16.mxu0 0
      %411 = vmatpush1.bf16.msra.mxu0 %v394
      %412 = vmatprep.subr.bf16.mxu0 0
      %413 = vmatpush2.bf16.msra.mxu0 0
      %414 = vmatprep.subr.bf16.mxu0 0
      %415 = vmatpush2.bf16.msra.mxu0 0
      %416 = vmatprep.subr.bf16.mxu0 0
      %417 = vmatpush2.bf16.msra.mxu0 0
      %418 = vmatprep.subr.bf16.mxu0 0
      %419 = vmatpush2.bf16.msra.mxu0 0
      %420 = vmatprep.subr.bf16.mxu0 0
      %421 = vmatpush2.bf16.msra.mxu0 0
      %422 = vmatprep.subr.bf16.mxu0 0
      %423 = vmatpush2.bf16.msra.mxu0 0
      %424 = vmatprep.subr.bf16.mxu0 0
      %425 = vmatpush2.bf16.msra.mxu0 0
      %426 = vmatprep.subr.bf16.mxu0 0
      %427 = vmatpush2.bf16.msra.mxu0 0
      %428 = vmatprep.mubr.bf16.mxu0 0
      %429 = vmatmul.mubr.bf16.gmra.mxu0 %v390
      %v430 = vpop.f32.mrf.mxu0
      %v431 = vadd.f32 0.0, %v430
      %v432 = vpop.f32.mrf.mxu0
      %v433 = vpop.f32.mrf.mxu0
      %v434 = vadd.f32 0.0, %v433
      %v435 = vpop.f32.mrf.mxu0
      %436 = vdwg.mxu0
      %v437 = vadd.f32 %v372, %v431
      %v438 = vadd.f32 %v373, %v434
      %v440 = vunpack.c.l.b16 %v376
      %v441 = vpack.c.b16 %v440, %v440
      %vm442 = vsmask.f32 7424
      %v443 = vshrl.u32 %v387, 16
      %v445 = vshll.u32 %v387, 16
      %v447 = vrot.slane %v445, 1
      %v448 = vor.u32 %v443, %v447
      %v450 = vshll.u32 %v441, 16
      %v452 = vrot.slane %v450, 1
      %v453 = vsel %vm442, %v448, %v452
      %v455 = vsel %vm388, %v453, 0
      %v458 = vsel %vm392, %v381, 0
      %460 = vmatprep.subr.bf16.mxu0 0
      %461 = vmatpush1.bf16.msra.mxu0 0
      %462 = vmatprep.subr.bf16.mxu0 0
      %463 = vmatpush1.bf16.msra.mxu0 0
      %464 = vmatprep.subr.bf16.mxu0 0
      %465 = vmatpush1.bf16.msra.mxu0 0
      %466 = vmatprep.subr.bf16.mxu0 0
      %467 = vmatpush1.bf16.msra.mxu0 0
      %468 = vmatprep.subr.bf16.mxu0 0
      %469 = vmatpush1.bf16.msra.mxu0 0
      %470 = vmatprep.subr.bf16.mxu0 0
      %471 = vmatpush1.bf16.msra.mxu0 0
      %472 = vmatprep.subr.bf16.mxu0 0
      %473 = vmatpush1.bf16.msra.mxu0 0
      %474 = vmatprep.subr.bf16.mxu0 0
      %475 = vmatpush1.bf16.msra.mxu0 %v458
      %476 = vmatprep.subr.bf16.mxu0 0
      %477 = vmatpush2.bf16.msra.mxu0 0
      %478 = vmatprep.subr.bf16.mxu0 0
      %479 = vmatpush2.bf16.msra.mxu0 0
      %480 = vmatprep.subr.bf16.mxu0 0
      %481 = vmatpush2.bf16.msra.mxu0 0
      %482 = vmatprep.subr.bf16.mxu0 0
      %483 = vmatpush2.bf16.msra.mxu0 0
      %484 = vmatprep.subr.bf16.mxu0 0
      %485 = vmatpush2.bf16.msra.mxu0 0
      %486 = vmatprep.subr.bf16.mxu0 0
      %487 = vmatpush2.bf16.msra.mxu0 0
      %488 = vmatprep.subr.bf16.mxu0 0
      %489 = vmatpush2.bf16.msra.mxu0 0
      %490 = vmatprep.subr.bf16.mxu0 0
      %491 = vmatpush2.bf16.msra.mxu0 0
      %492 = vmatprep.mubr.bf16.mxu0 0
      %493 = vmatmul.mubr.bf16.gmra.mxu0 %v455
      %v494 = vpop.f32.mrf.mxu0
      %v495 = vadd.f32 0.0, %v494
      %v496 = vpop.f32.mrf.mxu0
      %v497 = vpop.f32.mrf.mxu0
      %v498 = vadd.f32 0.0, %v497
      %v499 = vpop.f32.mrf.mxu0
      %500 = vdwg.mxu0
      %v501 = vadd.f32 %v437, %v495
      %v502 = vadd.f32 %v438, %v498
      %vm503 = vcmask 1046528
      %v504 = vrot.slane %v387, 1
      %v505 = vrot.slane %v441, 1
      %v506 = vsel %vm503, %v504, %v505
      %v508 = vsel %vm388, %v506, 0
      %v511 = vsel %vm392, %v382, 0
      %513 = vmatprep.subr.bf16.mxu0 0
      %514 = vmatpush1.bf16.msra.mxu0 0
      %515 = vmatprep.subr.bf16.mxu0 0
      %516 = vmatpush1.bf16.msra.mxu0 0
      %517 = vmatprep.subr.bf16.mxu0 0
      %518 = vmatpush1.bf16.msra.mxu0 0
      %519 = vmatprep.subr.bf16.mxu0 0
      %520 = vmatpush1.bf16.msra.mxu0 0
      %521 = vmatprep.subr.bf16.mxu0 0
      %522 = vmatpush1.bf16.msra.mxu0 0
      %523 = vmatprep.subr.bf16.mxu0 0
      %524 = vmatpush1.bf16.msra.mxu0 0
      %525 = vmatprep.subr.bf16.mxu0 0
      %526 = vmatpush1.bf16.msra.mxu0 0
      %527 = vmatprep.subr.bf16.mxu0 0
      %528 = vmatpush1.bf16.msra.mxu0 %v511
      %529 = vmatprep.subr.bf16.mxu0 0
      %530 = vmatpush2.bf16.msra.mxu0 0
      %531 = vmatprep.subr.bf16.mxu0 0
      %532 = vmatpush2.bf16.msra.mxu0 0
      %533 = vmatprep.subr.bf16.mxu0 0
      %534 = vmatpush2.bf16.msra.mxu0 0
      %535 = vmatprep.subr.bf16.mxu0 0
      %536 = vmatpush2.bf16.msra.mxu0 0
      %537 = vmatprep.subr.bf16.mxu0 0
      %538 = vmatpush2.bf16.msra.mxu0 0
      %539 = vmatprep.subr.bf16.mxu0 0
      %540 = vmatpush2.bf16.msra.mxu0 0
      %541 = vmatprep.subr.bf16.mxu0 0
      %542 = vmatpush2.bf16.msra.mxu0 0
      %543 = vmatprep.subr.bf16.mxu0 0
      %544 = vmatpush2.bf16.msra.mxu0 0
      %545 = vmatprep.mubr.bf16.mxu0 0
      %546 = vmatmul.mubr.bf16.gmra.mxu0 %v508
      %v547 = vpop.f32.mrf.mxu0
      %v548 = vadd.f32 0.0, %v547
      %v549 = vpop.f32.mrf.mxu0
      %v550 = vpop.f32.mrf.mxu0
      %v551 = vadd.f32 0.0, %v550
      %v552 = vpop.f32.mrf.mxu0
      %553 = vdwg.mxu0
      %v554 = vadd.f32 %v501, %v548
      %v555 = vadd.f32 %v502, %v551
      %v556 = vld [vmem:[%s345] sm:$0xf]
      %v557 = vld [vmem:[%s345 + $0x4] sm:$0xf]
      %v558 = vld [vmem:[%s345 + $0x8] sm:$0x1]
      %s559 = smul.addr %s377, 2
      %s560 = scalar_lea.vmem %s3, %s559
      %v561 = vld [vmem:[%s560] sm:$0x3]
      %v562 = vld [vmem:[%s560 + $0x2] sm:$0x3]
      %v563 = vld [vmem:[%s560 + $0x4] sm:$0x3]
      %v566 = vunpack.c.l.b16 %v556
      %v567 = vunpack.c.l.b16 %v557
      %v568 = vpack.c.b16 %v567, %v566
      %v570 = vsel %vm388, %v568, 0
      %v573 = vsel %vm392, %v561, 0
      %575 = vmatprep.subr.bf16.mxu0 0
      %576 = vmatpush1.bf16.msra.mxu0 0
      %577 = vmatprep.subr.bf16.mxu0 0
      %578 = vmatpush1.bf16.msra.mxu0 0
      %579 = vmatprep.subr.bf16.mxu0 0
      %580 = vmatpush1.bf16.msra.mxu0 0
      %581 = vmatprep.subr.bf16.mxu0 0
      %582 = vmatpush1.bf16.msra.mxu0 0
      %583 = vmatprep.subr.bf16.mxu0 0
      %584 = vmatpush1.bf16.msra.mxu0 0
      %585 = vmatprep.subr.bf16.mxu0 0
      %586 = vmatpush1.bf16.msra.mxu0 0
      %587 = vmatprep.subr.bf16.mxu0 0
      %588 = vmatpush1.bf16.msra.mxu0 0
      %589 = vmatprep.subr.bf16.mxu0 0
      %590 = vmatpush1.bf16.msra.mxu0 %v573
      %591 = vmatprep.subr.bf16.mxu0 0
      %592 = vmatpush2.bf16.msra.mxu0 0
      %593 = vmatprep.subr.bf16.mxu0 0
      %594 = vmatpush2.bf16.msra.mxu0 0
      %595 = vmatprep.subr.bf16.mxu0 0
      %596 = vmatpush2.bf16.msra.mxu0 0
      %597 = vmatprep.subr.bf16.mxu0 0
      %598 = vmatpush2.bf16.msra.mxu0 0
      %599 = vmatprep.subr.bf16.mxu0 0
      %600 = vmatpush2.bf16.msra.mxu0 0
      %601 = vmatprep.subr.bf16.mxu0 0
      %602 = vmatpush2.bf16.msra.mxu0 0
      %603 = vmatprep.subr.bf16.mxu0 0
      %604 = vmatpush2.bf16.msra.mxu0 0
      %605 = vmatprep.subr.bf16.mxu0 0
      %606 = vmatpush2.bf16.msra.mxu0 0
      %607 = vmatprep.mubr.bf16.mxu0 0
      %608 = vmatmul.mubr.bf16.gmra.mxu0 %v570
      %v609 = vpop.f32.mrf.mxu0
      %v610 = vadd.f32 0.0, %v609
      %v611 = vpop.f32.mrf.mxu0
      %v612 = vpop.f32.mrf.mxu0
      %v613 = vadd.f32 0.0, %v612
      %v614 = vpop.f32.mrf.mxu0
      %615 = vdwg.mxu0
      %v616 = vadd.f32 %v554, %v610
      %v617 = vadd.f32 %v555, %v613
      %v619 = vunpack.c.l.b16 %v558
      %v620 = vpack.c.b16 %v619, %v619
      %v621 = vshrl.u32 %v568, 16
      %v623 = vshll.u32 %v568, 16
      %v625 = vrot.slane %v623, 1
      %v626 = vor.u32 %v621, %v625
      %v628 = vshll.u32 %v620, 16
      %v630 = vrot.slane %v628, 1
      %v631 = vsel %vm442, %v626, %v630
      %v633 = vsel %vm388, %v631, 0
      %v636 = vsel %vm392, %v562, 0
      %638 = vmatprep.subr.bf16.mxu0 0
      %639 = vmatpush1.bf16.msra.mxu0 0
      %640 = vmatprep.subr.bf16.mxu0 0
      %641 = vmatpush1.bf16.msra.mxu0 0
      %642 = vmatprep.subr.bf16.mxu0 0
      %643 = vmatpush1.bf16.msra.mxu0 0
      %644 = vmatprep.subr.bf16.mxu0 0
      %645 = vmatpush1.bf16.msra.mxu0 0
      %646 = vmatprep.subr.bf16.mxu0 0
      %647 = vmatpush1.bf16.msra.mxu0 0
      %648 = vmatprep.subr.bf16.mxu0 0
      %649 = vmatpush1.bf16.msra.mxu0 0
      %650 = vmatprep.subr.bf16.mxu0 0
      %651 = vmatpush1.bf16.msra.mxu0 0
      %652 = vmatprep.subr.bf16.mxu0 0
      %653 = vmatpush1.bf16.msra.mxu0 %v636
      %654 = vmatprep.subr.bf16.mxu0 0
      %655 = vmatpush2.bf16.msra.mxu0 0
      %656 = vmatprep.subr.bf16.mxu0 0
      %657 = vmatpush2.bf16.msra.mxu0 0
      %658 = vmatprep.subr.bf16.mxu0 0
      %659 = vmatpush2.bf16.msra.mxu0 0
      %660 = vmatprep.subr.bf16.mxu0 0
      %661 = vmatpush2.bf16.msra.mxu0 0
      %662 = vmatprep.subr.bf16.mxu0 0
      %663 = vmatpush2.bf16.msra.mxu0 0
      %664 = vmatprep.subr.bf16.mxu0 0
      %665 = vmatpush2.bf16.msra.mxu0 0
      %666 = vmatprep.subr.bf16.mxu0 0
      %667 = vmatpush2.bf16.msra.mxu0 0
      %668 = vmatprep.subr.bf16.mxu0 0
      %669 = vmatpush2.bf16.msra.mxu0 0
      %670 = vmatprep.mubr.bf16.mxu0 0
      %671 = vmatmul.mubr.bf16.gmra.mxu0 %v633
      %v672 = vpop.f32.mrf.mxu0
      %v673 = vadd.f32 0.0, %v672
      %v674 = vpop.f32.mrf.mxu0
      %v675 = vpop.f32.mrf.mxu0
      %v676 = vadd.f32 0.0, %v675
      %v677 = vpop.f32.mrf.mxu0
      %678 = vdwg.mxu0
      %v679 = vadd.f32 %v616, %v673
      %v680 = vadd.f32 %v617, %v676
      %v681 = vrot.slane %v568, 1
      %v682 = vrot.slane %v620, 1
      %v683 = vsel %vm503, %v681, %v682
      %v685 = vsel %vm388, %v683, 0
      %v688 = vsel %vm392, %v563, 0
      %690 = vmatprep.subr.bf16.mxu0 0
      %691 = vmatpush1.bf16.msra.mxu0 0
      %692 = vmatprep.subr.bf16.mxu0 0
      %693 = vmatpush1.bf16.msra.mxu0 0
      %694 = vmatprep.subr.bf16.mxu0 0
      %695 = vmatpush1.bf16.msra.mxu0 0
      %696 = vmatprep.subr.bf16.mxu0 0
      %697 = vmatpush1.bf16.msra.mxu0 0
      %698 = vmatprep.subr.bf16.mxu0 0
      %699 = vmatpush1.bf16.msra.mxu0 0
      %700 = vmatprep.subr.bf16.mxu0 0
      %701 = vmatpush1.bf16.msra.mxu0 0
      %702 = vmatprep.subr.bf16.mxu0 0
      %703 = vmatpush1.bf16.msra.mxu0 0
      %704 = vmatprep.subr.bf16.mxu0 0
      %705 = vmatpush1.bf16.msra.mxu0 %v688
      %706 = vmatprep.subr.bf16.mxu0 0
      %707 = vmatpush2.bf16.msra.mxu0 0
      %708 = vmatprep.subr.bf16.mxu0 0
      %709 = vmatpush2.bf16.msra.mxu0 0
      %710 = vmatprep.subr.bf16.mxu0 0
      %711 = vmatpush2.bf16.msra.mxu0 0
      %712 = vmatprep.subr.bf16.mxu0 0
      %713 = vmatpush2.bf16.msra.mxu0 0
      %714 = vmatprep.subr.bf16.mxu0 0
      %715 = vmatpush2.bf16.msra.mxu0 0
      %716 = vmatprep.subr.bf16.mxu0 0
      %717 = vmatpush2.bf16.msra.mxu0 0
      %718 = vmatprep.subr.bf16.mxu0 0
      %719 = vmatpush2.bf16.msra.mxu0 0
      %720 = vmatprep.subr.bf16.mxu0 0
      %721 = vmatpush2.bf16.msra.mxu0 0
      %722 = vmatprep.mubr.bf16.mxu0 0
      %723 = vmatmul.mubr.bf16.gmra.mxu0 %v685
      %v724 = vpop.f32.mrf.mxu0
      %v725 = vadd.f32 0.0, %v724
      %v726 = vpop.f32.mrf.mxu0
      %v727 = vpop.f32.mrf.mxu0
      %v728 = vadd.f32 0.0, %v727
      %v729 = vpop.f32.mrf.mxu0
      %730 = vdwg.mxu0
      %v731 = vadd.f32 %v679, %v725
      %v732 = vadd.f32 %v680, %v728
      %733 = vst.msk [vmem:[#allocation2] sm:$0xff] %vm388, %v731
      %734 = vst.msk [vmem:[#allocation2 + $0x8] sm:$0xff] %vm388, %v732
      %p735 = scmp.eq.s32.totalorder %s25, 2
      // Predicated region
      $region45: #{unet_up_forward.6} parent=39 // pred_check
        %p736 = pneg %p735
      $region46: #{unet_up_forward.6} parent=39 // pred_check_branch
        %738 = sbr.rel (%p736) target = $region48
      $region47: #{unet_up_forward.6} parent=39 // pred_region
        %v739 = vld [vmem:[#allocation2] sm:$0xff]
        %v740 = vld [vmem:[#allocation2 + $0x8] sm:$0xff]
        %v741 = vld [vmem:[%s4] sm:$0x1]
        %v743 = vlaneseq
        %v744 = vshrl.u32 %v743, 7
        %v745 = vsub.s32 0, %v744
        %v746 = vrot.slane %v741, %v745
        %v748 = vadd.f32 %v739, %v746
        %v749 = vadd.f32 %v740, %v746
        %750 = vst.msk [vmem:[%s355] sm:$0xff] %vm388, %v748
        %751 = vst.msk [vmem:[%s355 + $0x8] sm:$0xff] %vm388, %v749
        %v752 = vsel %vm388, %v748, 0.0
        %v753 = vsel %vm388, %v749, 0.0
        %v754 = vadd.f32 %v752, %v753
        %v755 = vrot.slane %v754, 4
        %v756 = vadd.f32 %v754, %v755
        %v757 = vrot.slane %v756, 2
        %v758 = vadd.f32 %v756, %v757
        %v759 = vrot.slane %v758, 1
        %v760 = vadd.f32 %v758, %v759
        %vm761 = vcmask 24576
        %762 = vst.msk [vmem:[%s363] sm:$0x1] %vm761, %v760
        %v763 = vmul.f32 %v748, %v748
        %v764 = vmul.f32 %v749, %v749
        %v765 = vsel %vm388, %v763, 0.0
        %v766 = vsel %vm388, %v764, 0.0
        %v767 = vadd.f32 %v765, %v766
        %v768 = vrot.slane %v767, 4
        %v769 = vadd.f32 %v767, %v768
        %v770 = vrot.slane %v769, 2
        %v771 = vadd.f32 %v769, %v770
        %v772 = vrot.slane %v771, 1
        %v773 = vadd.f32 %v771, %v772
        %774 = vst.msk [vmem:[%s363 + $0x1] sm:$0x1] %vm761, %v773
      $region48: #{unet_up_forward.6} parent=39 // pred_fallthru
        _
      %p775 = scmp.lt.s32.totalorder %s23, 1
      %s776 = scalar_select %p775, %s23, 1
      %p777 = scmp.lt.s32.totalorder %s24, 15
      %s778 = scalar_select %p777, %s24, 15
      %s779 = smul.addr %s778, 2
      %s780 = smul.addr %s776, 32
      %s781 = sadd.s32 %s779, %s780
      %s782 = smul.addr %s781, 8
      %s783 = scalar_lea.vmem %s5, %s782
      %p784 = scmp.lt.s32.totalorder %s23, 1
      %s785 = scalar_select %p784, %s23, 1
      %p786 = scmp.lt.s32.totalorder %s24, 15
      %s787 = scalar_select %p786, %s24, 15
      %s788 = smul.addr %s785, 16
      %s789 = sadd.s32 %s787, %s788
      %s790 = smul.addr %s789, 2
      %s791 = scalar_lea.vmem %s6, %s790
      // Predicated region
      $region49: #{unet_up_forward.6} parent=39 // pred_check
        %p792 = pneg %p180
      $region50: #{unet_up_forward.6} parent=39 // pred_check_branch
        %794 = sbr.rel (%p792) target = $region52
      $region51: #{unet_up_forward.6} parent=39 // pred_region
        _
      $region52: #{unet_up_forward.6} parent=39 // pred_fallthru
        _
      // Predicated region
      $region53: #{unet_up_forward.6} parent=39 // pred_check
        %p795 = pneg %p208
      $region54: #{unet_up_forward.6} parent=39 // pred_check_branch
        %797 = sbr.rel (%p795) target = $region56
      $region55: #{unet_up_forward.6} parent=39 // pred_region
        _
      $region56: #{unet_up_forward.6} parent=39 // pred_fallthru
        _
    $region40: #{unet_up_forward.6} parent=5 // pred_fallthru
      _
    %p798 = scmp.le.s32.totalorder 2, %s13
    // Predicated region
    $region57: #{unet_up_forward.6} parent=5 // pred_check
      %p799 = pneg %p798
    $region58: #{unet_up_forward.6} parent=5 // pred_check_branch
      %801 = sbr.rel (%p799) target = $region60
    $region59: #{unet_up_forward.6} parent=5 // pred_region
      %s802 = ssub.s32 %s13, 2
      // Predicated region
      $region61: #{unet_up_forward.6} parent=59 // pred_check
        %p803 = pneg %p186
      $region62: #{unet_up_forward.6} parent=59 // pred_check_branch
        %805 = sbr.rel (%p803) target = $region64
      $region63: #{unet_up_forward.6} parent=59 // pred_region
        %p806 = scmp.lt.s32.totalorder %s26, 1
        %s807 = scalar_select %p806, %s26, 1
        %p808 = scmp.lt.s32.totalorder %s27, 15
        %s809 = scalar_select %p808, %s27, 15
        %s810 = smul.addr %s809, 2
        %s811 = smul.addr %s807, 32
        %s812 = sadd.s32 %s810, %s811
        %s813 = smul.addr %s812, 8
        %s814 = scalar_lea.vmem %s5, %s813
      $region64: #{unet_up_forward.6} parent=59 // pred_fallthru
        _
      // Predicated region
      $region65: #{unet_up_forward.6} parent=59 // pred_check
        %p815 = pneg %p214
      $region66: #{unet_up_forward.6} parent=59 // pred_check_branch
        %817 = sbr.rel (%p815) target = $region68
      $region67: #{unet_up_forward.6} parent=59 // pred_region
        %p818 = scmp.lt.s32.totalorder %s26, 1
        %s819 = scalar_select %p818, %s26, 1
        %p820 = scmp.lt.s32.totalorder %s27, 15
        %s821 = scalar_select %p820, %s27, 15
        %s822 = smul.addr %s819, 16
        %s823 = sadd.s32 %s821, %s822
        %s824 = smul.addr %s823, 2
        %s825 = scalar_lea.vmem %s6, %s824
      $region68: #{unet_up_forward.6} parent=59 // pred_fallthru
        _
    $region60: #{unet_up_forward.6} parent=5 // pred_fallthru
      _
  $region6: #{unet_up_forward.6} parent=0 // loop_footer
    %s17 = sadd.s32 1, %s13
  $region7: #{unet_up_forward.6} parent=0 // loop_footer_branch
    %12 = sbr.rel target = $region3
  $region8: #{unet_up_forward.6} parent=0 // loop_exit
    _

// kernel: unet_up_forward.9
$region0: #{unet_up_forward.9}
  #allocation0 [shape = 'u32[]', space=smem, size = 0x4, offset = 0x4, fixed_abs, tag = 'smem constant byte address 0x4 - core index']
  #allocation1 [shape = 'u32[144,128]{1,0:T(1,128)}', space=vmem, size = 0x12000, scoped, tag = 'internal scratch']
  %s0 = inlined_call_operand.vmem [shape: f32[2,16,16,4], index: 0, kind: input, shape index: {}]
  %s1 = inlined_call_operand.vmem [shape: f32[1,1,4], index: 1, kind: input, shape index: {}]
  %s2 = inlined_call_operand.vmem [shape: f32[1,1,4], index: 2, kind: input, shape index: {}]
  %s3 = inlined_call_operand.vmem [shape: f32[2,16,16,4], index: 3, kind: output, shape index: {}]
  %s4 = sld [smem:[#allocation0]]
  $region45: #{unet_up_forward.9} parent=0
    _
  %s6 = ssub.s32 1, %s4
  %s7 = scalar_select 0, %s6, %s4
  loop: start=0, step=1, limit=6
  $region2: #{unet_up_forward.9} parent=0 // loop_pre_header
    _
  $region3: #{unet_up_forward.9} parent=0 // loop_header
    %s9 = sphi 0, %s13
    %p10 = scmp.ge.s32.totalorder %s9, 6
    %s16 = sphi 0, %s28
    %s17 = sphi 0, %s24
    %s18 = sphi 0, %s16
    %s19 = sphi 0, %s17
    %s20 = sphi 0, %s18
    %s21 = sphi 0, %s19
    %s33 = sphi 0, %s35
    %s36 = sphi 0, %s33
    %s37 = sphi 0, %s36
    %s53 = sphi 0, %s37
    %s57 = sphi 0, %s57
    %s59 = sphi 0, %s57
    %s60 = sphi 0, %s59
    %s74 = sphi 0, %s60
    %s78 = sphi 0, %s78
    %s80 = sphi 0, %s78
    %s81 = sphi 0, %s80
    %s95 = sphi 0, %s81
    %s103 = sphi 0, %s105
    %s106 = sphi 0, %s103
    %s107 = sphi 0, %s106
    %s123 = sphi 0, %s107
  $region4: #{unet_up_forward.9} parent=0 // loop_header_branch
    %12 = sbr.rel (%p10) target = $region8
  $region5: #{unet_up_forward.9} parent=0 // loop_body
    %s14 = ssub.s32 %s9, 1
    %s15 = ssub.s32 %s9, 2
    %s22 = sadd.s32 1, %s17
    %p23 = scmp.ge.s32.totalorder %s22, 2
    %s24 = scalar_select %p23, 0, %s22
    %s25 = sadd.s32 1, %s16
    %s26 = scalar_select %p23, %s25, %s16
    %p27 = scmp.ge.s32.totalorder %s26, 2
    %s28 = scalar_select %p27, 0, %s26
    %s29 = ssub.s32 %s16, %s28
    %s30 = ssub.s32 %s17, %s24
    %s31 = sor.u32 %s29, %s30
    %p32 = scmp.eq.s32.totalorder %s31, 0
    %s34 = sadd.s32 %s33, 1
    %s35 = scalar_select %p32, %s33, %s34
    %p38 = pneg %p32
    %p39 = scmp.eq.s32.totalorder %s9, 3
    %p40 = por %p38, %p39
    %p41 = scmp.ne.s32.totalorder %s33, %s36
    %p42 = scmp.eq.s32.totalorder %s9, 0
    %p43 = por %p41, %p42
    %p44 = scmp.ne.s32.totalorder %s33, %s36
    %p45 = scmp.eq.s32.totalorder %s14, 3
    %p46 = por %p44, %p45
    %p47 = scmp.ne.s32.totalorder %s36, %s37
    %p48 = scmp.eq.s32.totalorder %s14, 0
    %p49 = por %p47, %p48
    %p50 = scmp.ne.s32.totalorder %s36, %s37
    %p51 = scmp.eq.s32.totalorder %s15, 3
    %p52 = por %p50, %p51
    %p54 = scmp.ne.s32.totalorder %s37, %s53
    %p55 = scmp.eq.s32.totalorder %s15, 0
    %p56 = por %p54, %p55
    %s58 = sadd.s32 %s57, 1
    %p61 = scmp.eq.s32.totalorder %s9, 3
    %p62 = scmp.ne.s32.totalorder %s57, %s59
    %p63 = scmp.eq.s32.totalorder %s9, 0
    %p64 = por %p62, %p63
    %p65 = scmp.ne.s32.totalorder %s57, %s59
    %p66 = scmp.eq.s32.totalorder %s14, 3
    %p67 = por %p65, %p66
    %p68 = scmp.ne.s32.totalorder %s59, %s60
    %p69 = scmp.eq.s32.totalorder %s14, 0
    %p70 = por %p68, %p69
    %p71 = scmp.ne.s32.totalorder %s59, %s60
    %p72 = scmp.eq.s32.totalorder %s15, 3
    %p73 = por %p71, %p72
    %p75 = scmp.ne.s32.totalorder %s60, %s74
    %p76 = scmp.eq.s32.totalorder %s15, 0
    %p77 = por %p75, %p76
    %s79 = sadd.s32 %s78, 1
    %p82 = scmp.eq.s32.totalorder %s9, 3
    %p83 = scmp.ne.s32.totalorder %s78, %s80
    %p84 = scmp.eq.s32.totalorder %s9, 0
    %p85 = por %p83, %p84
    %p86 = scmp.ne.s32.totalorder %s78, %s80
    %p87 = scmp.eq.s32.totalorder %s14, 3
    %p88 = por %p86, %p87
    %p89 = scmp.ne.s32.totalorder %s80, %s81
    %p90 = scmp.eq.s32.totalorder %s14, 0
    %p91 = por %p89, %p90
    %p92 = scmp.ne.s32.totalorder %s80, %s81
    %p93 = scmp.eq.s32.totalorder %s15, 3
    %p94 = por %p92, %p93
    %p96 = scmp.ne.s32.totalorder %s81, %s95
    %p97 = scmp.eq.s32.totalorder %s15, 0
    %p98 = por %p96, %p97
    %s99 = ssub.s32 %s16, %s28
    %s100 = ssub.s32 %s17, %s24
    %s101 = sor.u32 %s99, %s100
    %p102 = scmp.eq.s32.totalorder %s101, 0
    %s104 = sadd.s32 %s103, 1
    %s105 = scalar_select %p102, %s103, %s104
    %p108 = pneg %p102
    %p109 = scmp.eq.s32.totalorder %s9, 3
    %p110 = por %p108, %p109
    %p111 = scmp.ne.s32.totalorder %s103, %s106
    %p112 = scmp.eq.s32.totalorder %s9, 0
    %p113 = por %p111, %p112
    %p114 = scmp.ne.s32.totalorder %s103, %s106
    %p115 = scmp.eq.s32.totalorder %s14, 3
    %p116 = por %p114, %p115
    %p117 = scmp.ne.s32.totalorder %s106, %s107
    %p118 = scmp.eq.s32.totalorder %s14, 0
    %p119 = por %p117, %p118
    %p120 = scmp.ne.s32.totalorder %s106, %s107
    %p121 = scmp.eq.s32.totalorder %s15, 3
    %p122 = por %p120, %p121
    %p124 = scmp.ne.s32.totalorder %s107, %s123
    %p125 = scmp.eq.s32.totalorder %s15, 0
    %p126 = por %p124, %p125
    %p127 = scmp.le.s32.totalorder 1, %s9
    %p128 = scmp.lt.s32.totalorder %s9, 5
    %p129 = pnand %p127, %p128
    %p130 = pneg %p129
    // Predicated region
    $region9: #{unet_up_forward.9} parent=5 // pred_check
      _
    $region10: #{unet_up_forward.9} parent=5 // pred_check_branch
      %132 = sbr.rel (%p129) target = $region12
    $region11: #{unet_up_forward.9} parent=5 // pred_region
      %s133 = ssub.s32 %s9, 1
      // Predicated region
      $region13: #{unet_up_forward.9} parent=11 // pred_check
        %p134 = pneg %p70
      $region14: #{unet_up_forward.9} parent=11 // pred_check_branch
        %136 = sbr.rel (%p134) target = $region16
      $region15: #{unet_up_forward.9} parent=11 // pred_region
        _
      $region16: #{unet_up_forward.9} parent=11 // pred_fallthru
        _
      // Predicated region
      $region17: #{unet_up_forward.9} parent=11 // pred_check
        %p137 = pneg %p91
      $region18: #{unet_up_forward.9} parent=11 // pred_check_branch
        %139 = sbr.rel (%p137) target = $region20
      $region19: #{unet_up_forward.9} parent=11 // pred_region
        _
      $region20: #{unet_up_forward.9} parent=11 // pred_fallthru
        _
    $region12: #{unet_up_forward.9} parent=5 // pred_fallthru
      _
    %p140 = scmp.lt.s32.totalorder %s9, 4
    // Predicated region
    $region21: #{unet_up_forward.9} parent=5 // pred_check
      %p141 = pneg %p140
    $region22: #{unet_up_forward.9} parent=5 // pred_check_branch
      %143 = sbr.rel (%p141) target = $region24
    $region23: #{unet_up_forward.9} parent=5 // pred_region
      // Predicated region
      $region25: #{unet_up_forward.9} parent=23 // pred_check
        %p144 = pneg %p43
      $region26: #{unet_up_forward.9} parent=23 // pred_check_branch
        %146 = sbr.rel (%p144) target = $region28
      $region27: #{unet_up_forward.9} parent=23 // pred_region
        %s147 = smul.u32 8, %s17
        %p148 = scmp.lt.s32.totalorder %s16, 1
        %s149 = scalar_select %p148, %s16, 1
        %p150 = scmp.lt.s32.totalorder %s147, 15
        %s151 = scalar_select %p150, %s147, 15
        %s152 = smul.addr %s151, 2
        %s153 = smul.addr %s149, 32
        %s154 = sadd.s32 %s152, %s153
        %s155 = smul.addr %s154, 8
        %s156 = scalar_lea.vmem %s0, %s155
        %s157 = smul.u32 8, %s17
      $region28: #{unet_up_forward.9} parent=23 // pred_fallthru
        _
    $region24: #{unet_up_forward.9} parent=5 // pred_fallthru
      _
    %p158 = scmp.le.s32.totalorder 1, %s9
    %p159 = scmp.lt.s32.totalorder %s9, 5
    %p160 = pnand %p158, %p159
    %p161 = pneg %p160
    // Predicated region
    $region29: #{unet_up_forward.9} parent=5 // pred_check
      _
    $region30: #{unet_up_forward.9} parent=5 // pred_check_branch
      %163 = sbr.rel (%p160) target = $region32
    $region31: #{unet_up_forward.9} parent=5 // pred_region
      %s164 = ssub.s32 %s9, 1
      %s165 = smul.u32 8, %s19
      %p166 = scmp.lt.s32.totalorder %s18, 1
      %s167 = scalar_select %p166, %s18, 1
      %p168 = scmp.lt.s32.totalorder %s165, 15
      %s169 = scalar_select %p168, %s165, 15
      %s170 = smul.addr %s169, 2
      %s171 = smul.addr %s167, 32
      %s172 = sadd.s32 %s170, %s171
      %s173 = smul.addr %s172, 8
      %s174 = scalar_lea.vmem %s0, %s173
      %p175 = pneg %p49
      %p176 = pneg %p46
      %p177 = pneg %p70
      %p178 = pneg %p67
      %p179 = pneg %p91
      %p180 = pneg %p88
      %p181 = pneg %p119
      %p182 = pneg %p116
      %s183 = smul.u32 8, %s19
      %p184 = scmp.lt.s32.totalorder %s18, 1
      %s185 = scalar_select %p184, %s18, 1
      %p186 = scmp.lt.s32.totalorder %s183, 15
      %s187 = scalar_select %p186, %s183, 15
      %s188 = smul.addr %s187, 2
      %s189 = smul.addr %s185, 32
      %s190 = sadd.s32 %s188, %s189
      %s191 = smul.addr %s190, 8
      %s192 = scalar_lea.vmem %s3, %s191
      %s193 = smul.u32 8, %s19
      %p194 = scmp.lt.s32.totalorder %s18, 1
      %s195 = scalar_select %p194, %s18, 1
      %p196 = scmp.lt.s32.totalorder %s193, 15
      %s197 = scalar_select %p196, %s193, 15
      %s198 = smul.addr %s197, 2
      %s199 = smul.addr %s195, 32
      %s200 = sadd.s32 %s198, %s199
      %s201 = smul.addr %s200, 8
      %s202 = scalar_lea.vmem %s0, %s201
      %s203 = smul.u32 8, %s19
      %s204 = smul.u32 8, %s19
      %p205 = scmp.lt.s32.totalorder %s18, 1
      %s206 = scalar_select %p205, %s18, 1
      %p207 = scmp.lt.s32.totalorder %s204, 15
      %s208 = scalar_select %p207, %s204, 15
      %s209 = smul.addr %s208, 2
      %s210 = smul.addr %s206, 32
      %s211 = sadd.s32 %s209, %s210
      %s212 = smul.addr %s211, 8
      %s213 = scalar_lea.vmem %s3, %s212
      %s214 = smul.u32 8, %s19
      %v215 = vld [vmem:[%s202] sm:$0xff]
      %v216 = vld [vmem:[%s202 + $0x8] sm:$0xff]
      %v217 = vld [vmem:[%s202 + $0x10] sm:$0xff]
      %v218 = vld [vmem:[%s202 + $0x18] sm:$0xff]
      %v219 = vld [vmem:[%s202 + $0x20] sm:$0xff]
      %v220 = vld [vmem:[%s202 + $0x28] sm:$0xff]
      %v221 = vld [vmem:[%s202 + $0x30] sm:$0xff]
      %v222 = vld [vmem:[%s202 + $0x38] sm:$0xff]
      %v223 = vld [vmem:[%s202 + $0x40] sm:$0xff]
      %v224 = vld [vmem:[%s202 + $0x48] sm:$0xff]
      %v225 = vld [vmem:[%s202 + $0x50] sm:$0xff]
      %v226 = vld [vmem:[%s202 + $0x58] sm:$0xff]
      %v227 = vld [vmem:[%s202 + $0x60] sm:$0xff]
      %v228 = vld [vmem:[%s202 + $0x68] sm:$0xff]
      %v229 = vld [vmem:[%s202 + $0x70] sm:$0xff]
      %v230 = vld [vmem:[%s202 + $0x78] sm:$0xff]
      %v231 = vld [vmem:[%s1] sm:$0x1]
      %v233 = vlaneseq
      %v234 = vshrl.u32 %v233, 7
      %v235 = vsub.s32 0, %v234
      %v236 = vrot.slane %v231, %v235
      %v238 = vmul.f32 %v215, %v236
      %v239 = vmul.f32 %v216, %v236
      %v240 = vmul.f32 %v217, %v236
      %v241 = vmul.f32 %v218, %v236
      %v242 = vmul.f32 %v219, %v236
      %v243 = vmul.f32 %v220, %v236
      %v244 = vmul.f32 %v221, %v236
      %v245 = vmul.f32 %v222, %v236
      %v246 = vmul.f32 %v223, %v236
      %v247 = vmul.f32 %v224, %v236
      %v248 = vmul.f32 %v225, %v236
      %v249 = vmul.f32 %v226, %v236
      %v250 = vmul.f32 %v227, %v236
      %v251 = vmul.f32 %v228, %v236
      %v252 = vmul.f32 %v229, %v236
      %v253 = vmul.f32 %v230, %v236
      %v254 = vld [vmem:[%s2] sm:$0x1]
      %v256 = vlaneseq
      %v257 = vshrl.u32 %v256, 7
      %v258 = vsub.s32 0, %v257
      %v259 = vrot.slane %v254, %v258
      %v261 = vadd.f32 %v238, %v259
      %v262 = vadd.f32 %v239, %v259
      %v263 = vadd.f32 %v240, %v259
      %v264 = vadd.f32 %v241, %v259
      %v265 = vadd.f32 %v242, %v259
      %v266 = vadd.f32 %v243, %v259
      %v267 = vadd.f32 %v244, %v259
      %v268 = vadd.f32 %v245, %v259
      %v269 = vadd.f32 %v246, %v259
      %v270 = vadd.f32 %v247, %v259
      %v271 = vadd.f32 %v248, %v259
      %v272 = vadd.f32 %v249, %v259
      %v273 = vadd.f32 %v250, %v259
      %v274 = vadd.f32 %v251, %v259
      %v275 = vadd.f32 %v252, %v259
      %v276 = vadd.f32 %v253, %v259
      %v277 = vmax.f32 %v261, 0.0
      %v278 = vmax.f32 %v262, 0.0
      %v279 = vmax.f32 %v263, 0.0
      %v280 = vmax.f32 %v264, 0.0
      %v281 = vmax.f32 %v265, 0.0
      %v282 = vmax.f32 %v266, 0.0
      %v283 = vmax.f32 %v267, 0.0
      %v284 = vmax.f32 %v268, 0.0
      %v285 = vmax.f32 %v269, 0.0
      %v286 = vmax.f32 %v270, 0.0
      %v287 = vmax.f32 %v271, 0.0
      %v288 = vmax.f32 %v272, 0.0
      %v289 = vmax.f32 %v273, 0.0
      %v290 = vmax.f32 %v274, 0.0
      %v291 = vmax.f32 %v275, 0.0
      %v292 = vmax.f32 %v276, 0.0
      %vm293 = vcmask 31744
      %294 = vst.msk [vmem:[%s213] sm:$0xff] %vm293, %v277
      %295 = vst.msk [vmem:[%s213 + $0x8] sm:$0xff] %vm293, %v278
      %296 = vst.msk [vmem:[%s213 + $0x10] sm:$0xff] %vm293, %v279
      %297 = vst.msk [vmem:[%s213 + $0x18] sm:$0xff] %vm293, %v280
      %298 = vst.msk [vmem:[%s213 + $0x20] sm:$0xff] %vm293, %v281
      %299 = vst.msk [vmem:[%s213 + $0x28] sm:$0xff] %vm293, %v282
      %300 = vst.msk [vmem:[%s213 + $0x30] sm:$0xff] %vm293, %v283
      %301 = vst.msk [vmem:[%s213 + $0x38] sm:$0xff] %vm293, %v284
      %302 = vst.msk [vmem:[%s213 + $0x40] sm:$0xff] %vm293, %v285
      %303 = vst.msk [vmem:[%s213 + $0x48] sm:$0xff] %vm293, %v286
      %304 = vst.msk [vmem:[%s213 + $0x50] sm:$0xff] %vm293, %v287
      %305 = vst.msk [vmem:[%s213 + $0x58] sm:$0xff] %vm293, %v288
      %306 = vst.msk [vmem:[%s213 + $0x60] sm:$0xff] %vm293, %v289
      %307 = vst.msk [vmem:[%s213 + $0x68] sm:$0xff] %vm293, %v290
      %308 = vst.msk [vmem:[%s213 + $0x70] sm:$0xff] %vm293, %v291
      %309 = vst.msk [vmem:[%s213 + $0x78] sm:$0xff] %vm293, %v292
      %s310 = smul.u32 8, %s19
      %p311 = scmp.lt.s32.totalorder %s18, 1
      %s312 = scalar_select %p311, %s18, 1
      %p313 = scmp.lt.s32.totalorder %s310, 15
      %s314 = scalar_select %p313, %s310, 15
      %s315 = smul.addr %s314, 2
      %s316 = smul.addr %s312, 32
      %s317 = sadd.s32 %s315, %s316
      %s318 = smul.addr %s317, 8
      %s319 = scalar_lea.vmem %s3, %s318
      // Predicated region
      $region33: #{unet_up_forward.9} parent=31 // pred_check
        %p320 = pneg %p116
      $region34: #{unet_up_forward.9} parent=31 // pred_check_branch
        %322 = sbr.rel (%p320) target = $region36
      $region35: #{unet_up_forward.9} parent=31 // pred_region
        %s323 = smul.u32 8, %s19
      $region36: #{unet_up_forward.9} parent=31 // pred_fallthru
        _
    $region32: #{unet_up_forward.9} parent=5 // pred_fallthru
      _
    %p324 = scmp.le.s32.totalorder 2, %s9
    // Predicated region
    $region37: #{unet_up_forward.9} parent=5 // pred_check
      %p325 = pneg %p324
    $region38: #{unet_up_forward.9} parent=5 // pred_check_branch
      %327 = sbr.rel (%p325) target = $region40
    $region39: #{unet_up_forward.9} parent=5 // pred_region
      %s328 = ssub.s32 %s9, 2
      // Predicated region
      $region41: #{unet_up_forward.9} parent=39 // pred_check
        %p329 = pneg %p122
      $region42: #{unet_up_forward.9} parent=39 // pred_check_branch
        %331 = sbr.rel (%p329) target = $region44
      $region43: #{unet_up_forward.9} parent=39 // pred_region
        %s332 = smul.u32 8, %s21
        %p333 = scmp.lt.s32.totalorder %s20, 1
        %s334 = scalar_select %p333, %s20, 1
        %p335 = scmp.lt.s32.totalorder %s332, 15
        %s336 = scalar_select %p335, %s332, 15
        %s337 = smul.addr %s336, 2
        %s338 = smul.addr %s334, 32
        %s339 = sadd.s32 %s337, %s338
        %s340 = smul.addr %s339, 8
        %s341 = scalar_lea.vmem %s3, %s340
      $region44: #{unet_up_forward.9} parent=39 // pred_fallthru
        _
    $region40: #{unet_up_forward.9} parent=5 // pred_fallthru
      _
  $region6: #{unet_up_forward.9} parent=0 // loop_footer
    %s13 = sadd.s32 1, %s9
  $region7: #{unet_up_forward.9} parent=0 // loop_footer_branch
    %8 = sbr.rel target = $region3
  $region8: #{unet_up_forward.9} parent=0 // loop_exit
    _

</llo_original>
